<compile_context>
chip_gen: v5e
topology: v5e:2x2
jax: 0.10.0
libtpu: 0.0.40
codegen_flags: <defaults>
</compile_context>

<pallas_src>
import numpy as np
import jax
import jax.numpy as jnp
from jax import lax
from jax.experimental import pallas as pl
from jax.experimental.pallas import tpu as pltpu

BN_EPS = 1e-5


def _round_up(a, b):
    return (a + b - 1) // b * b


# ----------------------------------------------------------------------------
# Kernel A: masked sum / sum-of-squares over valid frames (streaming reduction)
# ----------------------------------------------------------------------------
def _bn_stats_kernel(len_ref, x_ref, sum_ref, sq_ref):
    # len_ref: (N, 1) int32 (resident), x_ref: (Ts, N, Dp) bf16 block at time-chunk i
    # sum_ref / sq_ref: (1, Dp) f32 accumulators, resident across the grid.
    i = pl.program_id(0)
    ts, n, _ = x_ref.shape

    @pl.when(i == 0)
    def _():
        sum_ref[...] = jnp.zeros_like(sum_ref)
        sq_ref[...] = jnp.zeros_like(sq_ref)

    t0 = i * ts
    tt = lax.broadcasted_iota(jnp.int32, (ts, n, 1), 0) + t0          # (Ts, N, 1)
    mask = (tt < len_ref[...][None, :, :]).astype(jnp.float32)        # (Ts, N, 1)
    xv = x_ref[...].astype(jnp.float32) * mask                        # (Ts, N, Dp)

    sum_ref[...] += jnp.sum(xv, axis=(0, 1), keepdims=True)[0]
    sq_ref[...] += jnp.sum(xv * xv, axis=(0, 1), keepdims=True)[0]
    # TODO(synk): single-pass E[x^2]-E[x]^2 can cancel for |mean| >> std; switch to a
    # shifted / two-pass accumulation if un-normalized features require it.


def bn_stats(x_tm, len_col, *, ts, vmem_limit_bytes):
    t_pad, n_pad, d_pad = x_tm.shape
    return pl.pallas_call(
        _bn_stats_kernel,
        out_shape=(jax.ShapeDtypeStruct((1, d_pad), jnp.float32),
                   jax.ShapeDtypeStruct((1, d_pad), jnp.float32)),
        grid=(t_pad // ts,),
        in_specs=[pl.BlockSpec((n_pad, 1), lambda i: (0, 0)),
                  pl.BlockSpec((ts, n_pad, d_pad), lambda i: (i, 0, 0))],
        out_specs=(pl.BlockSpec((1, d_pad), lambda i: (0, 0)),
                   pl.BlockSpec((1, d_pad), lambda i: (0, 0))),
        compiler_params=pltpu.CompilerParams(
            dimension_semantics=("arbitrary",),      # accumulator across the grid
            vmem_limit_bytes=vmem_limit_bytes),
    )(len_col, x_tm)


# ----------------------------------------------------------------------------
# Kernel C: fused input projection + serial LSTM recurrence (time-chunked,
#           batch-blocked; h/c resident in VMEM/vregs across the chunk)
# ----------------------------------------------------------------------------
def _lstm_kernel(len_ref, x_ref, wih_ref, whh_ref, b_ref, o_ref, gx_ref, h_ref, c_ref):
    # len_ref: (Nb, 1) int32            x_ref:   (Tc, Nb, Dp) bf16
    # wih_ref: (Dp, 4H) bf16 (BN folded) whh_ref: (H, 4H) bf16   b_ref: (1, 4H) f32
    # o_ref:   (Tc, Nb, H) output block
    # gx_ref:  (Tc, Nb, 4H) f32 VMEM scratch (per-chunk gates, never hits HBM)
    # h_ref/c_ref: (Nb, H) f32 VMEM scratch carried across time-chunks
    tchunk = pl.program_id(1)
    tc, bblk, d_pad = x_ref.shape
    h_dim = h_ref.shape[1]
    h4 = 4 * h_dim

    @pl.when(tchunk == 0)
    def _():
        h_ref[...] = jnp.zeros_like(h_ref)
        c_ref[...] = jnp.zeros_like(c_ref)

    # Fused (BN-folded) input projection for the whole chunk: one lane-dense bf16 MXU
    # matmul with f32 accumulation.  (Reshape only collapses/expands leading dims and is
    # (8,128)-tile aligned since Nb is a multiple of 16.)
    xb = x_ref[...].reshape(tc * bblk, d_pad)
    gx = jnp.dot(xb, wih_ref[...], preferred_element_type=jnp.float32) + b_ref[...]
    gx_ref[...] = gx.reshape(tc, bblk, h4)

    lens = len_ref[...]                                               # (Nb, 1) int32

    def one_step(s, h, c):
        # Only the truly serial work remains: h_prev @ W_hh (bf16 in, f32 acc).
        gates = gx_ref[s] + jnp.dot(h.astype(jnp.bfloat16), whh_ref[...],
                                    preferred_element_type=jnp.float32)   # (Nb, 4H)
        # gate order [i, f, o, g]: one contiguous sigmoid slab + one tanh slab.
        sig = jax.nn.sigmoid(gates[:, :3 * h_dim])
        g_g = jnp.tanh(gates[:, 3 * h_dim:])
        c_new = sig[:, h_dim:2 * h_dim] * c + sig[:, :h_dim] * g_g
        h_new = sig[:, 2 * h_dim:] * jnp.tanh(c_new)
        # pad_packed_sequence zeros outputs past each sequence's length.
        valid = (lens > (tchunk * tc + s)).astype(jnp.float32)        # (Nb, 1)
        o_ref[s] = (h_new * valid).astype(o_ref.dtype)
        return h_new, c_new

    # Sub-group unroll (8 steps) inside a fori_loop: LLO scheduling visibility without
    # fully unrolling a large chunk.
    unroll = min(8, tc)

    def group(g, carry):
        h, c = carry
        base = g * unroll
        for u in range(unroll):
            h, c = one_step(base + u, h, c)
        return h, c

    h_fin, c_fin = lax.fori_loop(0, tc // unroll, group, (h_ref[...], c_ref[...]))
    h_ref[...] = h_fin
    c_ref[...] = c_fin
    # NOTE: padded batch rows / padded timesteps still integrate bias through h/c; their
    # outputs are masked and h_n/c_n are not exposed (matches the PyTorch module).
    # TODO(synk): for large H (>=512) tile the gate math in 128/512-lane column blocks to
    # keep the per-step live set under the 64-vreg register file.
    # TODO(synk): v5e weight-stationary MXU driving of W_hh (pltpu.matmul_push_rhs).


def _lstm_vmem_bytes(tc, bblk, d_pad, h_dim, out_bytes):
    h4 = 4 * h_dim
    b = 2 * tc * bblk * d_pad * 2                            # x blocks (bf16), dbl-buf
    b += 2 * tc * bblk * h_dim * out_bytes                   # output blocks, dbl-buf
    b += 2 * (d_pad * h4 * 2 + h_dim * h4 * 2 + h4 * 4)      # W_eff, W_hh (bf16), bias
    b += tc * bblk * h4 * 4                                  # gx VMEM scratch (f32)
    b += 2 * bblk * h_dim * 4                                # h / c scratch
    return b


def lstm_recurrence(len_col, x_tm, w_eff, w_hh, b_eff, *, tc, batch_block,
                    out_dtype, vmem_limit_bytes):
    t_pad, n_pad, d_pad = x_tm.shape
    h4 = w_hh.shape[1]
    h_dim = h4 // 4
    nb = n_pad // batch_block
    return pl.pallas_call(
        _lstm_kernel,
        out_shape=jax.ShapeDtypeStruct((t_pad, n_pad, h_dim), out_dtype),
        grid=(nb, t_pad // tc),
        in_specs=[pl.BlockSpec((batch_block, 1), lambda b, i: (b, 0)),
                  pl.BlockSpec((tc, batch_block, d_pad), lambda b, i: (i, b, 0)),
                  pl.BlockSpec((d_pad, h4), lambda b, i: (0, 0)),
                  pl.BlockSpec((h_dim, h4), lambda b, i: (0, 0)),
                  pl.BlockSpec((1, h4), lambda b, i: (0, 0))],
        out_specs=pl.BlockSpec((tc, batch_block, h_dim), lambda b, i: (i, b, 0)),
        scratch_shapes=[pltpu.VMEM((tc, batch_block, h4), jnp.float32),   # gates chunk
                        pltpu.VMEM((batch_block, h_dim), jnp.float32),    # h
                        pltpu.VMEM((batch_block, h_dim), jnp.float32)],   # c
        compiler_params=pltpu.CompilerParams(
            # batch blocks are independent -> split across cores (v7x 2 TC); time is the
            # sequential recurrence axis.
            dimension_semantics=("parallel", "arbitrary"),
            vmem_limit_bytes=vmem_limit_bytes),
    )(len_col, x_tm, w_eff, w_hh, b_eff)


# ----------------------------------------------------------------------------
# BatchRNN forward (glue in plain JAX, hot paths in Pallas)
# ----------------------------------------------------------------------------
def batch_rnn_forward(x, lengths, params, *, tc=32, batch_block=16,
                      out_dtype=jnp.float32):
    """x: (N, T, D) f32 batch-first; lengths: (N,) int sorted descending."""
    n, t, d = x.shape
    h_dim = params["w_hh"].shape[1]
    h4 = 4 * h_dim
    out_bytes = jnp.dtype(out_dtype).itemsize

    # Lane/sublane-dense padding: batch -> multiple of 16 sublanes (full bf16 packed
    # tile for the per-step matmul LHS, and even batch split on v7x), D -> 128 lanes.
    batch_block = max(8, _round_up(batch_block, 8))
    n_pad = _round_up(max(n, batch_block), batch_block)
    d_pad = _round_up(d, 128)

    # Time chunk for the recurrence: large enough to amortize per-grid-step overhead,
    # shrunk to fit a VMEM budget that is safe on v7x (64 MiB physical per TC).
    tc = max(8, _round_up(min(tc, _round_up(t, 8)), 8))
    budget = 36 << 20
    while tc > 8 and _lstm_vmem_bytes(tc, batch_block, d_pad, h_dim, out_bytes) > budget:
        tc = max(8, ((tc // 2) // 8) * 8)
    lstm_est = _lstm_vmem_bytes(tc, batch_block, d_pad, h_dim, out_bytes)
    lstm_vmem = int(min(56 << 20, max(32 << 20, lstm_est + (4 << 20))))

    # Stats block: decoupled from tc -- stream ~4 MB of x per grid step.
    slab = tc * n_pad * d_pad * 2                      # bf16 bytes of one tc time-slab
    n_tc = -(-t // tc)
    ts = tc * max(1, min(n_tc, (4 << 20) // max(slab, 1)))
    t_pad = _round_up(t, ts)                           # multiple of ts and of tc
    stats_vmem = int(min(56 << 20,
                         max(32 << 20, 2 * ts * n_pad * d_pad * 2 + (4 << 20))))

    # Pad + single layout change at the module boundary.  x is stored bf16: it is only
    # ever consumed by bf16 MXU matmuls / f32-accumulated statistics (halves its HBM
    # read traffic in both kernels).
    x_p = jnp.zeros((n_pad, t_pad, d_pad), jnp.bfloat16)
    x_p = x_p.at[:n, :t, :d].set(x.astype(jnp.bfloat16))
    len_p = jnp.zeros((n_pad,), jnp.int32).at[:n].set(lengths.astype(jnp.int32))
    len_col = len_p[:, None]                           # (N_pad, 1)
    x_tm = jnp.transpose(x_p, (1, 0, 2))               # (T_pad, N_pad, D_pad)

    # --- Kernel A: masked BN statistics over valid frames only ---
    s, ss = bn_stats(x_tm, len_col, ts=ts, vmem_limit_bytes=stats_vmem)
    cnt = jnp.maximum(jnp.sum(len_p).astype(jnp.float32), 1.0)
    mean = s[0, :d] / cnt
    var = jnp.maximum(ss[0, :d] / cnt - mean * mean, 0.0)   # biased var (training mode)
    scale = params["bn_gamma"] * lax.rsqrt(var + BN_EPS)
    shift = params["bn_beta"] - mean * scale

    # --- Fold BN into the input projection; reorder gates (i,f,g,o) -> (i,f,o,g) ---
    w_ih, w_hh = params["w_ih"], params["w_hh"]
    bias = params["b_ih"] + params["b_hh"]
    perm = jnp.concatenate([jnp.arange(0, 2 * h_dim),
                            jnp.arange(3 * h_dim, 4 * h_dim),
                            jnp.arange(2 * h_dim, 3 * h_dim)])
    w_ih_t = w_ih.T[:, perm]                           # (D, 4H)
    w_hh_t = w_hh.T[:, perm]                           # (H, 4H)
    b_eff = ((shift @ w_ih_t) + bias[perm])[None, :].astype(jnp.float32)   # (1, 4H)
    w_eff = jnp.zeros((d_pad, h4), jnp.float32).at[:d].set(scale[:, None] * w_ih_t)
    w_eff = w_eff.astype(jnp.bfloat16)                 # (D_pad, 4H), zero padded rows
    w_hh_b = w_hh_t.astype(jnp.bfloat16)               # (H, 4H)

    # --- Kernel C: fused projection + serial recurrence ---
    out_tm = lstm_recurrence(len_col, x_tm, w_eff, w_hh_b, b_eff,
                             tc=tc, batch_block=batch_block,
                             out_dtype=out_dtype, vmem_limit_bytes=lstm_vmem)

    return jnp.transpose(out_tm[:t, :n], (1, 0, 2))    # (N, T, H) batch-first


# ----------------------------------------------------------------------------
# Pure-JAX reference (same semantics) for a sanity check
# ----------------------------------------------------------------------------
def batch_rnn_reference(x, lengths, params):
    n, t, d = x.shape
    gamma, beta, w_ih, w_hh, b_ih, b_hh = (
        params["bn_gamma"], params["bn_beta"],
        params["w_ih"], params["w_hh"], params["b_ih"], params["b_hh"])
    h_dim = w_hh.shape[1]
    mask = (jnp.arange(t)[None, :] < lengths[:, None]).astype(jnp.float32)   # (N, T)
    m3 = mask[:, :, None]

    cnt = jnp.sum(m3)
    mean = jnp.sum(x * m3, axis=(0, 1)) / cnt
    diff = (x - mean) * m3
    var = jnp.sum(diff * diff, axis=(0, 1)) / cnt
    x_bn = (((x - mean) / jnp.sqrt(var + BN_EPS)) * gamma + beta) * m3

    bias = b_ih + b_hh
    x_tm = jnp.transpose(x_bn, (1, 0, 2))
    m_tm = jnp.transpose(mask, (1, 0))[:, :, None]

    def step(carry, inp):
        h, c = carry
        x_t, m_t = inp
        gates = (jnp.dot(x_t, w_ih.T, preferred_element_type=jnp.float32)
                 + jnp.dot(h, w_hh.T, preferred_element_type=jnp.float32) + bias)
        i_g = jax.nn.sigmoid(gates[:, 0:h_dim])
        f_g = jax.nn.sigmoid(gates[:, h_dim:2 * h_dim])
        g_g = jnp.tanh(gates[:, 2 * h_dim:3 * h_dim])
        o_g = jax.nn.sigmoid(gates[:, 3 * h_dim:4 * h_dim])
        c_new = f_g * c + i_g * g_g
        h_new = o_g * jnp.tanh(c_new)
        return (h_new, c_new), h_new * m_t

    init = (jnp.zeros((n, h_dim), jnp.float32), jnp.zeros((n, h_dim), jnp.float32))
    _, out_tm = lax.scan(step, init, (x_tm, m_tm))
    return jnp.transpose(out_tm, (1, 0, 2))


if __name__ == "__main__":
    N, T, D, H = 4, 20, 64, 128      # input_size=64, hidden_size=128 (4H=512 lane-dense)

    key = jax.random.PRNGKey(0)
    ks = jax.random.split(key, 8)
    w_scale = 1.0 / np.sqrt(H)       # PyTorch LSTM default init scale
    params = {
        "bn_gamma": 1.0 + 0.1 * jax.random.normal(ks[0], (D,), jnp.float32),
        "bn_beta": 0.1 * jax.random.normal(ks[1], (D,), jnp.float32),
        "w_ih": jax.random.uniform(ks[2], (4 * H, D), jnp.float32, -w_scale, w_scale),
        "w_hh": jax.random.uniform(ks[3], (4 * H, H), jnp.float32, -w_scale, w_scale),
        "b_ih": jax.random.uniform(ks[4], (4 * H,), jnp.float32, -w_scale, w_scale),
        "b_hh": jax.random.uniform(ks[5], (4 * H,), jnp.float32, -w_scale, w_scale),
    }

    x = jax.random.normal(ks[6], (N, T, D), jnp.float32)
    # pack_padded_sequence requires sorted (descending) lengths; longest == T.
    lengths = jnp.array([20, 15, 11, 6], dtype=jnp.int32)

    out = jax.block_until_ready(jax.jit(batch_rnn_forward)(x, lengths, params))
    ref = jax.block_until_ready(jax.jit(batch_rnn_reference)(x, lengths, params))

    assert out.shape == (N, T, H), out.shape
    assert bool(jnp.all(jnp.isfinite(out)))
    max_err = float(jnp.max(jnp.abs(out - ref)))
    assert bool(jnp.allclose(out, ref, atol=2e-2, rtol=2e-2)), max_err

    print("KERNEL_OK")
</pallas_src>

<mosaic_0001>
module attributes {stable_mosaic.version = 11 : i64} {
  func.func @_bn_stats_kernel(%arg0: i32, %arg1: memref<16x1xi32, #tpu.memory_space<vmem>>, %arg2: memref<24x16x128xbf16, #tpu.memory_space<vmem>>, %arg3: memref<1x128xf32, #tpu.memory_space<vmem>>, %arg4: memref<1x128xf32, #tpu.memory_space<vmem>>) attributes {dimension_semantics = [#tpu.dimension_semantics<arbitrary>], iteration_bounds = array<i64: 1>, scalar_prefetch = 0 : i64, scratch_operands = 0 : i64, tpu.core_type = #tpu.core_type<tc>, window_params = [{pipeline_mode = #tpu.pipeline_mode<synchronous>, transform_indices = @transform_0, window_bounds = array<i64: 16, 1>}, {transform_indices = @transform_1, window_bounds = array<i64: 24, 16, 128>}, {pipeline_mode = #tpu.pipeline_mode<synchronous>, transform_indices = @transform_2, window_bounds = array<i64: 1, 128>}, {pipeline_mode = #tpu.pipeline_mode<synchronous>, transform_indices = @transform_3, window_bounds = array<i64: 1, 128>}]} {
    %c0_i32 = arith.constant 0 : i32
    %0 = arith.cmpi eq, %arg0, %c0_i32 : i32
    %1 = arith.extui %0 : i1 to i32
    %c0_i32_0 = arith.constant 0 : i32
    %2 = arith.cmpi ne, %1, %c0_i32_0 : i32
    scf.if %2 {
      %cst_14 = arith.constant 0.000000e+00 : f32
      %30 = vector.broadcast %cst_14 : f32 to vector<1x128xf32>
      %c0_15 = arith.constant 0 : index
      %c0_16 = arith.constant 0 : index
      %31 = vector.load %arg3[%c0_15, %c0_16] : memref<1x128xf32, #tpu.memory_space<vmem>>, vector<1x128xf32>
      tpu.vector_store %arg3[%c0_15, %c0_16], %30 {strides = array<i32>} : memref<1x128xf32, #tpu.memory_space<vmem>>, vector<1x128xf32>,
      %cst_17 = arith.constant 0.000000e+00 : f32
      %32 = vector.broadcast %cst_17 : f32 to vector<1x128xf32>
      %c0_18 = arith.constant 0 : index
      %c0_19 = arith.constant 0 : index
      %33 = vector.load %arg4[%c0_18, %c0_19] : memref<1x128xf32, #tpu.memory_space<vmem>>, vector<1x128xf32>
      tpu.vector_store %arg4[%c0_18, %c0_19], %32 {strides = array<i32>} : memref<1x128xf32, #tpu.memory_space<vmem>>, vector<1x128xf32>,
    } else {
    }
    %c24_i32 = arith.constant 24 : i32
    %3 = arith.muli %arg0, %c24_i32 : i32
    %4 = tpu.iota {dimensions = array<i32: 0>} : vector<24x16x1xi32>
    %5 = vector.broadcast %3 : i32 to vector<24x16x1xi32>
    %6 = arith.addi %4, %5 : vector<24x16x1xi32>
    %c0 = arith.constant 0 : index
    %c0_1 = arith.constant 0 : index
    %7 = vector.load %arg1[%c0, %c0_1] : memref<16x1xi32, #tpu.memory_space<vmem>>, vector<16x1xi32>
    %8 = vector.shape_cast %7 : vector<16x1xi32> to vector<1x16x1xi32>
    %9 = vector.broadcast %8 : vector<1x16x1xi32> to vector<24x16x1xi32>
    %10 = arith.cmpi slt, %6, %9 : vector<24x16x1xi32>
    %11 = arith.extui %10 : vector<24x16x1xi1> to vector<24x16x1xi32>
    %12 = arith.sitofp %11 : vector<24x16x1xi32> to vector<24x16x1xf32>
    %c0_2 = arith.constant 0 : index
    %c0_3 = arith.constant 0 : index
    %c0_4 = arith.constant 0 : index
    %13 = vector.load %arg2[%c0_2, %c0_3, %c0_4] : memref<24x16x128xbf16, #tpu.memory_space<vmem>>, vector<24x16x128xbf16>
    %14 = arith.extf %13 : vector<24x16x128xbf16> to vector<24x16x128xf32>
    %15 = vector.broadcast %12 : vector<24x16x1xf32> to vector<24x16x128xf32>
    %16 = arith.mulf %14, %15 : vector<24x16x128xf32>
    %c0_5 = arith.constant 0 : index
    %c0_6 = arith.constant 0 : index
    %17 = vector.load %arg3[%c0_5, %c0_6] : memref<1x128xf32, #tpu.memory_space<vmem>>, vector<1x128xf32>
    %cst = arith.constant dense<0.000000e+00> : vector<128xf32>
    %18 = vector.multi_reduction <add>, %16, %cst [0, 1] : vector<24x16x128xf32> to vector<128xf32>
    %19 = vector.shape_cast %18 : vector<128xf32> to vector<1x1x128xf32>
    %20 = vector.shape_cast %19 : vector<1x1x128xf32> to vector<1x128xf32>
    %21 = arith.addf %17, %20 : vector<1x128xf32>
    %c0_7 = arith.constant 0 : index
    %c0_8 = arith.constant 0 : index
    %22 = vector.load %arg3[%c0_7, %c0_8] : memref<1x128xf32, #tpu.memory_space<vmem>>, vector<1x128xf32>
    tpu.vector_store %arg3[%c0_7, %c0_8], %21 {strides = array<i32>} : memref<1x128xf32, #tpu.memory_space<vmem>>, vector<1x128xf32>,
    %c0_9 = arith.constant 0 : index
    %c0_10 = arith.constant 0 : index
    %23 = vector.load %arg4[%c0_9, %c0_10] : memref<1x128xf32, #tpu.memory_space<vmem>>, vector<1x128xf32>
    %24 = arith.mulf %16, %16 : vector<24x16x128xf32>
    %cst_11 = arith.constant dense<0.000000e+00> : vector<128xf32>
    %25 = vector.multi_reduction <add>, %24, %cst_11 [0, 1] : vector<24x16x128xf32> to vector<128xf32>
    %26 = vector.shape_cast %25 : vector<128xf32> to vector<1x1x128xf32>
    %27 = vector.shape_cast %26 : vector<1x1x128xf32> to vector<1x128xf32>
    %28 = arith.addf %23, %27 : vector<1x128xf32>
    %c0_12 = arith.constant 0 : index
    %c0_13 = arith.constant 0 : index
    %29 = vector.load %arg4[%c0_12, %c0_13] : memref<1x128xf32, #tpu.memory_space<vmem>>, vector<1x128xf32>
    tpu.vector_store %arg4[%c0_12, %c0_13], %28 {strides = array<i32>} : memref<1x128xf32, #tpu.memory_space<vmem>>, vector<1x128xf32>,
    return
  }
  func.func @transform_0(%arg0: i32) -> (i32, i32) {
    %c0_i32 = arith.constant 0 : i32
    %c0_i32_0 = arith.constant 0 : i32
    %c0_i32_1 = arith.constant 0 : i32
    return %c0_i32, %c0_i32_0 : i32, i32
  }
  func.func @transform_1(%arg0: i32) -> (i32, i32, i32) {
    %c0_i32 = arith.constant 0 : i32
    %c0_i32_0 = arith.constant 0 : i32
    %c0_i32_1 = arith.constant 0 : i32
    return %arg0, %c0_i32, %c0_i32_0 : i32, i32, i32
  }
  func.func @transform_2(%arg0: i32) -> (i32, i32) {
    %c0_i32 = arith.constant 0 : i32
    %c0_i32_0 = arith.constant 0 : i32
    %c0_i32_1 = arith.constant 0 : i32
    return %c0_i32, %c0_i32_0 : i32, i32
  }
  func.func @transform_3(%arg0: i32) -> (i32, i32) {
    %c0_i32 = arith.constant 0 : i32
    %c0_i32_0 = arith.constant 0 : i32
    %c0_i32_1 = arith.constant 0 : i32
    return %c0_i32, %c0_i32_0 : i32, i32
  }
}

module attributes {stable_mosaic.version = 11 : i64} {
  func.func @_lstm_kernel(%arg0: i32, %arg1: i32, %arg2: memref<16x1xi32, #tpu.memory_space<vmem>>, %arg3: memref<24x16x128xbf16, #tpu.memory_space<vmem>>, %arg4: memref<128x512xbf16, #tpu.memory_space<vmem>>, %arg5: memref<128x512xbf16, #tpu.memory_space<vmem>>, %arg6: memref<1x512xf32, #tpu.memory_space<vmem>>, %arg7: memref<24x16x128xf32, #tpu.memory_space<vmem>>, %arg8: memref<24x16x512xf32, #tpu.memory_space<vmem>>, %arg9: memref<16x128xf32, #tpu.memory_space<vmem>>, %arg10: memref<16x128xf32, #tpu.memory_space<vmem>>) attributes {dimension_semantics = [#tpu.dimension_semantics<parallel>, #tpu.dimension_semantics<arbitrary>], iteration_bounds = array<i64: 1, 1>, scalar_prefetch = 0 : i64, scratch_operands = 3 : i64, tpu.core_type = #tpu.core_type<tc>, window_params = [{transform_indices = @transform_0, window_bounds = array<i64: 16, 1>}, {transform_indices = @transform_1, window_bounds = array<i64: 24, 16, 128>}, {pipeline_mode = #tpu.pipeline_mode<synchronous>, transform_indices = @transform_2, window_bounds = array<i64: 128, 512>}, {pipeline_mode = #tpu.pipeline_mode<synchronous>, transform_indices = @transform_3, window_bounds = array<i64: 128, 512>}, {pipeline_mode = #tpu.pipeline_mode<synchronous>, transform_indices = @transform_4, window_bounds = array<i64: 1, 512>}, {transform_indices = @transform_5, window_bounds = array<i64: 24, 16, 128>}]} {
    %c0_i32 = arith.constant 0 : i32
    %0 = arith.cmpi eq, %arg1, %c0_i32 : i32
    %1 = arith.extui %0 : i1 to i32
    %c0_i32_0 = arith.constant 0 : i32
    %2 = arith.cmpi ne, %1, %c0_i32_0 : i32
    scf.if %2 {
      %cst_22 = arith.constant 0.000000e+00 : f32
      %19 = vector.broadcast %cst_22 : f32 to vector<16x128xf32>
      %c0_23 = arith.constant 0 : index
      %c0_24 = arith.constant 0 : index
      %20 = vector.load %arg9[%c0_23, %c0_24] : memref<16x128xf32, #tpu.memory_space<vmem>>, vector<16x128xf32>
      tpu.vector_store %arg9[%c0_23, %c0_24], %19 {strides = array<i32>} : memref<16x128xf32, #tpu.memory_space<vmem>>, vector<16x128xf32>,
      %cst_25 = arith.constant 0.000000e+00 : f32
      %21 = vector.broadcast %cst_25 : f32 to vector<16x128xf32>
      %c0_26 = arith.constant 0 : index
      %c0_27 = arith.constant 0 : index
      %22 = vector.load %arg10[%c0_26, %c0_27] : memref<16x128xf32, #tpu.memory_space<vmem>>, vector<16x128xf32>
      tpu.vector_store %arg10[%c0_26, %c0_27], %21 {strides = array<i32>} : memref<16x128xf32, #tpu.memory_space<vmem>>, vector<16x128xf32>,
    } else {
    }
    %c0 = arith.constant 0 : index
    %c0_1 = arith.constant 0 : index
    %c0_2 = arith.constant 0 : index
    %3 = vector.load %arg3[%c0, %c0_1, %c0_2] : memref<24x16x128xbf16, #tpu.memory_space<vmem>>, vector<24x16x128xbf16>
    %4 = vector.shape_cast %3 : vector<24x16x128xbf16> to vector<384x128xbf16>
    %c0_3 = arith.constant 0 : index
    %c0_4 = arith.constant 0 : index
    %5 = vector.load %arg4[%c0_3, %c0_4] : memref<128x512xbf16, #tpu.memory_space<vmem>>, vector<128x512xbf16>
    %cst = arith.constant dense<0.000000e+00> : vector<384x512xf32>
    %6 = tpu.matmul %4, %5, %cst {dimension_numbers = #tpu.dot_dimension_numbers<[1], [0], [0], [1], [0, 0, 1, 1], [], []>} : vector<384x128xbf16>, vector<128x512xbf16>, vector<384x512xf32> -> vector<384x512xf32>
    %c0_5 = arith.constant 0 : index
    %c0_6 = arith.constant 0 : index
    %7 = vector.load %arg6[%c0_5, %c0_6] : memref<1x512xf32, #tpu.memory_space<vmem>>, vector<1x512xf32>
    %8 = vector.broadcast %7 : vector<1x512xf32> to vector<384x512xf32>
    %9 = arith.addf %6, %8 : vector<384x512xf32>
    %10 = vector.shape_cast %9 : vector<384x512xf32> to vector<24x16x512xf32>
    %c0_7 = arith.constant 0 : index
    %c0_8 = arith.constant 0 : index
    %c0_9 = arith.constant 0 : index
    %11 = vector.load %arg8[%c0_7, %c0_8, %c0_9] : memref<24x16x512xf32, #tpu.memory_space<vmem>>, vector<24x16x512xf32>
    tpu.vector_store %arg8[%c0_7, %c0_8, %c0_9], %10 {strides = array<i32>} : memref<24x16x512xf32, #tpu.memory_space<vmem>>, vector<24x16x512xf32>,
    %c0_10 = arith.constant 0 : index
    %c0_11 = arith.constant 0 : index
    %12 = vector.load %arg2[%c0_10, %c0_11] : memref<16x1xi32, #tpu.memory_space<vmem>>, vector<16x1xi32>
    %c0_12 = arith.constant 0 : index
    %c0_13 = arith.constant 0 : index
    %13 = vector.load %arg9[%c0_12, %c0_13] : memref<16x128xf32, #tpu.memory_space<vmem>>, vector<16x128xf32>
    %c0_14 = arith.constant 0 : index
    %c0_15 = arith.constant 0 : index
    %14 = vector.load %arg10[%c0_14, %c0_15] : memref<16x128xf32, #tpu.memory_space<vmem>>, vector<16x128xf32>
    %c0_i32_16 = arith.constant 0 : i32
    %c3_i32 = arith.constant 3 : i32
    %15 = arith.addi %c0_i32_16, %c3_i32 : i32
    %c1_i32 = arith.constant 1 : i32
    %16:2 = scf.for %arg11 = %c0_i32_16 to %15 step %c1_i32 iter_args(%arg12 = %13, %arg13 = %14) -> (vector<16x128xf32>, vector<16x128xf32>)  : i32 {
      %c8_i32 = arith.constant 8 : i32
      %19 = arith.muli %arg11, %c8_i32 : i32
      %c0_i32_22 = arith.constant 0 : i32
      %20 = arith.addi %19, %c0_i32_22 : i32
      %21 = arith.index_cast %20 : i32 to index
      %c0_23 = arith.constant 0 : index
      %c0_24 = arith.constant 0 : index
      %22 = vector.load %arg8[%21, %c0_23, %c0_24] : memref<24x16x512xf32, #tpu.memory_space<vmem>>, vector<1x16x512xf32>
      %23 = vector.shape_cast %22 : vector<1x16x512xf32> to vector<16x512xf32>
      %24 = arith.truncf %arg12 : vector<16x128xf32> to vector<16x128xbf16>
      %c0_25 = arith.constant 0 : index
      %c0_26 = arith.constant 0 : index
      %25 = vector.load %arg5[%c0_25, %c0_26] : memref<128x512xbf16, #tpu.memory_space<vmem>>, vector<128x512xbf16>
      %cst_27 = arith.constant dense<0.000000e+00> : vector<16x512xf32>
      %26 = tpu.matmul %24, %25, %cst_27 {dimension_numbers = #tpu.dot_dimension_numbers<[1], [0], [0], [1], [0, 0, 1, 1], [], []>} : vector<16x128xbf16>, vector<128x512xbf16>, vector<16x512xf32> -> vector<16x512xf32>
      %27 = arith.addf %23, %26 : vector<16x512xf32>
      %28 = vector.extract_strided_slice %27 {offsets = [0, 0], sizes = [16, 384], strides = [1, 1]} : vector<16x512xf32> to vector<16x384xf32>
      %29 = arith.negf %28 : vector<16x384xf32>
      %30 = math.exp %29 : vector<16x384xf32>
      %cst_28 = arith.constant 1.000000e+00 : f32
      %31 = vector.broadcast %cst_28 : f32 to vector<16x384xf32>
      %32 = arith.addf %31, %30 : vector<16x384xf32>
      %33 = arith.divf %31, %32 : vector<16x384xf32>
      %34 = vector.extract_strided_slice %27 {offsets = [0, 384], sizes = [16, 128], strides = [1, 1]} : vector<16x512xf32> to vector<16x128xf32>
      %35 = math.tanh %34 : vector<16x128xf32>
      %36 = vector.extract_strided_slice %33 {offsets = [0, 128], sizes = [16, 128], strides = [1, 1]} : vector<16x384xf32> to vector<16x128xf32>
      %37 = arith.mulf %36, %arg13 : vector<16x128xf32>
      %38 = vector.extract_strided_slice %33 {offsets = [0, 0], sizes = [16, 128], strides = [1, 1]} : vector<16x384xf32> to vector<16x128xf32>
      %39 = arith.mulf %38, %35 : vector<16x128xf32>
      %40 = arith.addf %37, %39 : vector<16x128xf32>
      %41 = vector.extract_strided_slice %33 {offsets = [0, 256], sizes = [16, 128], strides = [1, 1]} : vector<16x384xf32> to vector<16x128xf32>
      %42 = math.tanh %40 : vector<16x128xf32>
      %43 = arith.mulf %41, %42 : vector<16x128xf32>
      %c24_i32 = arith.constant 24 : i32
      %44 = arith.muli %arg1, %c24_i32 : i32
      %45 = arith.addi %44, %20 : i32
      %46 = vector.broadcast %45 : i32 to vector<16x1xi32>
      %47 = arith.cmpi sgt, %12, %46 : vector<16x1xi32>
      %48 = arith.extui %47 : vector<16x1xi1> to vector<16x1xi32>
      %49 = arith.sitofp %48 : vector<16x1xi32> to vector<16x1xf32>
      %50 = vector.broadcast %49 : vector<16x1xf32> to vector<16x128xf32>
      %51 = arith.mulf %43, %50 : vector<16x128xf32>
      %52 = arith.index_cast %20 : i32 to index
      %c0_29 = arith.constant 0 : index
      %c0_30 = arith.constant 0 : index
      %53 = vector.load %arg7[%52, %c0_29, %c0_30] : memref<24x16x128xf32, #tpu.memory_space<vmem>>, vector<1x16x128xf32>
      %54 = vector.shape_cast %53 : vector<1x16x128xf32> to vector<16x128xf32>
      %55 = vector.shape_cast %51 : vector<16x128xf32> to vector<1x16x128xf32>
      tpu.vector_store %arg7[%52, %c0_29, %c0_30], %55 {strides = array<i32>} : memref<24x16x128xf32, #tpu.memory_space<vmem>>, vector<1x16x128xf32>,
      %c1_i32_31 = arith.constant 1 : i32
      %56 = arith.addi %19, %c1_i32_31 : i32
      %57 = arith.index_cast %56 : i32 to index
      %c0_32 = arith.constant 0 : index
      %c0_33 = arith.constant 0 : index
      %58 = vector.load %arg8[%57, %c0_32, %c0_33] : memref<24x16x512xf32, #tpu.memory_space<vmem>>, vector<1x16x512xf32>
      %59 = vector.shape_cast %58 : vector<1x16x512xf32> to vector<16x512xf32>
      %60 = arith.truncf %43 : vector<16x128xf32> to vector<16x128xbf16>
      %c0_34 = arith.constant 0 : index
      %c0_35 = arith.constant 0 : index
      %61 = vector.load %arg5[%c0_34, %c0_35] : memref<128x512xbf16, #tpu.memory_space<vmem>>, vector<128x512xbf16>
      %cst_36 = arith.constant dense<0.000000e+00> : vector<16x512xf32>
      %62 = tpu.matmul %60, %61, %cst_36 {dimension_numbers = #tpu.dot_dimension_numbers<[1], [0], [0], [1], [0, 0, 1, 1], [], []>} : vector<16x128xbf16>, vector<128x512xbf16>, vector<16x512xf32> -> vector<16x512xf32>
      %63 = arith.addf %59, %62 : vector<16x512xf32>
      %64 = vector.extract_strided_slice %63 {offsets = [0, 0], sizes = [16, 384], strides = [1, 1]} : vector<16x512xf32> to vector<16x384xf32>
      %65 = arith.negf %64 : vector<16x384xf32>
      %66 = math.exp %65 : vector<16x384xf32>
      %cst_37 = arith.constant 1.000000e+00 : f32
      %67 = vector.broadcast %cst_37 : f32 to vector<16x384xf32>
      %68 = arith.addf %67, %66 : vector<16x384xf32>
      %69 = arith.divf %67, %68 : vector<16x384xf32>
      %70 = vector.extract_strided_slice %63 {offsets = [0, 384], sizes = [16, 128], strides = [1, 1]} : vector<16x512xf32> to vector<16x128xf32>
      %71 = math.tanh %70 : vector<16x128xf32>
      %72 = vector.extract_strided_slice %69 {offsets = [0, 128], sizes = [16, 128], strides = [1, 1]} : vector<16x384xf32> to vector<16x128xf32>
      %73 = arith.mulf %72, %40 : vector<16x128xf32>
      %74 = vector.extract_strided_slice %69 {offsets = [0, 0], sizes = [16, 128], strides = [1, 1]} : vector<16x384xf32> to vector<16x128xf32>
      %75 = arith.mulf %74, %71 : vector<16x128xf32>
      %76 = arith.addf %73, %75 : vector<16x128xf32>
      %77 = vector.extract_strided_slice %69 {offsets = [0, 256], sizes = [16, 128], strides = [1, 1]} : vector<16x384xf32> to vector<16x128xf32>
      %78 = math.tanh %76 : vector<16x128xf32>
      %79 = arith.mulf %77, %78 : vector<16x128xf32>
      %c24_i32_38 = arith.constant 24 : i32
      %80 = arith.muli %arg1, %c24_i32_38 : i32
      %81 = arith.addi %80, %56 : i32
      %82 = vector.broadcast %81 : i32 to vector<16x1xi32>
      %83 = arith.cmpi sgt, %12, %82 : vector<16x1xi32>
      %84 = arith.extui %83 : vector<16x1xi1> to vector<16x1xi32>
      %85 = arith.sitofp %84 : vector<16x1xi32> to vector<16x1xf32>
      %86 = vector.broadcast %85 : vector<16x1xf32> to vector<16x128xf32>
      %87 = arith.mulf %79, %86 : vector<16x128xf32>
      %88 = arith.index_cast %56 : i32 to index
      %c0_39 = arith.constant 0 : index
      %c0_40 = arith.constant 0 : index
      %89 = vector.load %arg7[%88, %c0_39, %c0_40] : memref<24x16x128xf32, #tpu.memory_space<vmem>>, vector<1x16x128xf32>
      %90 = vector.shape_cast %89 : vector<1x16x128xf32> to vector<16x128xf32>
      %91 = vector.shape_cast %87 : vector<16x128xf32> to vector<1x16x128xf32>
      tpu.vector_store %arg7[%88, %c0_39, %c0_40], %91 {strides = array<i32>} : memref<24x16x128xf32, #tpu.memory_space<vmem>>, vector<1x16x128xf32>,
      %c2_i32 = arith.constant 2 : i32
      %92 = arith.addi %19, %c2_i32 : i32
      %93 = arith.index_cast %92 : i32 to index
      %c0_41 = arith.constant 0 : index
      %c0_42 = arith.constant 0 : index
      %94 = vector.load %arg8[%93, %c0_41, %c0_42] : memref<24x16x512xf32, #tpu.memory_space<vmem>>, vector<1x16x512xf32>
      %95 = vector.shape_cast %94 : vector<1x16x512xf32> to vector<16x512xf32>
      %96 = arith.truncf %79 : vector<16x128xf32> to vector<16x128xbf16>
      %c0_43 = arith.constant 0 : index
      %c0_44 = arith.constant 0 : index
      %97 = vector.load %arg5[%c0_43, %c0_44] : memref<128x512xbf16, #tpu.memory_space<vmem>>, vector<128x512xbf16>
      %cst_45 = arith.constant dense<0.000000e+00> : vector<16x512xf32>
      %98 = tpu.matmul %96, %97, %cst_45 {dimension_numbers = #tpu.dot_dimension_numbers<[1], [0], [0], [1], [0, 0, 1, 1], [], []>} : vector<16x128xbf16>, vector<128x512xbf16>, vector<16x512xf32> -> vector<16x512xf32>
      %99 = arith.addf %95, %98 : vector<16x512xf32>
      %100 = vector.extract_strided_slice %99 {offsets = [0, 0], sizes = [16, 384], strides = [1, 1]} : vector<16x512xf32> to vector<16x384xf32>
      %101 = arith.negf %100 : vector<16x384xf32>
      %102 = math.exp %101 : vector<16x384xf32>
      %cst_46 = arith.constant 1.000000e+00 : f32
      %103 = vector.broadcast %cst_46 : f32 to vector<16x384xf32>
      %104 = arith.addf %103, %102 : vector<16x384xf32>
      %105 = arith.divf %103, %104 : vector<16x384xf32>
      %106 = vector.extract_strided_slice %99 {offsets = [0, 384], sizes = [16, 128], strides = [1, 1]} : vector<16x512xf32> to vector<16x128xf32>
      %107 = math.tanh %106 : vector<16x128xf32>
      %108 = vector.extract_strided_slice %105 {offsets = [0, 128], sizes = [16, 128], strides = [1, 1]} : vector<16x384xf32> to vector<16x128xf32>
      %109 = arith.mulf %108, %76 : vector<16x128xf32>
      %110 = vector.extract_strided_slice %105 {offsets = [0, 0], sizes = [16, 128], strides = [1, 1]} : vector<16x384xf32> to vector<16x128xf32>
      %111 = arith.mulf %110, %107 : vector<16x128xf32>
      %112 = arith.addf %109, %111 : vector<16x128xf32>
      %113 = vector.extract_strided_slice %105 {offsets = [0, 256], sizes = [16, 128], strides = [1, 1]} : vector<16x384xf32> to vector<16x128xf32>
      %114 = math.tanh %112 : vector<16x128xf32>
      %115 = arith.mulf %113, %114 : vector<16x128xf32>
      %c24_i32_47 = arith.constant 24 : i32
      %116 = arith.muli %arg1, %c24_i32_47 : i32
      %117 = arith.addi %116, %92 : i32
      %118 = vector.broadcast %117 : i32 to vector<16x1xi32>
      %119 = arith.cmpi sgt, %12, %118 : vector<16x1xi32>
      %120 = arith.extui %119 : vector<16x1xi1> to vector<16x1xi32>
      %121 = arith.sitofp %120 : vector<16x1xi32> to vector<16x1xf32>
      %122 = vector.broadcast %121 : vector<16x1xf32> to vector<16x128xf32>
      %123 = arith.mulf %115, %122 : vector<16x128xf32>
      %124 = arith.index_cast %92 : i32 to index
      %c0_48 = arith.constant 0 : index
      %c0_49 = arith.constant 0 : index
      %125 = vector.load %arg7[%124, %c0_48, %c0_49] : memref<24x16x128xf32, #tpu.memory_space<vmem>>, vector<1x16x128xf32>
      %126 = vector.shape_cast %125 : vector<1x16x128xf32> to vector<16x128xf32>
      %127 = vector.shape_cast %123 : vector<16x128xf32> to vector<1x16x128xf32>
      tpu.vector_store %arg7[%124, %c0_48, %c0_49], %127 {strides = array<i32>} : memref<24x16x128xf32, #tpu.memory_space<vmem>>, vector<1x16x128xf32>,
      %c3_i32_50 = arith.constant 3 : i32
      %128 = arith.addi %19, %c3_i32_50 : i32
      %129 = arith.index_cast %128 : i32 to index
      %c0_51 = arith.constant 0 : index
      %c0_52 = arith.constant 0 : index
      %130 = vector.load %arg8[%129, %c0_51, %c0_52] : memref<24x16x512xf32, #tpu.memory_space<vmem>>, vector<1x16x512xf32>
      %131 = vector.shape_cast %130 : vector<1x16x512xf32> to vector<16x512xf32>
      %132 = arith.truncf %115 : vector<16x128xf32> to vector<16x128xbf16>
      %c0_53 = arith.constant 0 : index
      %c0_54 = arith.constant 0 : index
      %133 = vector.load %arg5[%c0_53, %c0_54] : memref<128x512xbf16, #tpu.memory_space<vmem>>, vector<128x512xbf16>
      %cst_55 = arith.constant dense<0.000000e+00> : vector<16x512xf32>
      %134 = tpu.matmul %132, %133, %cst_55 {dimension_numbers = #tpu.dot_dimension_numbers<[1], [0], [0], [1], [0, 0, 1, 1], [], []>} : vector<16x128xbf16>, vector<128x512xbf16>, vector<16x512xf32> -> vector<16x512xf32>
      %135 = arith.addf %131, %134 : vector<16x512xf32>
      %136 = vector.extract_strided_slice %135 {offsets = [0, 0], sizes = [16, 384], strides = [1, 1]} : vector<16x512xf32> to vector<16x384xf32>
      %137 = arith.negf %136 : vector<16x384xf32>
      %138 = math.exp %137 : vector<16x384xf32>
      %cst_56 = arith.constant 1.000000e+00 : f32
      %139 = vector.broadcast %cst_56 : f32 to vector<16x384xf32>
      %140 = arith.addf %139, %138 : vector<16x384xf32>
      %141 = arith.divf %139, %140 : vector<16x384xf32>
      %142 = vector.extract_strided_slice %135 {offsets = [0, 384], sizes = [16, 128], strides = [1, 1]} : vector<16x512xf32> to vector<16x128xf32>
      %143 = math.tanh %142 : vector<16x128xf32>
      %144 = vector.extract_strided_slice %141 {offsets = [0, 128], sizes = [16, 128], strides = [1, 1]} : vector<16x384xf32> to vector<16x128xf32>
      %145 = arith.mulf %144, %112 : vector<16x128xf32>
      %146 = vector.extract_strided_slice %141 {offsets = [0, 0], sizes = [16, 128], strides = [1, 1]} : vector<16x384xf32> to vector<16x128xf32>
      %147 = arith.mulf %146, %143 : vector<16x128xf32>
      %148 = arith.addf %145, %147 : vector<16x128xf32>
      %149 = vector.extract_strided_slice %141 {offsets = [0, 256], sizes = [16, 128], strides = [1, 1]} : vector<16x384xf32> to vector<16x128xf32>
      %150 = math.tanh %148 : vector<16x128xf32>
      %151 = arith.mulf %149, %150 : vector<16x128xf32>
      %c24_i32_57 = arith.constant 24 : i32
      %152 = arith.muli %arg1, %c24_i32_57 : i32
      %153 = arith.addi %152, %128 : i32
      %154 = vector.broadcast %153 : i32 to vector<16x1xi32>
      %155 = arith.cmpi sgt, %12, %154 : vector<16x1xi32>
      %156 = arith.extui %155 : vector<16x1xi1> to vector<16x1xi32>
      %157 = arith.sitofp %156 : vector<16x1xi32> to vector<16x1xf32>
      %158 = vector.broadcast %157 : vector<16x1xf32> to vector<16x128xf32>
      %159 = arith.mulf %151, %158 : vector<16x128xf32>
      %160 = arith.index_cast %128 : i32 to index
      %c0_58 = arith.constant 0 : index
      %c0_59 = arith.constant 0 : index
      %161 = vector.load %arg7[%160, %c0_58, %c0_59] : memref<24x16x128xf32, #tpu.memory_space<vmem>>, vector<1x16x128xf32>
      %162 = vector.shape_cast %161 : vector<1x16x128xf32> to vector<16x128xf32>
      %163 = vector.shape_cast %159 : vector<16x128xf32> to vector<1x16x128xf32>
      tpu.vector_store %arg7[%160, %c0_58, %c0_59], %163 {strides = array<i32>} : memref<24x16x128xf32, #tpu.memory_space<vmem>>, vector<1x16x128xf32>,
      %c4_i32 = arith.constant 4 : i32
      %164 = arith.addi %19, %c4_i32 : i32
      %165 = arith.index_cast %164 : i32 to index
      %c0_60 = arith.constant 0 : index
      %c0_61 = arith.constant 0 : index
      %166 = vector.load %arg8[%165, %c0_60, %c0_61] : memref<24x16x512xf32, #tpu.memory_space<vmem>>, vector<1x16x512xf32>
      %167 = vector.shape_cast %166 : vector<1x16x512xf32> to vector<16x512xf32>
      %168 = arith.truncf %151 : vector<16x128xf32> to vector<16x128xbf16>
      %c0_62 = arith.constant 0 : index
      %c0_63 = arith.constant 0 : index
      %169 = vector.load %arg5[%c0_62, %c0_63] : memref<128x512xbf16, #tpu.memory_space<vmem>>, vector<128x512xbf16>
      %cst_64 = arith.constant dense<0.000000e+00> : vector<16x512xf32>
      %170 = tpu.matmul %168, %169, %cst_64 {dimension_numbers = #tpu.dot_dimension_numbers<[1], [0], [0], [1], [0, 0, 1, 1], [], []>} : vector<16x128xbf16>, vector<128x512xbf16>, vector<16x512xf32> -> vector<16x512xf32>
      %171 = arith.addf %167, %170 : vector<16x512xf32>
      %172 = vector.extract_strided_slice %171 {offsets = [0, 0], sizes = [16, 384], strides = [1, 1]} : vector<16x512xf32> to vector<16x384xf32>
      %173 = arith.negf %172 : vector<16x384xf32>
      %174 = math.exp %173 : vector<16x384xf32>
      %cst_65 = arith.constant 1.000000e+00 : f32
      %175 = vector.broadcast %cst_65 : f32 to vector<16x384xf32>
      %176 = arith.addf %175, %174 : vector<16x384xf32>
      %177 = arith.divf %175, %176 : vector<16x384xf32>
      %178 = vector.extract_strided_slice %171 {offsets = [0, 384], sizes = [16, 128], strides = [1, 1]} : vector<16x512xf32> to vector<16x128xf32>
      %179 = math.tanh %178 : vector<16x128xf32>
      %180 = vector.extract_strided_slice %177 {offsets = [0, 128], sizes = [16, 128], strides = [1, 1]} : vector<16x384xf32> to vector<16x128xf32>
      %181 = arith.mulf %180, %148 : vector<16x128xf32>
      %182 = vector.extract_strided_slice %177 {offsets = [0, 0], sizes = [16, 128], strides = [1, 1]} : vector<16x384xf32> to vector<16x128xf32>
      %183 = arith.mulf %182, %179 : vector<16x128xf32>
      %184 = arith.addf %181, %183 : vector<16x128xf32>
      %185 = vector.extract_strided_slice %177 {offsets = [0, 256], sizes = [16, 128], strides = [1, 1]} : vector<16x384xf32> to vector<16x128xf32>
      %186 = math.tanh %184 : vector<16x128xf32>
      %187 = arith.mulf %185, %186 : vector<16x128xf32>
      %c24_i32_66 = arith.constant 24 : i32
      %188 = arith.muli %arg1, %c24_i32_66 : i32
      %189 = arith.addi %188, %164 : i32
      %190 = vector.broadcast %189 : i32 to vector<16x1xi32>
      %191 = arith.cmpi sgt, %12, %190 : vector<16x1xi32>
      %192 = arith.extui %191 : vector<16x1xi1> to vector<16x1xi32>
      %193 = arith.sitofp %192 : vector<16x1xi32> to vector<16x1xf32>
      %194 = vector.broadcast %193 : vector<16x1xf32> to vector<16x128xf32>
      %195 = arith.mulf %187, %194 : vector<16x128xf32>
      %196 = arith.index_cast %164 : i32 to index
      %c0_67 = arith.constant 0 : index
      %c0_68 = arith.constant 0 : index
      %197 = vector.load %arg7[%196, %c0_67, %c0_68] : memref<24x16x128xf32, #tpu.memory_space<vmem>>, vector<1x16x128xf32>
      %198 = vector.shape_cast %197 : vector<1x16x128xf32> to vector<16x128xf32>
      %199 = vector.shape_cast %195 : vector<16x128xf32> to vector<1x16x128xf32>
      tpu.vector_store %arg7[%196, %c0_67, %c0_68], %199 {strides = array<i32>} : memref<24x16x128xf32, #tpu.memory_space<vmem>>, vector<1x16x128xf32>,
      %c5_i32 = arith.constant 5 : i32
      %200 = arith.addi %19, %c5_i32 : i32
      %201 = arith.index_cast %200 : i32 to index
      %c0_69 = arith.constant 0 : index
      %c0_70 = arith.constant 0 : index
      %202 = vector.load %arg8[%201, %c0_69, %c0_70] : memref<24x16x512xf32, #tpu.memory_space<vmem>>, vector<1x16x512xf32>
      %203 = vector.shape_cast %202 : vector<1x16x512xf32> to vector<16x512xf32>
      %204 = arith.truncf %187 : vector<16x128xf32> to vector<16x128xbf16>
      %c0_71 = arith.constant 0 : index
      %c0_72 = arith.constant 0 : index
      %205 = vector.load %arg5[%c0_71, %c0_72] : memref<128x512xbf16, #tpu.memory_space<vmem>>, vector<128x512xbf16>
      %cst_73 = arith.constant dense<0.000000e+00> : vector<16x512xf32>
      %206 = tpu.matmul %204, %205, %cst_73 {dimension_numbers = #tpu.dot_dimension_numbers<[1], [0], [0], [1], [0, 0, 1, 1], [], []>} : vector<16x128xbf16>, vector<128x512xbf16>, vector<16x512xf32> -> vector<16x512xf32>
      %207 = arith.addf %203, %206 : vector<16x512xf32>
      %208 = vector.extract_strided_slice %207 {offsets = [0, 0], sizes = [16, 384], strides = [1, 1]} : vector<16x512xf32> to vector<16x384xf32>
      %209 = arith.negf %208 : vector<16x384xf32>
      %210 = math.exp %209 : vector<16x384xf32>
      %cst_74 = arith.constant 1.000000e+00 : f32
      %211 = vector.broadcast %cst_74 : f32 to vector<16x384xf32>
      %212 = arith.addf %211, %210 : vector<16x384xf32>
      %213 = arith.divf %211, %212 : vector<16x384xf32>
      %214 = vector.extract_strided_slice %207 {offsets = [0, 384], sizes = [16, 128], strides = [1, 1]} : vector<16x512xf32> to vector<16x128xf32>
      %215 = math.tanh %214 : vector<16x128xf32>
      %216 = vector.extract_strided_slice %213 {offsets = [0, 128], sizes = [16, 128], strides = [1, 1]} : vector<16x384xf32> to vector<16x128xf32>
      %217 = arith.mulf %216, %184 : vector<16x128xf32>
      %218 = vector.extract_strided_slice %213 {offsets = [0, 0], sizes = [16, 128], strides = [1, 1]} : vector<16x384xf32> to vector<16x128xf32>
      %219 = arith.mulf %218, %215 : vector<16x128xf32>
      %220 = arith.addf %217, %219 : vector<16x128xf32>
      %221 = vector.extract_strided_slice %213 {offsets = [0, 256], sizes = [16, 128], strides = [1, 1]} : vector<16x384xf32> to vector<16x128xf32>
      %222 = math.tanh %220 : vector<16x128xf32>
      %223 = arith.mulf %221, %222 : vector<16x128xf32>
      %c24_i32_75 = arith.constant 24 : i32
      %224 = arith.muli %arg1, %c24_i32_75 : i32
      %225 = arith.addi %224, %200 : i32
      %226 = vector.broadcast %225 : i32 to vector<16x1xi32>
      %227 = arith.cmpi sgt, %12, %226 : vector<16x1xi32>
      %228 = arith.extui %227 : vector<16x1xi1> to vector<16x1xi32>
      %229 = arith.sitofp %228 : vector<16x1xi32> to vector<16x1xf32>
      %230 = vector.broadcast %229 : vector<16x1xf32> to vector<16x128xf32>
      %231 = arith.mulf %223, %230 : vector<16x128xf32>
      %232 = arith.index_cast %200 : i32 to index
      %c0_76 = arith.constant 0 : index
      %c0_77 = arith.constant 0 : index
      %233 = vector.load %arg7[%232, %c0_76, %c0_77] : memref<24x16x128xf32, #tpu.memory_space<vmem>>, vector<1x16x128xf32>
      %234 = vector.shape_cast %233 : vector<1x16x128xf32> to vector<16x128xf32>
      %235 = vector.shape_cast %231 : vector<16x128xf32> to vector<1x16x128xf32>
      tpu.vector_store %arg7[%232, %c0_76, %c0_77], %235 {strides = array<i32>} : memref<24x16x128xf32, #tpu.memory_space<vmem>>, vector<1x16x128xf32>,
      %c6_i32 = arith.constant 6 : i32
      %236 = arith.addi %19, %c6_i32 : i32
      %237 = arith.index_cast %236 : i32 to index
      %c0_78 = arith.constant 0 : index
      %c0_79 = arith.constant 0 : index
      %238 = vector.load %arg8[%237, %c0_78, %c0_79] : memref<24x16x512xf32, #tpu.memory_space<vmem>>, vector<1x16x512xf32>
      %239 = vector.shape_cast %238 : vector<1x16x512xf32> to vector<16x512xf32>
      %240 = arith.truncf %223 : vector<16x128xf32> to vector<16x128xbf16>
      %c0_80 = arith.constant 0 : index
      %c0_81 = arith.constant 0 : index
      %241 = vector.load %arg5[%c0_80, %c0_81] : memref<128x512xbf16, #tpu.memory_space<vmem>>, vector<128x512xbf16>
      %cst_82 = arith.constant dense<0.000000e+00> : vector<16x512xf32>
      %242 = tpu.matmul %240, %241, %cst_82 {dimension_numbers = #tpu.dot_dimension_numbers<[1], [0], [0], [1], [0, 0, 1, 1], [], []>} : vector<16x128xbf16>, vector<128x512xbf16>, vector<16x512xf32> -> vector<16x512xf32>
      %243 = arith.addf %239, %242 : vector<16x512xf32>
      %244 = vector.extract_strided_slice %243 {offsets = [0, 0], sizes = [16, 384], strides = [1, 1]} : vector<16x512xf32> to vector<16x384xf32>
      %245 = arith.negf %244 : vector<16x384xf32>
      %246 = math.exp %245 : vector<16x384xf32>
      %cst_83 = arith.constant 1.000000e+00 : f32
      %247 = vector.broadcast %cst_83 : f32 to vector<16x384xf32>
      %248 = arith.addf %247, %246 : vector<16x384xf32>
      %249 = arith.divf %247, %248 : vector<16x384xf32>
      %250 = vector.extract_strided_slice %243 {offsets = [0, 384], sizes = [16, 128], strides = [1, 1]} : vector<16x512xf32> to vector<16x128xf32>
      %251 = math.tanh %250 : vector<16x128xf32>
      %252 = vector.extract_strided_slice %249 {offsets = [0, 128], sizes = [16, 128], strides = [1, 1]} : vector<16x384xf32> to vector<16x128xf32>
      %253 = arith.mulf %252, %220 : vector<16x128xf32>
      %254 = vector.extract_strided_slice %249 {offsets = [0, 0], sizes = [16, 128], strides = [1, 1]} : vector<16x384xf32> to vector<16x128xf32>
      %255 = arith.mulf %254, %251 : vector<16x128xf32>
      %256 = arith.addf %253, %255 : vector<16x128xf32>
      %257 = vector.extract_strided_slice %249 {offsets = [0, 256], sizes = [16, 128], strides = [1, 1]} : vector<16x384xf32> to vector<16x128xf32>
      %258 = math.tanh %256 : vector<16x128xf32>
      %259 = arith.mulf %257, %258 : vector<16x128xf32>
      %c24_i32_84 = arith.constant 24 : i32
      %260 = arith.muli %arg1, %c24_i32_84 : i32
      %261 = arith.addi %260, %236 : i32
      %262 = vector.broadcast %261 : i32 to vector<16x1xi32>
      %263 = arith.cmpi sgt, %12, %262 : vector<16x1xi32>
      %264 = arith.extui %263 : vector<16x1xi1> to vector<16x1xi32>
      %265 = arith.sitofp %264 : vector<16x1xi32> to vector<16x1xf32>
      %266 = vector.broadcast %265 : vector<16x1xf32> to vector<16x128xf32>
      %267 = arith.mulf %259, %266 : vector<16x128xf32>
      %268 = arith.index_cast %236 : i32 to index
      %c0_85 = arith.constant 0 : index
      %c0_86 = arith.constant 0 : index
      %269 = vector.load %arg7[%268, %c0_85, %c0_86] : memref<24x16x128xf32, #tpu.memory_space<vmem>>, vector<1x16x128xf32>
      %270 = vector.shape_cast %269 : vector<1x16x128xf32> to vector<16x128xf32>
      %271 = vector.shape_cast %267 : vector<16x128xf32> to vector<1x16x128xf32>
      tpu.vector_store %arg7[%268, %c0_85, %c0_86], %271 {strides = array<i32>} : memref<24x16x128xf32, #tpu.memory_space<vmem>>, vector<1x16x128xf32>,
      %c7_i32 = arith.constant 7 : i32
      %272 = arith.addi %19, %c7_i32 : i32
      %273 = arith.index_cast %272 : i32 to index
      %c0_87 = arith.constant 0 : index
      %c0_88 = arith.constant 0 : index
      %274 = vector.load %arg8[%273, %c0_87, %c0_88] : memref<24x16x512xf32, #tpu.memory_space<vmem>>, vector<1x16x512xf32>
      %275 = vector.shape_cast %274 : vector<1x16x512xf32> to vector<16x512xf32>
      %276 = arith.truncf %259 : vector<16x128xf32> to vector<16x128xbf16>
      %c0_89 = arith.constant 0 : index
      %c0_90 = arith.constant 0 : index
      %277 = vector.load %arg5[%c0_89, %c0_90] : memref<128x512xbf16, #tpu.memory_space<vmem>>, vector<128x512xbf16>
      %cst_91 = arith.constant dense<0.000000e+00> : vector<16x512xf32>
      %278 = tpu.matmul %276, %277, %cst_91 {dimension_numbers = #tpu.dot_dimension_numbers<[1], [0], [0], [1], [0, 0, 1, 1], [], []>} : vector<16x128xbf16>, vector<128x512xbf16>, vector<16x512xf32> -> vector<16x512xf32>
      %279 = arith.addf %275, %278 : vector<16x512xf32>
      %280 = vector.extract_strided_slice %279 {offsets = [0, 0], sizes = [16, 384], strides = [1, 1]} : vector<16x512xf32> to vector<16x384xf32>
      %281 = arith.negf %280 : vector<16x384xf32>
      %282 = math.exp %281 : vector<16x384xf32>
      %cst_92 = arith.constant 1.000000e+00 : f32
      %283 = vector.broadcast %cst_92 : f32 to vector<16x384xf32>
      %284 = arith.addf %283, %282 : vector<16x384xf32>
      %285 = arith.divf %283, %284 : vector<16x384xf32>
      %286 = vector.extract_strided_slice %279 {offsets = [0, 384], sizes = [16, 128], strides = [1, 1]} : vector<16x512xf32> to vector<16x128xf32>
      %287 = math.tanh %286 : vector<16x128xf32>
      %288 = vector.extract_strided_slice %285 {offsets = [0, 128], sizes = [16, 128], strides = [1, 1]} : vector<16x384xf32> to vector<16x128xf32>
      %289 = arith.mulf %288, %256 : vector<16x128xf32>
      %290 = vector.extract_strided_slice %285 {offsets = [0, 0], sizes = [16, 128], strides = [1, 1]} : vector<16x384xf32> to vector<16x128xf32>
      %291 = arith.mulf %290, %287 : vector<16x128xf32>
      %292 = arith.addf %289, %291 : vector<16x128xf32>
      %293 = vector.extract_strided_slice %285 {offsets = [0, 256], sizes = [16, 128], strides = [1, 1]} : vector<16x384xf32> to vector<16x128xf32>
      %294 = math.tanh %292 : vector<16x128xf32>
      %295 = arith.mulf %293, %294 : vector<16x128xf32>
      %c24_i32_93 = arith.constant 24 : i32
      %296 = arith.muli %arg1, %c24_i32_93 : i32
      %297 = arith.addi %296, %272 : i32
      %298 = vector.broadcast %297 : i32 to vector<16x1xi32>
      %299 = arith.cmpi sgt, %12, %298 : vector<16x1xi32>
      %300 = arith.extui %299 : vector<16x1xi1> to vector<16x1xi32>
      %301 = arith.sitofp %300 : vector<16x1xi32> to vector<16x1xf32>
      %302 = vector.broadcast %301 : vector<16x1xf32> to vector<16x128xf32>
      %303 = arith.mulf %295, %302 : vector<16x128xf32>
      %304 = arith.index_cast %272 : i32 to index
      %c0_94 = arith.constant 0 : index
      %c0_95 = arith.constant 0 : index
      %305 = vector.load %arg7[%304, %c0_94, %c0_95] : memref<24x16x128xf32, #tpu.memory_space<vmem>>, vector<1x16x128xf32>
      %306 = vector.shape_cast %305 : vector<1x16x128xf32> to vector<16x128xf32>
      %307 = vector.shape_cast %303 : vector<16x128xf32> to vector<1x16x128xf32>
      tpu.vector_store %arg7[%304, %c0_94, %c0_95], %307 {strides = array<i32>} : memref<24x16x128xf32, #tpu.memory_space<vmem>>, vector<1x16x128xf32>,
      scf.yield %295, %292 : vector<16x128xf32>, vector<16x128xf32>
    }
    %c3_i32_17 = arith.constant 3 : i32
    %c0_18 = arith.constant 0 : index
    %c0_19 = arith.constant 0 : index
    %17 = vector.load %arg9[%c0_18, %c0_19] : memref<16x128xf32, #tpu.memory_space<vmem>>, vector<16x128xf32>
    tpu.vector_store %arg9[%c0_18, %c0_19], %16#0 {strides = array<i32>} : memref<16x128xf32, #tpu.memory_space<vmem>>, vector<16x128xf32>,
    %c0_20 = arith.constant 0 : index
    %c0_21 = arith.constant 0 : index
    %18 = vector.load %arg10[%c0_20, %c0_21] : memref<16x128xf32, #tpu.memory_space<vmem>>, vector<16x128xf32>
    tpu.vector_store %arg10[%c0_20, %c0_21], %16#1 {strides = array<i32>} : memref<16x128xf32, #tpu.memory_space<vmem>>, vector<16x128xf32>,
    return
  }
  func.func @transform_0(%arg0: i32, %arg1: i32) -> (i32, i32) {
    %c0_i32 = arith.constant 0 : i32
    %c0_i32_0 = arith.constant 0 : i32
    return %arg0, %c0_i32 : i32, i32
  }
  func.func @transform_1(%arg0: i32, %arg1: i32) -> (i32, i32, i32) {
    %c0_i32 = arith.constant 0 : i32
    %c0_i32_0 = arith.constant 0 : i32
    return %arg1, %arg0, %c0_i32 : i32, i32, i32
  }
  func.func @transform_2(%arg0: i32, %arg1: i32) -> (i32, i32) {
    %c0_i32 = arith.constant 0 : i32
    %c0_i32_0 = arith.constant 0 : i32
    %c0_i32_1 = arith.constant 0 : i32
    return %c0_i32, %c0_i32_0 : i32, i32
  }
  func.func @transform_3(%arg0: i32, %arg1: i32) -> (i32, i32) {
    %c0_i32 = arith.constant 0 : i32
    %c0_i32_0 = arith.constant 0 : i32
    %c0_i32_1 = arith.constant 0 : i32
    return %c0_i32, %c0_i32_0 : i32, i32
  }
  func.func @transform_4(%arg0: i32, %arg1: i32) -> (i32, i32) {
    %c0_i32 = arith.constant 0 : i32
    %c0_i32_0 = arith.constant 0 : i32
    %c0_i32_1 = arith.constant 0 : i32
    return %c0_i32, %c0_i32_0 : i32, i32
  }
  func.func @transform_5(%arg0: i32, %arg1: i32) -> (i32, i32, i32) {
    %c0_i32 = arith.constant 0 : i32
    %c0_i32_0 = arith.constant 0 : i32
    return %arg1, %arg0, %c0_i32 : i32, i32, i32
  }
}

</mosaic_0001>

<llo_original>
// kernel: batch_rnn_forward.2
$region0: #{batch_rnn_forward.2}
  #allocation0 [shape = 'u32[]', space=smem, size = 0x4, offset = 0x4, fixed_abs, tag = 'smem constant byte address 0x4 - core index']
  #allocation1 [shape = 'u32[72,128]{1,0:T(1,128)}', space=vmem, size = 0x9000, scoped, tag = 'internal scratch']
  %s0 = inlined_call_operand.vmem [shape: s32[16,1], index: 0, kind: input, shape index: {}]
  %s1 = inlined_call_operand.vmem [shape: bf16[24,16,128], index: 1, kind: input, shape index: {}]
  %s2 = inlined_call_operand.vmem [shape: f32[1,128], index: 2, kind: output, shape index: {0}]
  %s3 = inlined_call_operand.vmem [shape: f32[1,128], index: 3, kind: output, shape index: {1}]
  %4 = xla_tuple %s2, %s3
  %s5 = sld [smem:[#allocation0]]
  $region30: #{batch_rnn_forward.2} parent=0
    _
  %s7 = ssub.s32 1, %s5
  %s8 = scalar_select 0, %s7, %s5
  // Predicated region
  $region2: #{batch_rnn_forward.2} parent=0 // pred_check
    _
  $region3: #{batch_rnn_forward.2} parent=0 // pred_check_branch
    %10 = sbr.rel (0) target = $region5
  $region4: #{batch_rnn_forward.2} parent=0 // pred_region
    _
  $region5: #{batch_rnn_forward.2} parent=0 // pred_fallthru
    _
  // Predicated region
  $region6: #{batch_rnn_forward.2} parent=0 // pred_check
    _
  $region7: #{batch_rnn_forward.2} parent=0 // pred_check_branch
    %12 = sbr.rel (0) target = $region9
  $region8: #{batch_rnn_forward.2} parent=0 // pred_region
    _
  $region9: #{batch_rnn_forward.2} parent=0 // pred_fallthru
    _
  %p13 = scmp.eq.s32.totalorder 0, 0
  // Predicated region
  $region10: #{batch_rnn_forward.2} parent=0 // pred_check
    %p14 = pneg %p13
  $region11: #{batch_rnn_forward.2} parent=0 // pred_check_branch
    %16 = sbr.rel (%p14) target = $region13
  $region12: #{batch_rnn_forward.2} parent=0 // pred_region
    %17 = vst [vmem:[%s2] sm:$0x1] 0.0
    %18 = vst [vmem:[%s3] sm:$0x1] 0.0
  $region13: #{batch_rnn_forward.2} parent=0 // pred_fallthru
    _
  %s19 = smul.u32 0, 24
  %v20 = vstv %s19
  %v21 = vadd.s32 %v20, 1
  %v22 = vadd.s32 %v20, 2
  %v23 = vadd.s32 %v20, 3
  %v24 = vadd.s32 %v20, 4
  %v25 = vadd.s32 %v20, 5
  %v26 = vadd.s32 %v20, 6
  %v27 = vadd.s32 %v20, 7
  %v28 = vadd.s32 %v20, 8
  %v29 = vadd.s32 %v20, 9
  %v30 = vadd.s32 %v20, 10
  %v31 = vadd.s32 %v20, 11
  %v32 = vadd.s32 %v20, 12
  %v33 = vadd.s32 %v20, 13
  %v34 = vadd.s32 %v20, 14
  %v35 = vadd.s32 %v20, 15
  %v36 = vadd.s32 %v20, 16
  %v37 = vadd.s32 %v20, 17
  %v38 = vadd.s32 %v20, 18
  %v39 = vadd.s32 %v20, 19
  %v40 = vadd.s32 %v20, 20
  %v41 = vadd.s32 %v20, 21
  %v42 = vadd.s32 %v20, 22
  %v43 = vadd.s32 %v20, 23
  %v44 = vld [vmem:[%s0] sm:$0xff]
  %v45 = vld [vmem:[%s0 + $0x8] sm:$0xff]
  %vm46 = vcmp.lt.s32.totalorder %v20, %v44
  %vm47 = vcmp.lt.s32.totalorder %v20, %v45
  %vm48 = vcmp.lt.s32.totalorder %v21, %v44
  %vm49 = vcmp.lt.s32.totalorder %v21, %v45
  %vm50 = vcmp.lt.s32.totalorder %v22, %v44
  %vm51 = vcmp.lt.s32.totalorder %v22, %v45
  %vm52 = vcmp.lt.s32.totalorder %v23, %v44
  %vm53 = vcmp.lt.s32.totalorder %v23, %v45
  %vm54 = vcmp.lt.s32.totalorder %v24, %v44
  %vm55 = vcmp.lt.s32.totalorder %v24, %v45
  %vm56 = vcmp.lt.s32.totalorder %v25, %v44
  %vm57 = vcmp.lt.s32.totalorder %v25, %v45
  %vm58 = vcmp.lt.s32.totalorder %v26, %v44
  %vm59 = vcmp.lt.s32.totalorder %v26, %v45
  %vm60 = vcmp.lt.s32.totalorder %v27, %v44
  %vm61 = vcmp.lt.s32.totalorder %v27, %v45
  %vm62 = vcmp.lt.s32.totalorder %v28, %v44
  %vm63 = vcmp.lt.s32.totalorder %v28, %v45
  %vm64 = vcmp.lt.s32.totalorder %v29, %v44
  %vm65 = vcmp.lt.s32.totalorder %v29, %v45
  %vm66 = vcmp.lt.s32.totalorder %v30, %v44
  %vm67 = vcmp.lt.s32.totalorder %v30, %v45
  %vm68 = vcmp.lt.s32.totalorder %v31, %v44
  %vm69 = vcmp.lt.s32.totalorder %v31, %v45
  %vm70 = vcmp.lt.s32.totalorder %v32, %v44
  %vm71 = vcmp.lt.s32.totalorder %v32, %v45
  %vm72 = vcmp.lt.s32.totalorder %v33, %v44
  %vm73 = vcmp.lt.s32.totalorder %v33, %v45
  %vm74 = vcmp.lt.s32.totalorder %v34, %v44
  %vm75 = vcmp.lt.s32.totalorder %v34, %v45
  %vm76 = vcmp.lt.s32.totalorder %v35, %v44
  %vm77 = vcmp.lt.s32.totalorder %v35, %v45
  %vm78 = vcmp.lt.s32.totalorder %v36, %v44
  %vm79 = vcmp.lt.s32.totalorder %v36, %v45
  %vm80 = vcmp.lt.s32.totalorder %v37, %v44
  %vm81 = vcmp.lt.s32.totalorder %v37, %v45
  %vm82 = vcmp.lt.s32.totalorder %v38, %v44
  %vm83 = vcmp.lt.s32.totalorder %v38, %v45
  %vm84 = vcmp.lt.s32.totalorder %v39, %v44
  %vm85 = vcmp.lt.s32.totalorder %v39, %v45
  %vm86 = vcmp.lt.s32.totalorder %v40, %v44
  %vm87 = vcmp.lt.s32.totalorder %v40, %v45
  %vm88 = vcmp.lt.s32.totalorder %v41, %v44
  %vm89 = vcmp.lt.s32.totalorder %v41, %v45
  %vm90 = vcmp.lt.s32.totalorder %v42, %v44
  %vm91 = vcmp.lt.s32.totalorder %v42, %v45
  %vm92 = vcmp.lt.s32.totalorder %v43, %v44
  %vm93 = vcmp.lt.s32.totalorder %v43, %v45
  %v94 = vsel %vm46, 1, 0
  %v95 = vsel %vm47, 1, 0
  %v96 = vsel %vm48, 1, 0
  %v97 = vsel %vm49, 1, 0
  %v98 = vsel %vm50, 1, 0
  %v99 = vsel %vm51, 1, 0
  %v100 = vsel %vm52, 1, 0
  %v101 = vsel %vm53, 1, 0
  %v102 = vsel %vm54, 1, 0
  %v103 = vsel %vm55, 1, 0
  %v104 = vsel %vm56, 1, 0
  %v105 = vsel %vm57, 1, 0
  %v106 = vsel %vm58, 1, 0
  %v107 = vsel %vm59, 1, 0
  %v108 = vsel %vm60, 1, 0
  %v109 = vsel %vm61, 1, 0
  %v110 = vsel %vm62, 1, 0
  %v111 = vsel %vm63, 1, 0
  %v112 = vsel %vm64, 1, 0
  %v113 = vsel %vm65, 1, 0
  %v114 = vsel %vm66, 1, 0
  %v115 = vsel %vm67, 1, 0
  %v116 = vsel %vm68, 1, 0
  %v117 = vsel %vm69, 1, 0
  %v118 = vsel %vm70, 1, 0
  %v119 = vsel %vm71, 1, 0
  %v120 = vsel %vm72, 1, 0
  %v121 = vsel %vm73, 1, 0
  %v122 = vsel %vm74, 1, 0
  %v123 = vsel %vm75, 1, 0
  %v124 = vsel %vm76, 1, 0
  %v125 = vsel %vm77, 1, 0
  %v126 = vsel %vm78, 1, 0
  %v127 = vsel %vm79, 1, 0
  %v128 = vsel %vm80, 1, 0
  %v129 = vsel %vm81, 1, 0
  %v130 = vsel %vm82, 1, 0
  %v131 = vsel %vm83, 1, 0
  %v132 = vsel %vm84, 1, 0
  %v133 = vsel %vm85, 1, 0
  %v134 = vsel %vm86, 1, 0
  %v135 = vsel %vm87, 1, 0
  %v136 = vsel %vm88, 1, 0
  %v137 = vsel %vm89, 1, 0
  %v138 = vsel %vm90, 1, 0
  %v139 = vsel %vm91, 1, 0
  %v140 = vsel %vm92, 1, 0
  %v141 = vsel %vm93, 1, 0
  %v142 = vcvt.s32.f32 %v94
  %v143 = vcvt.s32.f32 %v95
  %v144 = vcvt.s32.f32 %v96
  %v145 = vcvt.s32.f32 %v97
  %v146 = vcvt.s32.f32 %v98
  %v147 = vcvt.s32.f32 %v99
  %v148 = vcvt.s32.f32 %v100
  %v149 = vcvt.s32.f32 %v101
  %v150 = vcvt.s32.f32 %v102
  %v151 = vcvt.s32.f32 %v103
  %v152 = vcvt.s32.f32 %v104
  %v153 = vcvt.s32.f32 %v105
  %v154 = vcvt.s32.f32 %v106
  %v155 = vcvt.s32.f32 %v107
  %v156 = vcvt.s32.f32 %v108
  %v157 = vcvt.s32.f32 %v109
  %v158 = vcvt.s32.f32 %v110
  %v159 = vcvt.s32.f32 %v111
  %v160 = vcvt.s32.f32 %v112
  %v161 = vcvt.s32.f32 %v113
  %v162 = vcvt.s32.f32 %v114
  %v163 = vcvt.s32.f32 %v115
  %v164 = vcvt.s32.f32 %v116
  %v165 = vcvt.s32.f32 %v117
  %v166 = vcvt.s32.f32 %v118
  %v167 = vcvt.s32.f32 %v119
  %v168 = vcvt.s32.f32 %v120
  %v169 = vcvt.s32.f32 %v121
  %v170 = vcvt.s32.f32 %v122
  %v171 = vcvt.s32.f32 %v123
  %v172 = vcvt.s32.f32 %v124
  %v173 = vcvt.s32.f32 %v125
  %v174 = vcvt.s32.f32 %v126
  %v175 = vcvt.s32.f32 %v127
  %v176 = vcvt.s32.f32 %v128
  %v177 = vcvt.s32.f32 %v129
  %v178 = vcvt.s32.f32 %v130
  %v179 = vcvt.s32.f32 %v131
  %v180 = vcvt.s32.f32 %v132
  %v181 = vcvt.s32.f32 %v133
  %v182 = vcvt.s32.f32 %v134
  %v183 = vcvt.s32.f32 %v135
  %v184 = vcvt.s32.f32 %v136
  %v185 = vcvt.s32.f32 %v137
  %v186 = vcvt.s32.f32 %v138
  %v187 = vcvt.s32.f32 %v139
  %v188 = vcvt.s32.f32 %v140
  %v189 = vcvt.s32.f32 %v141
  %v190 = vld [vmem:[%s1] sm:$0xf]
  %v191 = vld [vmem:[%s1 + $0x4] sm:$0xf]
  %v192 = vld [vmem:[%s1 + $0x8] sm:$0xf]
  %v193 = vld [vmem:[%s1 + $0xc] sm:$0xf]
  %v194 = vld [vmem:[%s1 + $0x10] sm:$0xf]
  %v195 = vld [vmem:[%s1 + $0x14] sm:$0xf]
  %v196 = vld [vmem:[%s1 + $0x18] sm:$0xf]
  %v197 = vld [vmem:[%s1 + $0x1c] sm:$0xf]
  %v198 = vld [vmem:[%s1 + $0x20] sm:$0xf]
  %v199 = vld [vmem:[%s1 + $0x24] sm:$0xf]
  %v200 = vld [vmem:[%s1 + $0x28] sm:$0xf]
  %v201 = vld [vmem:[%s1 + $0x2c] sm:$0xf]
  %v202 = vld [vmem:[%s1 + $0x30] sm:$0xf]
  %v203 = vld [vmem:[%s1 + $0x34] sm:$0xf]
  %v204 = vld [vmem:[%s1 + $0x38] sm:$0xf]
  %v205 = vld [vmem:[%s1 + $0x3c] sm:$0xf]
  %v206 = vld [vmem:[%s1 + $0x40] sm:$0xf]
  %v207 = vld [vmem:[%s1 + $0x44] sm:$0xf]
  %v208 = vld [vmem:[%s1 + $0x48] sm:$0xf]
  %v209 = vld [vmem:[%s1 + $0x4c] sm:$0xf]
  %v210 = vld [vmem:[%s1 + $0x50] sm:$0xf]
  %v211 = vld [vmem:[%s1 + $0x54] sm:$0xf]
  %v212 = vld [vmem:[%s1 + $0x58] sm:$0xf]
  %v213 = vld [vmem:[%s1 + $0x5c] sm:$0xf]
  %v214 = vld [vmem:[%s1 + $0x60] sm:$0xf]
  %v215 = vld [vmem:[%s1 + $0x64] sm:$0xf]
  %v216 = vld [vmem:[%s1 + $0x68] sm:$0xf]
  %v217 = vld [vmem:[%s1 + $0x6c] sm:$0xf]
  %v218 = vld [vmem:[%s1 + $0x70] sm:$0xf]
  %v219 = vld [vmem:[%s1 + $0x74] sm:$0xf]
  %v220 = vld [vmem:[%s1 + $0x78] sm:$0xf]
  %v221 = vld [vmem:[%s1 + $0x7c] sm:$0xf]
  %v222 = vld [vmem:[%s1 + $0x80] sm:$0xf]
  %v223 = vld [vmem:[%s1 + $0x84] sm:$0xf]
  %v224 = vld [vmem:[%s1 + $0x88] sm:$0xf]
  %v225 = vld [vmem:[%s1 + $0x8c] sm:$0xf]
  %v226 = vld [vmem:[%s1 + $0x90] sm:$0xf]
  %v227 = vld [vmem:[%s1 + $0x94] sm:$0xf]
  %v228 = vld [vmem:[%s1 + $0x98] sm:$0xf]
  %v229 = vld [vmem:[%s1 + $0x9c] sm:$0xf]
  %v230 = vld [vmem:[%s1 + $0xa0] sm:$0xf]
  %v231 = vld [vmem:[%s1 + $0xa4] sm:$0xf]
  %v232 = vld [vmem:[%s1 + $0xa8] sm:$0xf]
  %v233 = vld [vmem:[%s1 + $0xac] sm:$0xf]
  %v234 = vld [vmem:[%s1 + $0xb0] sm:$0xf]
  %v235 = vld [vmem:[%s1 + $0xb4] sm:$0xf]
  %v236 = vld [vmem:[%s1 + $0xb8] sm:$0xf]
  %v237 = vld [vmem:[%s1 + $0xbc] sm:$0xf]
  %v238 = vunpack.c.l.bf16 %v190
  %v239 = vunpack.c.l.bf16 %v191
  %v240 = vunpack.c.l.bf16 %v192
  %v241 = vunpack.c.l.bf16 %v193
  %v242 = vunpack.c.l.bf16 %v194
  %v243 = vunpack.c.l.bf16 %v195
  %v244 = vunpack.c.l.bf16 %v196
  %v245 = vunpack.c.l.bf16 %v197
  %v246 = vunpack.c.l.bf16 %v198
  %v247 = vunpack.c.l.bf16 %v199
  %v248 = vunpack.c.l.bf16 %v200
  %v249 = vunpack.c.l.bf16 %v201
  %v250 = vunpack.c.l.bf16 %v202
  %v251 = vunpack.c.l.bf16 %v203
  %v252 = vunpack.c.l.bf16 %v204
  %v253 = vunpack.c.l.bf16 %v205
  %v254 = vunpack.c.l.bf16 %v206
  %v255 = vunpack.c.l.bf16 %v207
  %v256 = vunpack.c.l.bf16 %v208
  %v257 = vunpack.c.l.bf16 %v209
  %v258 = vunpack.c.l.bf16 %v210
  %v259 = vunpack.c.l.bf16 %v211
  %v260 = vunpack.c.l.bf16 %v212
  %v261 = vunpack.c.l.bf16 %v213
  %v262 = vunpack.c.l.bf16 %v214
  %v263 = vunpack.c.l.bf16 %v215
  %v264 = vunpack.c.l.bf16 %v216
  %v265 = vunpack.c.l.bf16 %v217
  %v266 = vunpack.c.l.bf16 %v218
  %v267 = vunpack.c.l.bf16 %v219
  %v268 = vunpack.c.l.bf16 %v220
  %v269 = vunpack.c.l.bf16 %v221
  %v270 = vunpack.c.l.bf16 %v222
  %v271 = vunpack.c.l.bf16 %v223
  %v272 = vunpack.c.l.bf16 %v224
  %v273 = vunpack.c.l.bf16 %v225
  %v274 = vunpack.c.l.bf16 %v226
  %v275 = vunpack.c.l.bf16 %v227
  %v276 = vunpack.c.l.bf16 %v228
  %v277 = vunpack.c.l.bf16 %v229
  %v278 = vunpack.c.l.bf16 %v230
  %v279 = vunpack.c.l.bf16 %v231
  %v280 = vunpack.c.l.bf16 %v232
  %v281 = vunpack.c.l.bf16 %v233
  %v282 = vunpack.c.l.bf16 %v234
  %v283 = vunpack.c.l.bf16 %v235
  %v284 = vunpack.c.l.bf16 %v236
  %v285 = vunpack.c.l.bf16 %v237
  %287 = vset.pattern.permute.xlu0 0
  %288 = vperm.xlu0 %287, %v142
  %v289 = vpop.permute.xlu0 %288
  %292 = vset.pattern.permute.xlu0 0
  %293 = vperm.xlu0 %292, %v143
  %v294 = vpop.permute.xlu0 %293
  %297 = vset.pattern.permute.xlu0 0
  %298 = vperm.xlu0 %297, %v144
  %v299 = vpop.permute.xlu0 %298
  %302 = vset.pattern.permute.xlu0 0
  %303 = vperm.xlu0 %302, %v145
  %v304 = vpop.permute.xlu0 %303
  %307 = vset.pattern.permute.xlu0 0
  %308 = vperm.xlu0 %307, %v146
  %v309 = vpop.permute.xlu0 %308
  %312 = vset.pattern.permute.xlu0 0
  %313 = vperm.xlu0 %312, %v147
  %v314 = vpop.permute.xlu0 %313
  %317 = vset.pattern.permute.xlu0 0
  %318 = vperm.xlu0 %317, %v148
  %v319 = vpop.permute.xlu0 %318
  %322 = vset.pattern.permute.xlu0 0
  %323 = vperm.xlu0 %322, %v149
  %v324 = vpop.permute.xlu0 %323
  %327 = vset.pattern.permute.xlu0 0
  %328 = vperm.xlu0 %327, %v150
  %v329 = vpop.permute.xlu0 %328
  %332 = vset.pattern.permute.xlu0 0
  %333 = vperm.xlu0 %332, %v151
  %v334 = vpop.permute.xlu0 %333
  %337 = vset.pattern.permute.xlu0 0
  %338 = vperm.xlu0 %337, %v152
  %v339 = vpop.permute.xlu0 %338
  %342 = vset.pattern.permute.xlu0 0
  %343 = vperm.xlu0 %342, %v153
  %v344 = vpop.permute.xlu0 %343
  %347 = vset.pattern.permute.xlu0 0
  %348 = vperm.xlu0 %347, %v154
  %v349 = vpop.permute.xlu0 %348
  %352 = vset.pattern.permute.xlu0 0
  %353 = vperm.xlu0 %352, %v155
  %v354 = vpop.permute.xlu0 %353
  %357 = vset.pattern.permute.xlu0 0
  %358 = vperm.xlu0 %357, %v156
  %v359 = vpop.permute.xlu0 %358
  %362 = vset.pattern.permute.xlu0 0
  %363 = vperm.xlu0 %362, %v157
  %v364 = vpop.permute.xlu0 %363
  %367 = vset.pattern.permute.xlu0 0
  %368 = vperm.xlu0 %367, %v158
  %v369 = vpop.permute.xlu0 %368
  %372 = vset.pattern.permute.xlu0 0
  %373 = vperm.xlu0 %372, %v159
  %v374 = vpop.permute.xlu0 %373
  %377 = vset.pattern.permute.xlu0 0
  %378 = vperm.xlu0 %377, %v160
  %v379 = vpop.permute.xlu0 %378
  %382 = vset.pattern.permute.xlu0 0
  %383 = vperm.xlu0 %382, %v161
  %v384 = vpop.permute.xlu0 %383
  %387 = vset.pattern.permute.xlu0 0
  %388 = vperm.xlu0 %387, %v162
  %v389 = vpop.permute.xlu0 %388
  %392 = vset.pattern.permute.xlu0 0
  %393 = vperm.xlu0 %392, %v163
  %v394 = vpop.permute.xlu0 %393
  %397 = vset.pattern.permute.xlu0 0
  %398 = vperm.xlu0 %397, %v164
  %v399 = vpop.permute.xlu0 %398
  %402 = vset.pattern.permute.xlu0 0
  %403 = vperm.xlu0 %402, %v165
  %v404 = vpop.permute.xlu0 %403
  %407 = vset.pattern.permute.xlu0 0
  %408 = vperm.xlu0 %407, %v166
  %v409 = vpop.permute.xlu0 %408
  %412 = vset.pattern.permute.xlu0 0
  %413 = vperm.xlu0 %412, %v167
  %v414 = vpop.permute.xlu0 %413
  %417 = vset.pattern.permute.xlu0 0
  %418 = vperm.xlu0 %417, %v168
  %v419 = vpop.permute.xlu0 %418
  %422 = vset.pattern.permute.xlu0 0
  %423 = vperm.xlu0 %422, %v169
  %v424 = vpop.permute.xlu0 %423
  %427 = vset.pattern.permute.xlu0 0
  %428 = vperm.xlu0 %427, %v170
  %v429 = vpop.permute.xlu0 %428
  %432 = vset.pattern.permute.xlu0 0
  %433 = vperm.xlu0 %432, %v171
  %v434 = vpop.permute.xlu0 %433
  %437 = vset.pattern.permute.xlu0 0
  %438 = vperm.xlu0 %437, %v172
  %v439 = vpop.permute.xlu0 %438
  %442 = vset.pattern.permute.xlu0 0
  %443 = vperm.xlu0 %442, %v173
  %v444 = vpop.permute.xlu0 %443
  %447 = vset.pattern.permute.xlu0 0
  %448 = vperm.xlu0 %447, %v174
  %v449 = vpop.permute.xlu0 %448
  %452 = vset.pattern.permute.xlu0 0
  %453 = vperm.xlu0 %452, %v175
  %v454 = vpop.permute.xlu0 %453
  %457 = vset.pattern.permute.xlu0 0
  %458 = vperm.xlu0 %457, %v176
  %v459 = vpop.permute.xlu0 %458
  %462 = vset.pattern.permute.xlu0 0
  %463 = vperm.xlu0 %462, %v177
  %v464 = vpop.permute.xlu0 %463
  %467 = vset.pattern.permute.xlu0 0
  %468 = vperm.xlu0 %467, %v178
  %v469 = vpop.permute.xlu0 %468
  %472 = vset.pattern.permute.xlu0 0
  %473 = vperm.xlu0 %472, %v179
  %v474 = vpop.permute.xlu0 %473
  %477 = vset.pattern.permute.xlu0 0
  %478 = vperm.xlu0 %477, %v180
  %v479 = vpop.permute.xlu0 %478
  %482 = vset.pattern.permute.xlu0 0
  %483 = vperm.xlu0 %482, %v181
  %v484 = vpop.permute.xlu0 %483
  %487 = vset.pattern.permute.xlu0 0
  %488 = vperm.xlu0 %487, %v182
  %v489 = vpop.permute.xlu0 %488
  %492 = vset.pattern.permute.xlu0 0
  %493 = vperm.xlu0 %492, %v183
  %v494 = vpop.permute.xlu0 %493
  %497 = vset.pattern.permute.xlu0 0
  %498 = vperm.xlu0 %497, %v184
  %v499 = vpop.permute.xlu0 %498
  %502 = vset.pattern.permute.xlu0 0
  %503 = vperm.xlu0 %502, %v185
  %v504 = vpop.permute.xlu0 %503
  %507 = vset.pattern.permute.xlu0 0
  %508 = vperm.xlu0 %507, %v186
  %v509 = vpop.permute.xlu0 %508
  %512 = vset.pattern.permute.xlu0 0
  %513 = vperm.xlu0 %512, %v187
  %v514 = vpop.permute.xlu0 %513
  %517 = vset.pattern.permute.xlu0 0
  %518 = vperm.xlu0 %517, %v188
  %v519 = vpop.permute.xlu0 %518
  %522 = vset.pattern.permute.xlu0 0
  %523 = vperm.xlu0 %522, %v189
  %v524 = vpop.permute.xlu0 %523
  %v526 = vmul.f32 %v238, %v289
  %v527 = vmul.f32 %v239, %v294
  %v528 = vmul.f32 %v240, %v299
  %v529 = vmul.f32 %v241, %v304
  %v530 = vmul.f32 %v242, %v309
  %v531 = vmul.f32 %v243, %v314
  %v532 = vmul.f32 %v244, %v319
  %v533 = vmul.f32 %v245, %v324
  %v534 = vmul.f32 %v246, %v329
  %v535 = vmul.f32 %v247, %v334
  %v536 = vmul.f32 %v248, %v339
  %v537 = vmul.f32 %v249, %v344
  %v538 = vmul.f32 %v250, %v349
  %v539 = vmul.f32 %v251, %v354
  %v540 = vmul.f32 %v252, %v359
  %v541 = vmul.f32 %v253, %v364
  %v542 = vmul.f32 %v254, %v369
  %v543 = vmul.f32 %v255, %v374
  %v544 = vmul.f32 %v256, %v379
  %v545 = vmul.f32 %v257, %v384
  %v546 = vmul.f32 %v258, %v389
  %v547 = vmul.f32 %v259, %v394
  %v548 = vmul.f32 %v260, %v399
  %v549 = vmul.f32 %v261, %v404
  %v550 = vmul.f32 %v262, %v409
  %v551 = vmul.f32 %v263, %v414
  %v552 = vmul.f32 %v264, %v419
  %v553 = vmul.f32 %v265, %v424
  %v554 = vmul.f32 %v266, %v429
  %v555 = vmul.f32 %v267, %v434
  %v556 = vmul.f32 %v268, %v439
  %v557 = vmul.f32 %v269, %v444
  %v558 = vmul.f32 %v270, %v449
  %v559 = vmul.f32 %v271, %v454
  %v560 = vmul.f32 %v272, %v459
  %v561 = vmul.f32 %v273, %v464
  %v562 = vmul.f32 %v274, %v469
  %v563 = vmul.f32 %v275, %v474
  %v564 = vmul.f32 %v276, %v479
  %v565 = vmul.f32 %v277, %v484
  %v566 = vmul.f32 %v278, %v489
  %v567 = vmul.f32 %v279, %v494
  %v568 = vmul.f32 %v280, %v499
  %v569 = vmul.f32 %v281, %v504
  %v570 = vmul.f32 %v282, %v509
  %v571 = vmul.f32 %v283, %v514
  %v572 = vmul.f32 %v284, %v519
  %v573 = vmul.f32 %v285, %v524
  %v574 = vld [vmem:[%s2] sm:$0x1]
  %v575 = vadd.f32 %v526, %v527
  %v576 = vadd.f32 %v575, %v528
  %v577 = vadd.f32 %v576, %v529
  %v578 = vadd.f32 %v577, %v530
  %v579 = vadd.f32 %v578, %v531
  %v580 = vadd.f32 %v579, %v532
  %v581 = vadd.f32 %v580, %v533
  %v582 = vadd.f32 %v581, %v534
  %v583 = vadd.f32 %v582, %v535
  %v584 = vadd.f32 %v583, %v536
  %v585 = vadd.f32 %v584, %v537
  %v586 = vadd.f32 %v585, %v538
  %v587 = vadd.f32 %v586, %v539
  %v588 = vadd.f32 %v587, %v540
  %v589 = vadd.f32 %v588, %v541
  %v590 = vadd.f32 %v589, %v542
  %v591 = vadd.f32 %v590, %v543
  %v592 = vadd.f32 %v591, %v544
  %v593 = vadd.f32 %v592, %v545
  %v594 = vadd.f32 %v593, %v546
  %v595 = vadd.f32 %v594, %v547
  %v596 = vadd.f32 %v595, %v548
  %v597 = vadd.f32 %v596, %v549
  %v598 = vadd.f32 %v597, %v550
  %v599 = vadd.f32 %v598, %v551
  %v600 = vadd.f32 %v599, %v552
  %v601 = vadd.f32 %v600, %v553
  %v602 = vadd.f32 %v601, %v554
  %v603 = vadd.f32 %v602, %v555
  %v604 = vadd.f32 %v603, %v556
  %v605 = vadd.f32 %v604, %v557
  %v606 = vadd.f32 %v605, %v558
  %v607 = vadd.f32 %v606, %v559
  %v608 = vadd.f32 %v607, %v560
  %v609 = vadd.f32 %v608, %v561
  %v610 = vadd.f32 %v609, %v562
  %v611 = vadd.f32 %v610, %v563
  %v612 = vadd.f32 %v611, %v564
  %v613 = vadd.f32 %v612, %v565
  %v614 = vadd.f32 %v613, %v566
  %v615 = vadd.f32 %v614, %v567
  %v616 = vadd.f32 %v615, %v568
  %v617 = vadd.f32 %v616, %v569
  %v618 = vadd.f32 %v617, %v570
  %v619 = vadd.f32 %v618, %v571
  %v620 = vadd.f32 %v619, %v572
  %v621 = vadd.f32 %v620, %v573
  %v622 = vrot.slane %v621, 4
  %v623 = vadd.f32 %v621, %v622
  %v624 = vrot.slane %v623, 2
  %v625 = vadd.f32 %v623, %v624
  %v626 = vrot.slane %v625, 1
  %v627 = vadd.f32 %v625, %v626
  %v628 = vadd.f32 %v574, %v627
  %629 = vst [vmem:[%s2] sm:$0x1] %v628
  %v630 = vld [vmem:[%s3] sm:$0x1]
  %v631 = vmul.f32 %v526, %v526
  %v632 = vmul.f32 %v527, %v527
  %v633 = vmul.f32 %v528, %v528
  %v634 = vmul.f32 %v529, %v529
  %v635 = vmul.f32 %v530, %v530
  %v636 = vmul.f32 %v531, %v531
  %v637 = vmul.f32 %v532, %v532
  %v638 = vmul.f32 %v533, %v533
  %v639 = vmul.f32 %v534, %v534
  %v640 = vmul.f32 %v535, %v535
  %v641 = vmul.f32 %v536, %v536
  %v642 = vmul.f32 %v537, %v537
  %v643 = vmul.f32 %v538, %v538
  %v644 = vmul.f32 %v539, %v539
  %v645 = vmul.f32 %v540, %v540
  %v646 = vmul.f32 %v541, %v541
  %v647 = vmul.f32 %v542, %v542
  %v648 = vmul.f32 %v543, %v543
  %v649 = vmul.f32 %v544, %v544
  %v650 = vmul.f32 %v545, %v545
  %v651 = vmul.f32 %v546, %v546
  %v652 = vmul.f32 %v547, %v547
  %v653 = vmul.f32 %v548, %v548
  %v654 = vmul.f32 %v549, %v549
  %v655 = vmul.f32 %v550, %v550
  %v656 = vmul.f32 %v551, %v551
  %v657 = vmul.f32 %v552, %v552
  %v658 = vmul.f32 %v553, %v553
  %v659 = vmul.f32 %v554, %v554
  %v660 = vmul.f32 %v555, %v555
  %v661 = vmul.f32 %v556, %v556
  %v662 = vmul.f32 %v557, %v557
  %v663 = vmul.f32 %v558, %v558
  %v664 = vmul.f32 %v559, %v559
  %v665 = vmul.f32 %v560, %v560
  %v666 = vmul.f32 %v561, %v561
  %v667 = vmul.f32 %v562, %v562
  %v668 = vmul.f32 %v563, %v563
  %v669 = vmul.f32 %v564, %v564
  %v670 = vmul.f32 %v565, %v565
  %v671 = vmul.f32 %v566, %v566
  %v672 = vmul.f32 %v567, %v567
  %v673 = vmul.f32 %v568, %v568
  %v674 = vmul.f32 %v569, %v569
  %v675 = vmul.f32 %v570, %v570
  %v676 = vmul.f32 %v571, %v571
  %v677 = vmul.f32 %v572, %v572
  %v678 = vmul.f32 %v573, %v573
  %v679 = vadd.f32 %v631, %v632
  %v680 = vadd.f32 %v679, %v633
  %v681 = vadd.f32 %v680, %v634
  %v682 = vadd.f32 %v681, %v635
  %v683 = vadd.f32 %v682, %v636
  %v684 = vadd.f32 %v683, %v637
  %v685 = vadd.f32 %v684, %v638
  %v686 = vadd.f32 %v685, %v639
  %v687 = vadd.f32 %v686, %v640
  %v688 = vadd.f32 %v687, %v641
  %v689 = vadd.f32 %v688, %v642
  %v690 = vadd.f32 %v689, %v643
  %v691 = vadd.f32 %v690, %v644
  %v692 = vadd.f32 %v691, %v645
  %v693 = vadd.f32 %v692, %v646
  %v694 = vadd.f32 %v693, %v647
  %v695 = vadd.f32 %v694, %v648
  %v696 = vadd.f32 %v695, %v649
  %v697 = vadd.f32 %v696, %v650
  %v698 = vadd.f32 %v697, %v651
  %v699 = vadd.f32 %v698, %v652
  %v700 = vadd.f32 %v699, %v653
  %v701 = vadd.f32 %v700, %v654
  %v702 = vadd.f32 %v701, %v655
  %v703 = vadd.f32 %v702, %v656
  %v704 = vadd.f32 %v703, %v657
  %v705 = vadd.f32 %v704, %v658
  %v706 = vadd.f32 %v705, %v659
  %v707 = vadd.f32 %v706, %v660
  %v708 = vadd.f32 %v707, %v661
  %v709 = vadd.f32 %v708, %v662
  %v710 = vadd.f32 %v709, %v663
  %v711 = vadd.f32 %v710, %v664
  %v712 = vadd.f32 %v711, %v665
  %v713 = vadd.f32 %v712, %v666
  %v714 = vadd.f32 %v713, %v667
  %v715 = vadd.f32 %v714, %v668
  %v716 = vadd.f32 %v715, %v669
  %v717 = vadd.f32 %v716, %v670
  %v718 = vadd.f32 %v717, %v671
  %v719 = vadd.f32 %v718, %v672
  %v720 = vadd.f32 %v719, %v673
  %v721 = vadd.f32 %v720, %v674
  %v722 = vadd.f32 %v721, %v675
  %v723 = vadd.f32 %v722, %v676
  %v724 = vadd.f32 %v723, %v677
  %v725 = vadd.f32 %v724, %v678
  %v726 = vrot.slane %v725, 4
  %v727 = vadd.f32 %v725, %v726
  %v728 = vrot.slane %v727, 2
  %v729 = vadd.f32 %v727, %v728
  %v730 = vrot.slane %v729, 1
  %v731 = vadd.f32 %v729, %v730
  %v732 = vadd.f32 %v630, %v731
  %733 = vst [vmem:[%s3] sm:$0x1] %v732
  // Predicated region
  $region14: #{batch_rnn_forward.2} parent=0 // pred_check
    _
  $region15: #{batch_rnn_forward.2} parent=0 // pred_check_branch
    %735 = sbr.rel (0) target = $region17
  $region16: #{batch_rnn_forward.2} parent=0 // pred_region
    _
  $region17: #{batch_rnn_forward.2} parent=0 // pred_fallthru
    _
  // Predicated region
  $region18: #{batch_rnn_forward.2} parent=0 // pred_check
    _
  $region19: #{batch_rnn_forward.2} parent=0 // pred_check_branch
    %737 = sbr.rel (0) target = $region21
  $region20: #{batch_rnn_forward.2} parent=0 // pred_region
    _
  $region21: #{batch_rnn_forward.2} parent=0 // pred_fallthru
    _
  // Predicated region
  $region22: #{batch_rnn_forward.2} parent=0 // pred_check
    _
  $region23: #{batch_rnn_forward.2} parent=0 // pred_check_branch
    %739 = sbr.rel (0) target = $region25
  $region24: #{batch_rnn_forward.2} parent=0 // pred_region
    _
  $region25: #{batch_rnn_forward.2} parent=0 // pred_fallthru
    _
  // Predicated region
  $region26: #{batch_rnn_forward.2} parent=0 // pred_check
    _
  $region27: #{batch_rnn_forward.2} parent=0 // pred_check_branch
    %741 = sbr.rel (0) target = $region29
  $region28: #{batch_rnn_forward.2} parent=0 // pred_region
    _
  $region29: #{batch_rnn_forward.2} parent=0 // pred_fallthru
    _

// kernel: batch_rnn_forward.3
$region0: #{batch_rnn_forward.3}
  #allocation0 [shape = 'u32[]', space=smem, size = 0x4, offset = 0x4, fixed_abs, tag = 'smem constant byte address 0x4 - core index']
  #allocation1 [shape = 'u32[72,128]{1,0:T(1,128)}', space=vmem, size = 0x9000, scoped, tag = 'internal scratch']
  #allocation2 [shape = 'f32[24,16,512]{2,1,0:T(8,128)}', space=vmem, size = 0xc0000, scoped, tag = 'scratch operand']
  #allocation3 [shape = 'f32[16,128]{1,0:T(8,128)}', space=vmem, size = 0x2000, scoped, tag = 'scratch operand']
  #allocation4 [shape = 'f32[16,128]{1,0:T(8,128)}', space=vmem, size = 0x2000, scoped, tag = 'scratch operand']
  %s0 = inlined_call_operand.vmem [shape: s32[16,1], index: 0, kind: input, shape index: {}]
  %s1 = inlined_call_operand.vmem [shape: bf16[24,16,128], index: 1, kind: input, shape index: {}]
  %s2 = inlined_call_operand.vmem [shape: bf16[128,512], index: 2, kind: input, shape index: {}]
  %s3 = inlined_call_operand.vmem [shape: bf16[128,512], index: 3, kind: input, shape index: {}]
  %s4 = inlined_call_operand.vmem [shape: f32[1,512], index: 4, kind: input, shape index: {}]
  %s5 = inlined_call_operand.vmem [shape: f32[24,16,128], index: 5, kind: output, shape index: {}]
  %s6 = sld [smem:[#allocation0]]
  $region41: #{batch_rnn_forward.3} parent=0
    _
  %s8 = ssub.s32 1, %s6
  %s9 = scalar_select 0, %s8, %s6
  // Predicated region
  $region2: #{batch_rnn_forward.3} parent=0 // pred_check
    _
  $region3: #{batch_rnn_forward.3} parent=0 // pred_check_branch
    %11 = sbr.rel (0) target = $region5
  $region4: #{batch_rnn_forward.3} parent=0 // pred_region
    _
  $region5: #{batch_rnn_forward.3} parent=0 // pred_fallthru
    _
  // Predicated region
  $region6: #{batch_rnn_forward.3} parent=0 // pred_check
    _
  $region7: #{batch_rnn_forward.3} parent=0 // pred_check_branch
    %13 = sbr.rel (0) target = $region9
  $region8: #{batch_rnn_forward.3} parent=0 // pred_region
    _
  $region9: #{batch_rnn_forward.3} parent=0 // pred_fallthru
    _
  // Predicated region
  $region10: #{batch_rnn_forward.3} parent=0 // pred_check
    _
  $region11: #{batch_rnn_forward.3} parent=0 // pred_check_branch
    %15 = sbr.rel (0) target = $region13
  $region12: #{batch_rnn_forward.3} parent=0 // pred_region
    _
  $region13: #{batch_rnn_forward.3} parent=0 // pred_fallthru
    _
  // Predicated region
  $region14: #{batch_rnn_forward.3} parent=0 // pred_check
    _
  $region15: #{batch_rnn_forward.3} parent=0 // pred_check_branch
    %17 = sbr.rel (0) target = $region17
  $region16: #{batch_rnn_forward.3} parent=0 // pred_region
    _
  $region17: #{batch_rnn_forward.3} parent=0 // pred_fallthru
    _
  // Predicated region
  $region18: #{batch_rnn_forward.3} parent=0 // pred_check
    _
  $region19: #{batch_rnn_forward.3} parent=0 // pred_check_branch
    %19 = sbr.rel (0) target = $region21
  $region20: #{batch_rnn_forward.3} parent=0 // pred_region
    _
  $region21: #{batch_rnn_forward.3} parent=0 // pred_fallthru
    _
  %p20 = scmp.eq.s32.totalorder 0, 0
  // Predicated region
  $region22: #{batch_rnn_forward.3} parent=0 // pred_check
    %p21 = pneg %p20
  $region23: #{batch_rnn_forward.3} parent=0 // pred_check_branch
    %23 = sbr.rel (%p21) target = $region25
  $region24: #{batch_rnn_forward.3} parent=0 // pred_region
    %24 = vst [vmem:[#allocation3] sm:$0xff] 0.0
    %25 = vst [vmem:[#allocation3 + $0x8] sm:$0xff] 0.0
    %26 = vst [vmem:[#allocation4] sm:$0xff] 0.0
    %27 = vst [vmem:[#allocation4 + $0x8] sm:$0xff] 0.0
  $region25: #{batch_rnn_forward.3} parent=0 // pred_fallthru
    _
  %v28 = vld [vmem:[%s1] sm:$0xf]
  %v29 = vld [vmem:[%s1 + $0x4] sm:$0xf]
  %v30 = vld [vmem:[%s1 + $0x8] sm:$0xf]
  %v31 = vld [vmem:[%s1 + $0xc] sm:$0xf]
  %v32 = vld [vmem:[%s1 + $0x10] sm:$0xf]
  %v33 = vld [vmem:[%s1 + $0x14] sm:$0xf]
  %v34 = vld [vmem:[%s1 + $0x18] sm:$0xf]
  %v35 = vld [vmem:[%s1 + $0x1c] sm:$0xf]
  %v36 = vld [vmem:[%s1 + $0x20] sm:$0xf]
  %v37 = vld [vmem:[%s1 + $0x24] sm:$0xf]
  %v38 = vld [vmem:[%s1 + $0x28] sm:$0xf]
  %v39 = vld [vmem:[%s1 + $0x2c] sm:$0xf]
  %v40 = vld [vmem:[%s1 + $0x30] sm:$0xf]
  %v41 = vld [vmem:[%s1 + $0x34] sm:$0xf]
  %v42 = vld [vmem:[%s1 + $0x38] sm:$0xf]
  %v43 = vld [vmem:[%s1 + $0x3c] sm:$0xf]
  %v44 = vld [vmem:[%s1 + $0x40] sm:$0xf]
  %v45 = vld [vmem:[%s1 + $0x44] sm:$0xf]
  %v46 = vld [vmem:[%s1 + $0x48] sm:$0xf]
  %v47 = vld [vmem:[%s1 + $0x4c] sm:$0xf]
  %v48 = vld [vmem:[%s1 + $0x50] sm:$0xf]
  %v49 = vld [vmem:[%s1 + $0x54] sm:$0xf]
  %v50 = vld [vmem:[%s1 + $0x58] sm:$0xf]
  %v51 = vld [vmem:[%s1 + $0x5c] sm:$0xf]
  %v52 = vld [vmem:[%s1 + $0x60] sm:$0xf]
  %v53 = vld [vmem:[%s1 + $0x64] sm:$0xf]
  %v54 = vld [vmem:[%s1 + $0x68] sm:$0xf]
  %v55 = vld [vmem:[%s1 + $0x6c] sm:$0xf]
  %v56 = vld [vmem:[%s1 + $0x70] sm:$0xf]
  %v57 = vld [vmem:[%s1 + $0x74] sm:$0xf]
  %v58 = vld [vmem:[%s1 + $0x78] sm:$0xf]
  %v59 = vld [vmem:[%s1 + $0x7c] sm:$0xf]
  %v60 = vld [vmem:[%s1 + $0x80] sm:$0xf]
  %v61 = vld [vmem:[%s1 + $0x84] sm:$0xf]
  %v62 = vld [vmem:[%s1 + $0x88] sm:$0xf]
  %v63 = vld [vmem:[%s1 + $0x8c] sm:$0xf]
  %v64 = vld [vmem:[%s1 + $0x90] sm:$0xf]
  %v65 = vld [vmem:[%s1 + $0x94] sm:$0xf]
  %v66 = vld [vmem:[%s1 + $0x98] sm:$0xf]
  %v67 = vld [vmem:[%s1 + $0x9c] sm:$0xf]
  %v68 = vld [vmem:[%s1 + $0xa0] sm:$0xf]
  %v69 = vld [vmem:[%s1 + $0xa4] sm:$0xf]
  %v70 = vld [vmem:[%s1 + $0xa8] sm:$0xf]
  %v71 = vld [vmem:[%s1 + $0xac] sm:$0xf]
  %v72 = vld [vmem:[%s1 + $0xb0] sm:$0xf]
  %v73 = vld [vmem:[%s1 + $0xb4] sm:$0xf]
  %v74 = vld [vmem:[%s1 + $0xb8] sm:$0xf]
  %v75 = vld [vmem:[%s1 + $0xbc] sm:$0xf]
  %v76 = vld [vmem:[%s2] sm:$0xff]
  %v77 = vld [vmem:[%s2 + $0x8] sm:$0xff]
  %v78 = vld [vmem:[%s2 + $0x10] sm:$0xff]
  %v79 = vld [vmem:[%s2 + $0x18] sm:$0xff]
  %v80 = vld [vmem:[%s2 + $0x20] sm:$0xff]
  %v81 = vld [vmem:[%s2 + $0x28] sm:$0xff]
  %v82 = vld [vmem:[%s2 + $0x30] sm:$0xff]
  %v83 = vld [vmem:[%s2 + $0x38] sm:$0xff]
  %v84 = vld [vmem:[%s2 + $0x40] sm:$0xff]
  %v85 = vld [vmem:[%s2 + $0x48] sm:$0xff]
  %v86 = vld [vmem:[%s2 + $0x50] sm:$0xff]
  %v87 = vld [vmem:[%s2 + $0x58] sm:$0xff]
  %v88 = vld [vmem:[%s2 + $0x60] sm:$0xff]
  %v89 = vld [vmem:[%s2 + $0x68] sm:$0xff]
  %v90 = vld [vmem:[%s2 + $0x70] sm:$0xff]
  %v91 = vld [vmem:[%s2 + $0x78] sm:$0xff]
  %v92 = vld [vmem:[%s2 + $0x80] sm:$0xff]
  %v93 = vld [vmem:[%s2 + $0x88] sm:$0xff]
  %v94 = vld [vmem:[%s2 + $0x90] sm:$0xff]
  %v95 = vld [vmem:[%s2 + $0x98] sm:$0xff]
  %v96 = vld [vmem:[%s2 + $0xa0] sm:$0xff]
  %v97 = vld [vmem:[%s2 + $0xa8] sm:$0xff]
  %v98 = vld [vmem:[%s2 + $0xb0] sm:$0xff]
  %v99 = vld [vmem:[%s2 + $0xb8] sm:$0xff]
  %v100 = vld [vmem:[%s2 + $0xc0] sm:$0xff]
  %v101 = vld [vmem:[%s2 + $0xc8] sm:$0xff]
  %v102 = vld [vmem:[%s2 + $0xd0] sm:$0xff]
  %v103 = vld [vmem:[%s2 + $0xd8] sm:$0xff]
  %v104 = vld [vmem:[%s2 + $0xe0] sm:$0xff]
  %v105 = vld [vmem:[%s2 + $0xe8] sm:$0xff]
  %v106 = vld [vmem:[%s2 + $0xf0] sm:$0xff]
  %v107 = vld [vmem:[%s2 + $0xf8] sm:$0xff]
  %v108 = vld [vmem:[%s4] sm:$0xf]
  %v110 = vperm.slane %v108, 0
  %v111 = vperm.slane %v108, 1
  %v112 = vperm.slane %v108, 2
  %v113 = vperm.slane %v108, 3
  %v166 = vunpack.c.l.b16 %v28
  %v167 = vunpack.c.l.b16 %v29
  %v168 = vunpack.c.l.b16 %v30
  %v169 = vunpack.c.l.b16 %v31
  %v170 = vunpack.c.l.b16 %v32
  %v171 = vunpack.c.l.b16 %v33
  %v172 = vunpack.c.l.b16 %v34
  %v173 = vunpack.c.l.b16 %v35
  %v174 = vunpack.c.l.b16 %v36
  %v175 = vunpack.c.l.b16 %v37
  %v176 = vunpack.c.l.b16 %v38
  %v177 = vunpack.c.l.b16 %v39
  %v178 = vunpack.c.l.b16 %v40
  %v179 = vunpack.c.l.b16 %v41
  %v180 = vunpack.c.l.b16 %v42
  %v181 = vunpack.c.l.b16 %v43
  %v182 = vunpack.c.l.b16 %v44
  %v183 = vunpack.c.l.b16 %v45
  %v184 = vunpack.c.l.b16 %v46
  %v185 = vunpack.c.l.b16 %v47
  %v186 = vunpack.c.l.b16 %v48
  %v187 = vunpack.c.l.b16 %v49
  %v188 = vunpack.c.l.b16 %v50
  %v189 = vunpack.c.l.b16 %v51
  %v190 = vunpack.c.l.b16 %v52
  %v191 = vunpack.c.l.b16 %v53
  %v192 = vunpack.c.l.b16 %v54
  %v193 = vunpack.c.l.b16 %v55
  %v194 = vunpack.c.l.b16 %v56
  %v195 = vunpack.c.l.b16 %v57
  %v196 = vunpack.c.l.b16 %v58
  %v197 = vunpack.c.l.b16 %v59
  %v198 = vunpack.c.l.b16 %v60
  %v199 = vunpack.c.l.b16 %v61
  %v200 = vunpack.c.l.b16 %v62
  %v201 = vunpack.c.l.b16 %v63
  %v202 = vunpack.c.l.b16 %v64
  %v203 = vunpack.c.l.b16 %v65
  %v204 = vunpack.c.l.b16 %v66
  %v205 = vunpack.c.l.b16 %v67
  %v206 = vunpack.c.l.b16 %v68
  %v207 = vunpack.c.l.b16 %v69
  %v208 = vunpack.c.l.b16 %v70
  %v209 = vunpack.c.l.b16 %v71
  %v210 = vunpack.c.l.b16 %v72
  %v211 = vunpack.c.l.b16 %v73
  %v212 = vunpack.c.l.b16 %v74
  %v213 = vunpack.c.l.b16 %v75
  %v214 = vpack.c.b16 %v167, %v166
  %v215 = vpack.c.b16 %v169, %v168
  %v216 = vpack.c.b16 %v171, %v170
  %v217 = vpack.c.b16 %v173, %v172
  %v218 = vpack.c.b16 %v175, %v174
  %v219 = vpack.c.b16 %v177, %v176
  %v220 = vpack.c.b16 %v179, %v178
  %v221 = vpack.c.b16 %v181, %v180
  %v222 = vpack.c.b16 %v183, %v182
  %v223 = vpack.c.b16 %v185, %v184
  %v224 = vpack.c.b16 %v187, %v186
  %v225 = vpack.c.b16 %v189, %v188
  %v226 = vpack.c.b16 %v191, %v190
  %v227 = vpack.c.b16 %v193, %v192
  %v228 = vpack.c.b16 %v195, %v194
  %v229 = vpack.c.b16 %v197, %v196
  %v230 = vpack.c.b16 %v199, %v198
  %v231 = vpack.c.b16 %v201, %v200
  %v232 = vpack.c.b16 %v203, %v202
  %v233 = vpack.c.b16 %v205, %v204
  %v234 = vpack.c.b16 %v207, %v206
  %v235 = vpack.c.b16 %v209, %v208
  %v236 = vpack.c.b16 %v211, %v210
  %v237 = vpack.c.b16 %v213, %v212
  %v294 = vunpack.c.l.b16 %v76
  %v295 = vunpack.c.h.b16 %v76
  %v296 = vunpack.c.l.b16 %v77
  %v297 = vunpack.c.h.b16 %v77
  %v298 = vunpack.c.l.b16 %v78
  %v299 = vunpack.c.h.b16 %v78
  %v300 = vunpack.c.l.b16 %v79
  %v301 = vunpack.c.h.b16 %v79
  %v302 = vunpack.c.l.b16 %v80
  %v303 = vunpack.c.h.b16 %v80
  %v304 = vunpack.c.l.b16 %v81
  %v305 = vunpack.c.h.b16 %v81
  %v306 = vunpack.c.l.b16 %v82
  %v307 = vunpack.c.h.b16 %v82
  %v308 = vunpack.c.l.b16 %v83
  %v309 = vunpack.c.h.b16 %v83
  %v310 = vunpack.c.l.b16 %v84
  %v311 = vunpack.c.h.b16 %v84
  %v312 = vunpack.c.l.b16 %v85
  %v313 = vunpack.c.h.b16 %v85
  %v314 = vunpack.c.l.b16 %v86
  %v315 = vunpack.c.h.b16 %v86
  %v316 = vunpack.c.l.b16 %v87
  %v317 = vunpack.c.h.b16 %v87
  %v318 = vunpack.c.l.b16 %v88
  %v319 = vunpack.c.h.b16 %v88
  %v320 = vunpack.c.l.b16 %v89
  %v321 = vunpack.c.h.b16 %v89
  %v322 = vunpack.c.l.b16 %v90
  %v323 = vunpack.c.h.b16 %v90
  %v324 = vunpack.c.l.b16 %v91
  %v325 = vunpack.c.h.b16 %v91
  %v326 = vunpack.c.l.b16 %v92
  %v327 = vunpack.c.h.b16 %v92
  %v328 = vunpack.c.l.b16 %v93
  %v329 = vunpack.c.h.b16 %v93
  %v330 = vunpack.c.l.b16 %v94
  %v331 = vunpack.c.h.b16 %v94
  %v332 = vunpack.c.l.b16 %v95
  %v333 = vunpack.c.h.b16 %v95
  %v334 = vunpack.c.l.b16 %v96
  %v335 = vunpack.c.h.b16 %v96
  %v336 = vunpack.c.l.b16 %v97
  %v337 = vunpack.c.h.b16 %v97
  %v338 = vunpack.c.l.b16 %v98
  %v339 = vunpack.c.h.b16 %v98
  %v340 = vunpack.c.l.b16 %v99
  %v341 = vunpack.c.h.b16 %v99
  %v342 = vunpack.c.l.b16 %v100
  %v343 = vunpack.c.h.b16 %v100
  %v344 = vunpack.c.l.b16 %v101
  %v345 = vunpack.c.h.b16 %v101
  %v346 = vunpack.c.l.b16 %v102
  %v347 = vunpack.c.h.b16 %v102
  %v348 = vunpack.c.l.b16 %v103
  %v349 = vunpack.c.h.b16 %v103
  %v350 = vunpack.c.l.b16 %v104
  %v351 = vunpack.c.h.b16 %v104
  %v352 = vunpack.c.l.b16 %v105
  %v353 = vunpack.c.h.b16 %v105
  %v354 = vunpack.c.l.b16 %v106
  %v355 = vunpack.c.h.b16 %v106
  %v356 = vunpack.c.l.b16 %v107
  %v357 = vunpack.c.h.b16 %v107
  %v358 = vpack.c.b16 %v298, %v294
  %v359 = vpack.c.b16 %v299, %v295
  %v360 = vpack.c.b16 %v300, %v296
  %v361 = vpack.c.b16 %v301, %v297
  %v362 = vpack.c.b16 %v306, %v302
  %v363 = vpack.c.b16 %v307, %v303
  %v364 = vpack.c.b16 %v308, %v304
  %v365 = vpack.c.b16 %v309, %v305
  %v366 = vpack.c.b16 %v314, %v310
  %v367 = vpack.c.b16 %v315, %v311
  %v368 = vpack.c.b16 %v316, %v312
  %v369 = vpack.c.b16 %v317, %v313
  %v370 = vpack.c.b16 %v322, %v318
  %v371 = vpack.c.b16 %v323, %v319
  %v372 = vpack.c.b16 %v324, %v320
  %v373 = vpack.c.b16 %v325, %v321
  %v374 = vpack.c.b16 %v330, %v326
  %v375 = vpack.c.b16 %v331, %v327
  %v376 = vpack.c.b16 %v332, %v328
  %v377 = vpack.c.b16 %v333, %v329
  %v378 = vpack.c.b16 %v338, %v334
  %v379 = vpack.c.b16 %v339, %v335
  %v380 = vpack.c.b16 %v340, %v336
  %v381 = vpack.c.b16 %v341, %v337
  %v382 = vpack.c.b16 %v346, %v342
  %v383 = vpack.c.b16 %v347, %v343
  %v384 = vpack.c.b16 %v348, %v344
  %v385 = vpack.c.b16 %v349, %v345
  %v386 = vpack.c.b16 %v354, %v350
  %v387 = vpack.c.b16 %v355, %v351
  %v388 = vpack.c.b16 %v356, %v352
  %v389 = vpack.c.b16 %v357, %v353
  %422 = vmatpush.bf16.msra.mxu0 %v386
  %423 = vmatpush.bf16.msra.mxu0 %v382
  %424 = vmatpush.bf16.msra.mxu0 %v378
  %425 = vmatpush.bf16.msra.mxu0 %v374
  %426 = vmatpush.bf16.msra.mxu0 %v370
  %427 = vmatpush.bf16.msra.mxu0 %v366
  %428 = vmatpush.bf16.msra.mxu0 %v362
  %429 = vmatpush.bf16.msra.mxu0 %v358
  %430 = vmatmul.bf16.gmra.mxu0 %v214
  %v431 = vpop.f32.mrf.mxu0
  %v432 = vadd.f32 %v110, %v431
  %v433 = vpop.f32.mrf.mxu0
  %v434 = vadd.f32 %v110, %v433
  %435 = vmatmul.bf16.gmra.mxu0 %v215
  %v436 = vpop.f32.mrf.mxu0
  %v437 = vadd.f32 %v110, %v436
  %v438 = vpop.f32.mrf.mxu0
  %v439 = vadd.f32 %v110, %v438
  %440 = vmatmul.bf16.gmra.mxu0 %v216
  %v441 = vpop.f32.mrf.mxu0
  %v442 = vadd.f32 %v110, %v441
  %v443 = vpop.f32.mrf.mxu0
  %v444 = vadd.f32 %v110, %v443
  %445 = vmatmul.bf16.gmra.mxu0 %v217
  %v446 = vpop.f32.mrf.mxu0
  %v447 = vadd.f32 %v110, %v446
  %v448 = vpop.f32.mrf.mxu0
  %v449 = vadd.f32 %v110, %v448
  %450 = vmatmul.bf16.gmra.mxu0 %v218
  %v451 = vpop.f32.mrf.mxu0
  %v452 = vadd.f32 %v110, %v451
  %v453 = vpop.f32.mrf.mxu0
  %v454 = vadd.f32 %v110, %v453
  %455 = vmatmul.bf16.gmra.mxu0 %v219
  %v456 = vpop.f32.mrf.mxu0
  %v457 = vadd.f32 %v110, %v456
  %v458 = vpop.f32.mrf.mxu0
  %v459 = vadd.f32 %v110, %v458
  %460 = vmatmul.bf16.gmra.mxu0 %v220
  %v461 = vpop.f32.mrf.mxu0
  %v462 = vadd.f32 %v110, %v461
  %v463 = vpop.f32.mrf.mxu0
  %v464 = vadd.f32 %v110, %v463
  %465 = vmatmul.bf16.gmra.mxu0 %v221
  %v466 = vpop.f32.mrf.mxu0
  %v467 = vadd.f32 %v110, %v466
  %v468 = vpop.f32.mrf.mxu0
  %v469 = vadd.f32 %v110, %v468
  %470 = vmatmul.bf16.gmra.mxu0 %v222
  %v471 = vpop.f32.mrf.mxu0
  %v472 = vadd.f32 %v110, %v471
  %v473 = vpop.f32.mrf.mxu0
  %v474 = vadd.f32 %v110, %v473
  %475 = vmatmul.bf16.gmra.mxu0 %v223
  %v476 = vpop.f32.mrf.mxu0
  %v477 = vadd.f32 %v110, %v476
  %v478 = vpop.f32.mrf.mxu0
  %v479 = vadd.f32 %v110, %v478
  %480 = vmatmul.bf16.gmra.mxu0 %v224
  %v481 = vpop.f32.mrf.mxu0
  %v482 = vadd.f32 %v110, %v481
  %v483 = vpop.f32.mrf.mxu0
  %v484 = vadd.f32 %v110, %v483
  %485 = vmatmul.bf16.gmra.mxu0 %v225
  %v486 = vpop.f32.mrf.mxu0
  %v487 = vadd.f32 %v110, %v486
  %v488 = vpop.f32.mrf.mxu0
  %v489 = vadd.f32 %v110, %v488
  %490 = vmatmul.bf16.gmra.mxu0 %v226
  %v491 = vpop.f32.mrf.mxu0
  %v492 = vadd.f32 %v110, %v491
  %v493 = vpop.f32.mrf.mxu0
  %v494 = vadd.f32 %v110, %v493
  %495 = vmatmul.bf16.gmra.mxu0 %v227
  %v496 = vpop.f32.mrf.mxu0
  %v497 = vadd.f32 %v110, %v496
  %v498 = vpop.f32.mrf.mxu0
  %v499 = vadd.f32 %v110, %v498
  %500 = vmatmul.bf16.gmra.mxu0 %v228
  %v501 = vpop.f32.mrf.mxu0
  %v502 = vadd.f32 %v110, %v501
  %v503 = vpop.f32.mrf.mxu0
  %v504 = vadd.f32 %v110, %v503
  %505 = vmatmul.bf16.gmra.mxu0 %v229
  %v506 = vpop.f32.mrf.mxu0
  %v507 = vadd.f32 %v110, %v506
  %v508 = vpop.f32.mrf.mxu0
  %v509 = vadd.f32 %v110, %v508
  %510 = vmatmul.bf16.gmra.mxu0 %v230
  %v511 = vpop.f32.mrf.mxu0
  %v512 = vadd.f32 %v110, %v511
  %v513 = vpop.f32.mrf.mxu0
  %v514 = vadd.f32 %v110, %v513
  %515 = vmatmul.bf16.gmra.mxu0 %v231
  %v516 = vpop.f32.mrf.mxu0
  %v517 = vadd.f32 %v110, %v516
  %v518 = vpop.f32.mrf.mxu0
  %v519 = vadd.f32 %v110, %v518
  %520 = vmatmul.bf16.gmra.mxu0 %v232
  %v521 = vpop.f32.mrf.mxu0
  %v522 = vadd.f32 %v110, %v521
  %v523 = vpop.f32.mrf.mxu0
  %v524 = vadd.f32 %v110, %v523
  %525 = vmatmul.bf16.gmra.mxu0 %v233
  %v526 = vpop.f32.mrf.mxu0
  %v527 = vadd.f32 %v110, %v526
  %v528 = vpop.f32.mrf.mxu0
  %v529 = vadd.f32 %v110, %v528
  %530 = vmatmul.bf16.gmra.mxu0 %v234
  %v531 = vpop.f32.mrf.mxu0
  %v532 = vadd.f32 %v110, %v531
  %v533 = vpop.f32.mrf.mxu0
  %v534 = vadd.f32 %v110, %v533
  %535 = vmatmul.bf16.gmra.mxu0 %v235
  %v536 = vpop.f32.mrf.mxu0
  %v537 = vadd.f32 %v110, %v536
  %v538 = vpop.f32.mrf.mxu0
  %v539 = vadd.f32 %v110, %v538
  %540 = vmatmul.bf16.gmra.mxu0 %v236
  %v541 = vpop.f32.mrf.mxu0
  %v542 = vadd.f32 %v110, %v541
  %v543 = vpop.f32.mrf.mxu0
  %v544 = vadd.f32 %v110, %v543
  %545 = vmatmul.bf16.gmra.mxu0 %v237
  %v546 = vpop.f32.mrf.mxu0
  %v547 = vadd.f32 %v110, %v546
  %v548 = vpop.f32.mrf.mxu0
  %v549 = vadd.f32 %v110, %v548
  %550 = vdwg.mxu0
  %551 = vmatpush.bf16.msra.mxu0 %v387
  %552 = vmatpush.bf16.msra.mxu0 %v383
  %553 = vmatpush.bf16.msra.mxu0 %v379
  %554 = vmatpush.bf16.msra.mxu0 %v375
  %555 = vmatpush.bf16.msra.mxu0 %v371
  %556 = vmatpush.bf16.msra.mxu0 %v367
  %557 = vmatpush.bf16.msra.mxu0 %v363
  %558 = vmatpush.bf16.msra.mxu0 %v359
  %559 = vmatmul.bf16.gmra.mxu0 %v214
  %v560 = vpop.f32.mrf.mxu0
  %v561 = vadd.f32 %v111, %v560
  %v562 = vpop.f32.mrf.mxu0
  %v563 = vadd.f32 %v111, %v562
  %564 = vmatmul.bf16.gmra.mxu0 %v215
  %v565 = vpop.f32.mrf.mxu0
  %v566 = vadd.f32 %v111, %v565
  %v567 = vpop.f32.mrf.mxu0
  %v568 = vadd.f32 %v111, %v567
  %569 = vmatmul.bf16.gmra.mxu0 %v216
  %v570 = vpop.f32.mrf.mxu0
  %v571 = vadd.f32 %v111, %v570
  %v572 = vpop.f32.mrf.mxu0
  %v573 = vadd.f32 %v111, %v572
  %574 = vmatmul.bf16.gmra.mxu0 %v217
  %v575 = vpop.f32.mrf.mxu0
  %v576 = vadd.f32 %v111, %v575
  %v577 = vpop.f32.mrf.mxu0
  %v578 = vadd.f32 %v111, %v577
  %579 = vmatmul.bf16.gmra.mxu0 %v218
  %v580 = vpop.f32.mrf.mxu0
  %v581 = vadd.f32 %v111, %v580
  %v582 = vpop.f32.mrf.mxu0
  %v583 = vadd.f32 %v111, %v582
  %584 = vmatmul.bf16.gmra.mxu0 %v219
  %v585 = vpop.f32.mrf.mxu0
  %v586 = vadd.f32 %v111, %v585
  %v587 = vpop.f32.mrf.mxu0
  %v588 = vadd.f32 %v111, %v587
  %589 = vmatmul.bf16.gmra.mxu0 %v220
  %v590 = vpop.f32.mrf.mxu0
  %v591 = vadd.f32 %v111, %v590
  %v592 = vpop.f32.mrf.mxu0
  %v593 = vadd.f32 %v111, %v592
  %594 = vmatmul.bf16.gmra.mxu0 %v221
  %v595 = vpop.f32.mrf.mxu0
  %v596 = vadd.f32 %v111, %v595
  %v597 = vpop.f32.mrf.mxu0
  %v598 = vadd.f32 %v111, %v597
  %599 = vmatmul.bf16.gmra.mxu0 %v222
  %v600 = vpop.f32.mrf.mxu0
  %v601 = vadd.f32 %v111, %v600
  %v602 = vpop.f32.mrf.mxu0
  %v603 = vadd.f32 %v111, %v602
  %604 = vmatmul.bf16.gmra.mxu0 %v223
  %v605 = vpop.f32.mrf.mxu0
  %v606 = vadd.f32 %v111, %v605
  %v607 = vpop.f32.mrf.mxu0
  %v608 = vadd.f32 %v111, %v607
  %609 = vmatmul.bf16.gmra.mxu0 %v224
  %v610 = vpop.f32.mrf.mxu0
  %v611 = vadd.f32 %v111, %v610
  %v612 = vpop.f32.mrf.mxu0
  %v613 = vadd.f32 %v111, %v612
  %614 = vmatmul.bf16.gmra.mxu0 %v225
  %v615 = vpop.f32.mrf.mxu0
  %v616 = vadd.f32 %v111, %v615
  %v617 = vpop.f32.mrf.mxu0
  %v618 = vadd.f32 %v111, %v617
  %619 = vmatmul.bf16.gmra.mxu0 %v226
  %v620 = vpop.f32.mrf.mxu0
  %v621 = vadd.f32 %v111, %v620
  %v622 = vpop.f32.mrf.mxu0
  %v623 = vadd.f32 %v111, %v622
  %624 = vmatmul.bf16.gmra.mxu0 %v227
  %v625 = vpop.f32.mrf.mxu0
  %v626 = vadd.f32 %v111, %v625
  %v627 = vpop.f32.mrf.mxu0
  %v628 = vadd.f32 %v111, %v627
  %629 = vmatmul.bf16.gmra.mxu0 %v228
  %v630 = vpop.f32.mrf.mxu0
  %v631 = vadd.f32 %v111, %v630
  %v632 = vpop.f32.mrf.mxu0
  %v633 = vadd.f32 %v111, %v632
  %634 = vmatmul.bf16.gmra.mxu0 %v229
  %v635 = vpop.f32.mrf.mxu0
  %v636 = vadd.f32 %v111, %v635
  %v637 = vpop.f32.mrf.mxu0
  %v638 = vadd.f32 %v111, %v637
  %639 = vmatmul.bf16.gmra.mxu0 %v230
  %v640 = vpop.f32.mrf.mxu0
  %v641 = vadd.f32 %v111, %v640
  %v642 = vpop.f32.mrf.mxu0
  %v643 = vadd.f32 %v111, %v642
  %644 = vmatmul.bf16.gmra.mxu0 %v231
  %v645 = vpop.f32.mrf.mxu0
  %v646 = vadd.f32 %v111, %v645
  %v647 = vpop.f32.mrf.mxu0
  %v648 = vadd.f32 %v111, %v647
  %649 = vmatmul.bf16.gmra.mxu0 %v232
  %v650 = vpop.f32.mrf.mxu0
  %v651 = vadd.f32 %v111, %v650
  %v652 = vpop.f32.mrf.mxu0
  %v653 = vadd.f32 %v111, %v652
  %654 = vmatmul.bf16.gmra.mxu0 %v233
  %v655 = vpop.f32.mrf.mxu0
  %v656 = vadd.f32 %v111, %v655
  %v657 = vpop.f32.mrf.mxu0
  %v658 = vadd.f32 %v111, %v657
  %659 = vmatmul.bf16.gmra.mxu0 %v234
  %v660 = vpop.f32.mrf.mxu0
  %v661 = vadd.f32 %v111, %v660
  %v662 = vpop.f32.mrf.mxu0
  %v663 = vadd.f32 %v111, %v662
  %664 = vmatmul.bf16.gmra.mxu0 %v235
  %v665 = vpop.f32.mrf.mxu0
  %v666 = vadd.f32 %v111, %v665
  %v667 = vpop.f32.mrf.mxu0
  %v668 = vadd.f32 %v111, %v667
  %669 = vmatmul.bf16.gmra.mxu0 %v236
  %v670 = vpop.f32.mrf.mxu0
  %v671 = vadd.f32 %v111, %v670
  %v672 = vpop.f32.mrf.mxu0
  %v673 = vadd.f32 %v111, %v672
  %674 = vmatmul.bf16.gmra.mxu0 %v237
  %v675 = vpop.f32.mrf.mxu0
  %v676 = vadd.f32 %v111, %v675
  %v677 = vpop.f32.mrf.mxu0
  %v678 = vadd.f32 %v111, %v677
  %679 = vdwg.mxu0
  %680 = vmatpush.bf16.msra.mxu0 %v388
  %681 = vmatpush.bf16.msra.mxu0 %v384
  %682 = vmatpush.bf16.msra.mxu0 %v380
  %683 = vmatpush.bf16.msra.mxu0 %v376
  %684 = vmatpush.bf16.msra.mxu0 %v372
  %685 = vmatpush.bf16.msra.mxu0 %v368
  %686 = vmatpush.bf16.msra.mxu0 %v364
  %687 = vmatpush.bf16.msra.mxu0 %v360
  %688 = vmatmul.bf16.gmra.mxu0 %v214
  %v689 = vpop.f32.mrf.mxu0
  %v690 = vadd.f32 %v112, %v689
  %v691 = vpop.f32.mrf.mxu0
  %v692 = vadd.f32 %v112, %v691
  %693 = vmatmul.bf16.gmra.mxu0 %v215
  %v694 = vpop.f32.mrf.mxu0
  %v695 = vadd.f32 %v112, %v694
  %v696 = vpop.f32.mrf.mxu0
  %v697 = vadd.f32 %v112, %v696
  %698 = vmatmul.bf16.gmra.mxu0 %v216
  %v699 = vpop.f32.mrf.mxu0
  %v700 = vadd.f32 %v112, %v699
  %v701 = vpop.f32.mrf.mxu0
  %v702 = vadd.f32 %v112, %v701
  %703 = vmatmul.bf16.gmra.mxu0 %v217
  %v704 = vpop.f32.mrf.mxu0
  %v705 = vadd.f32 %v112, %v704
  %v706 = vpop.f32.mrf.mxu0
  %v707 = vadd.f32 %v112, %v706
  %708 = vmatmul.bf16.gmra.mxu0 %v218
  %v709 = vpop.f32.mrf.mxu0
  %v710 = vadd.f32 %v112, %v709
  %v711 = vpop.f32.mrf.mxu0
  %v712 = vadd.f32 %v112, %v711
  %713 = vmatmul.bf16.gmra.mxu0 %v219
  %v714 = vpop.f32.mrf.mxu0
  %v715 = vadd.f32 %v112, %v714
  %v716 = vpop.f32.mrf.mxu0
  %v717 = vadd.f32 %v112, %v716
  %718 = vmatmul.bf16.gmra.mxu0 %v220
  %v719 = vpop.f32.mrf.mxu0
  %v720 = vadd.f32 %v112, %v719
  %v721 = vpop.f32.mrf.mxu0
  %v722 = vadd.f32 %v112, %v721
  %723 = vmatmul.bf16.gmra.mxu0 %v221
  %v724 = vpop.f32.mrf.mxu0
  %v725 = vadd.f32 %v112, %v724
  %v726 = vpop.f32.mrf.mxu0
  %v727 = vadd.f32 %v112, %v726
  %728 = vmatmul.bf16.gmra.mxu0 %v222
  %v729 = vpop.f32.mrf.mxu0
  %v730 = vadd.f32 %v112, %v729
  %v731 = vpop.f32.mrf.mxu0
  %v732 = vadd.f32 %v112, %v731
  %733 = vmatmul.bf16.gmra.mxu0 %v223
  %v734 = vpop.f32.mrf.mxu0
  %v735 = vadd.f32 %v112, %v734
  %v736 = vpop.f32.mrf.mxu0
  %v737 = vadd.f32 %v112, %v736
  %738 = vmatmul.bf16.gmra.mxu0 %v224
  %v739 = vpop.f32.mrf.mxu0
  %v740 = vadd.f32 %v112, %v739
  %v741 = vpop.f32.mrf.mxu0
  %v742 = vadd.f32 %v112, %v741
  %743 = vmatmul.bf16.gmra.mxu0 %v225
  %v744 = vpop.f32.mrf.mxu0
  %v745 = vadd.f32 %v112, %v744
  %v746 = vpop.f32.mrf.mxu0
  %v747 = vadd.f32 %v112, %v746
  %748 = vmatmul.bf16.gmra.mxu0 %v226
  %v749 = vpop.f32.mrf.mxu0
  %v750 = vadd.f32 %v112, %v749
  %v751 = vpop.f32.mrf.mxu0
  %v752 = vadd.f32 %v112, %v751
  %753 = vmatmul.bf16.gmra.mxu0 %v227
  %v754 = vpop.f32.mrf.mxu0
  %v755 = vadd.f32 %v112, %v754
  %v756 = vpop.f32.mrf.mxu0
  %v757 = vadd.f32 %v112, %v756
  %758 = vmatmul.bf16.gmra.mxu0 %v228
  %v759 = vpop.f32.mrf.mxu0
  %v760 = vadd.f32 %v112, %v759
  %v761 = vpop.f32.mrf.mxu0
  %v762 = vadd.f32 %v112, %v761
  %763 = vmatmul.bf16.gmra.mxu0 %v229
  %v764 = vpop.f32.mrf.mxu0
  %v765 = vadd.f32 %v112, %v764
  %v766 = vpop.f32.mrf.mxu0
  %v767 = vadd.f32 %v112, %v766
  %768 = vmatmul.bf16.gmra.mxu0 %v230
  %v769 = vpop.f32.mrf.mxu0
  %v770 = vadd.f32 %v112, %v769
  %v771 = vpop.f32.mrf.mxu0
  %v772 = vadd.f32 %v112, %v771
  %773 = vmatmul.bf16.gmra.mxu0 %v231
  %v774 = vpop.f32.mrf.mxu0
  %v775 = vadd.f32 %v112, %v774
  %v776 = vpop.f32.mrf.mxu0
  %v777 = vadd.f32 %v112, %v776
  %778 = vmatmul.bf16.gmra.mxu0 %v232
  %v779 = vpop.f32.mrf.mxu0
  %v780 = vadd.f32 %v112, %v779
  %v781 = vpop.f32.mrf.mxu0
  %v782 = vadd.f32 %v112, %v781
  %783 = vmatmul.bf16.gmra.mxu0 %v233
  %v784 = vpop.f32.mrf.mxu0
  %v785 = vadd.f32 %v112, %v784
  %v786 = vpop.f32.mrf.mxu0
  %v787 = vadd.f32 %v112, %v786
  %788 = vmatmul.bf16.gmra.mxu0 %v234
  %v789 = vpop.f32.mrf.mxu0
  %v790 = vadd.f32 %v112, %v789
  %v791 = vpop.f32.mrf.mxu0
  %v792 = vadd.f32 %v112, %v791
  %793 = vmatmul.bf16.gmra.mxu0 %v235
  %v794 = vpop.f32.mrf.mxu0
  %v795 = vadd.f32 %v112, %v794
  %v796 = vpop.f32.mrf.mxu0
  %v797 = vadd.f32 %v112, %v796
  %798 = vmatmul.bf16.gmra.mxu0 %v236
  %v799 = vpop.f32.mrf.mxu0
  %v800 = vadd.f32 %v112, %v799
  %v801 = vpop.f32.mrf.mxu0
  %v802 = vadd.f32 %v112, %v801
  %803 = vmatmul.bf16.gmra.mxu0 %v237
  %v804 = vpop.f32.mrf.mxu0
  %v805 = vadd.f32 %v112, %v804
  %v806 = vpop.f32.mrf.mxu0
  %v807 = vadd.f32 %v112, %v806
  %808 = vdwg.mxu0
  %809 = vmatpush.bf16.msra.mxu0 %v389
  %810 = vmatpush.bf16.msra.mxu0 %v385
  %811 = vmatpush.bf16.msra.mxu0 %v381
  %812 = vmatpush.bf16.msra.mxu0 %v377
  %813 = vmatpush.bf16.msra.mxu0 %v373
  %814 = vmatpush.bf16.msra.mxu0 %v369
  %815 = vmatpush.bf16.msra.mxu0 %v365
  %816 = vmatpush.bf16.msra.mxu0 %v361
  %817 = vmatmul.bf16.gmra.mxu0 %v214
  %v818 = vpop.f32.mrf.mxu0
  %v819 = vadd.f32 %v113, %v818
  %v820 = vpop.f32.mrf.mxu0
  %v821 = vadd.f32 %v113, %v820
  %822 = vmatmul.bf16.gmra.mxu0 %v215
  %v823 = vpop.f32.mrf.mxu0
  %v824 = vadd.f32 %v113, %v823
  %v825 = vpop.f32.mrf.mxu0
  %v826 = vadd.f32 %v113, %v825
  %827 = vmatmul.bf16.gmra.mxu0 %v216
  %v828 = vpop.f32.mrf.mxu0
  %v829 = vadd.f32 %v113, %v828
  %v830 = vpop.f32.mrf.mxu0
  %v831 = vadd.f32 %v113, %v830
  %832 = vmatmul.bf16.gmra.mxu0 %v217
  %v833 = vpop.f32.mrf.mxu0
  %v834 = vadd.f32 %v113, %v833
  %v835 = vpop.f32.mrf.mxu0
  %v836 = vadd.f32 %v113, %v835
  %837 = vmatmul.bf16.gmra.mxu0 %v218
  %v838 = vpop.f32.mrf.mxu0
  %v839 = vadd.f32 %v113, %v838
  %v840 = vpop.f32.mrf.mxu0
  %v841 = vadd.f32 %v113, %v840
  %842 = vmatmul.bf16.gmra.mxu0 %v219
  %v843 = vpop.f32.mrf.mxu0
  %v844 = vadd.f32 %v113, %v843
  %v845 = vpop.f32.mrf.mxu0
  %v846 = vadd.f32 %v113, %v845
  %847 = vmatmul.bf16.gmra.mxu0 %v220
  %v848 = vpop.f32.mrf.mxu0
  %v849 = vadd.f32 %v113, %v848
  %v850 = vpop.f32.mrf.mxu0
  %v851 = vadd.f32 %v113, %v850
  %852 = vmatmul.bf16.gmra.mxu0 %v221
  %v853 = vpop.f32.mrf.mxu0
  %v854 = vadd.f32 %v113, %v853
  %v855 = vpop.f32.mrf.mxu0
  %v856 = vadd.f32 %v113, %v855
  %857 = vmatmul.bf16.gmra.mxu0 %v222
  %v858 = vpop.f32.mrf.mxu0
  %v859 = vadd.f32 %v113, %v858
  %v860 = vpop.f32.mrf.mxu0
  %v861 = vadd.f32 %v113, %v860
  %862 = vmatmul.bf16.gmra.mxu0 %v223
  %v863 = vpop.f32.mrf.mxu0
  %v864 = vadd.f32 %v113, %v863
  %v865 = vpop.f32.mrf.mxu0
  %v866 = vadd.f32 %v113, %v865
  %867 = vmatmul.bf16.gmra.mxu0 %v224
  %v868 = vpop.f32.mrf.mxu0
  %v869 = vadd.f32 %v113, %v868
  %v870 = vpop.f32.mrf.mxu0
  %v871 = vadd.f32 %v113, %v870
  %872 = vmatmul.bf16.gmra.mxu0 %v225
  %v873 = vpop.f32.mrf.mxu0
  %v874 = vadd.f32 %v113, %v873
  %v875 = vpop.f32.mrf.mxu0
  %v876 = vadd.f32 %v113, %v875
  %877 = vmatmul.bf16.gmra.mxu0 %v226
  %v878 = vpop.f32.mrf.mxu0
  %v879 = vadd.f32 %v113, %v878
  %v880 = vpop.f32.mrf.mxu0
  %v881 = vadd.f32 %v113, %v880
  %882 = vmatmul.bf16.gmra.mxu0 %v227
  %v883 = vpop.f32.mrf.mxu0
  %v884 = vadd.f32 %v113, %v883
  %v885 = vpop.f32.mrf.mxu0
  %v886 = vadd.f32 %v113, %v885
  %887 = vmatmul.bf16.gmra.mxu0 %v228
  %v888 = vpop.f32.mrf.mxu0
  %v889 = vadd.f32 %v113, %v888
  %v890 = vpop.f32.mrf.mxu0
  %v891 = vadd.f32 %v113, %v890
  %892 = vmatmul.bf16.gmra.mxu0 %v229
  %v893 = vpop.f32.mrf.mxu0
  %v894 = vadd.f32 %v113, %v893
  %v895 = vpop.f32.mrf.mxu0
  %v896 = vadd.f32 %v113, %v895
  %897 = vmatmul.bf16.gmra.mxu0 %v230
  %v898 = vpop.f32.mrf.mxu0
  %v899 = vadd.f32 %v113, %v898
  %v900 = vpop.f32.mrf.mxu0
  %v901 = vadd.f32 %v113, %v900
  %902 = vmatmul.bf16.gmra.mxu0 %v231
  %v903 = vpop.f32.mrf.mxu0
  %v904 = vadd.f32 %v113, %v903
  %v905 = vpop.f32.mrf.mxu0
  %v906 = vadd.f32 %v113, %v905
  %907 = vmatmul.bf16.gmra.mxu0 %v232
  %v908 = vpop.f32.mrf.mxu0
  %v909 = vadd.f32 %v113, %v908
  %v910 = vpop.f32.mrf.mxu0
  %v911 = vadd.f32 %v113, %v910
  %912 = vmatmul.bf16.gmra.mxu0 %v233
  %v913 = vpop.f32.mrf.mxu0
  %v914 = vadd.f32 %v113, %v913
  %v915 = vpop.f32.mrf.mxu0
  %v916 = vadd.f32 %v113, %v915
  %917 = vmatmul.bf16.gmra.mxu0 %v234
  %v918 = vpop.f32.mrf.mxu0
  %v919 = vadd.f32 %v113, %v918
  %v920 = vpop.f32.mrf.mxu0
  %v921 = vadd.f32 %v113, %v920
  %922 = vmatmul.bf16.gmra.mxu0 %v235
  %v923 = vpop.f32.mrf.mxu0
  %v924 = vadd.f32 %v113, %v923
  %v925 = vpop.f32.mrf.mxu0
  %v926 = vadd.f32 %v113, %v925
  %927 = vmatmul.bf16.gmra.mxu0 %v236
  %v928 = vpop.f32.mrf.mxu0
  %v929 = vadd.f32 %v113, %v928
  %v930 = vpop.f32.mrf.mxu0
  %v931 = vadd.f32 %v113, %v930
  %932 = vmatmul.bf16.gmra.mxu0 %v237
  %v933 = vpop.f32.mrf.mxu0
  %v934 = vadd.f32 %v113, %v933
  %v935 = vpop.f32.mrf.mxu0
  %v936 = vadd.f32 %v113, %v935
  %937 = vdwg.mxu0
  %938 = vst [vmem:[#allocation2] sm:$0xff] %v432
  %939 = vst [vmem:[#allocation2 + $0x8] sm:$0xff] %v561
  %940 = vst [vmem:[#allocation2 + $0x10] sm:$0xff] %v690
  %941 = vst [vmem:[#allocation2 + $0x18] sm:$0xff] %v819
  %942 = vst [vmem:[#allocation2 + $0x20] sm:$0xff] %v434
  %943 = vst [vmem:[#allocation2 + $0x28] sm:$0xff] %v563
  %944 = vst [vmem:[#allocation2 + $0x30] sm:$0xff] %v692
  %945 = vst [vmem:[#allocation2 + $0x38] sm:$0xff] %v821
  %946 = vst [vmem:[#allocation2 + $0x40] sm:$0xff] %v437
  %947 = vst [vmem:[#allocation2 + $0x48] sm:$0xff] %v566
  %948 = vst [vmem:[#allocation2 + $0x50] sm:$0xff] %v695
  %949 = vst [vmem:[#allocation2 + $0x58] sm:$0xff] %v824
  %950 = vst [vmem:[#allocation2 + $0x60] sm:$0xff] %v439
  %951 = vst [vmem:[#allocation2 + $0x68] sm:$0xff] %v568
  %952 = vst [vmem:[#allocation2 + $0x70] sm:$0xff] %v697
  %953 = vst [vmem:[#allocation2 + $0x78] sm:$0xff] %v826
  %954 = vst [vmem:[#allocation2 + $0x80] sm:$0xff] %v442
  %955 = vst [vmem:[#allocation2 + $0x88] sm:$0xff] %v571
  %956 = vst [vmem:[#allocation2 + $0x90] sm:$0xff] %v700
  %957 = vst [vmem:[#allocation2 + $0x98] sm:$0xff] %v829
  %958 = vst [vmem:[#allocation2 + $0xa0] sm:$0xff] %v444
  %959 = vst [vmem:[#allocation2 + $0xa8] sm:$0xff] %v573
  %960 = vst [vmem:[#allocation2 + $0xb0] sm:$0xff] %v702
  %961 = vst [vmem:[#allocation2 + $0xb8] sm:$0xff] %v831
  %962 = vst [vmem:[#allocation2 + $0xc0] sm:$0xff] %v447
  %963 = vst [vmem:[#allocation2 + $0xc8] sm:$0xff] %v576
  %964 = vst [vmem:[#allocation2 + $0xd0] sm:$0xff] %v705
  %965 = vst [vmem:[#allocation2 + $0xd8] sm:$0xff] %v834
  %966 = vst [vmem:[#allocation2 + $0xe0] sm:$0xff] %v449
  %967 = vst [vmem:[#allocation2 + $0xe8] sm:$0xff] %v578
  %968 = vst [vmem:[#allocation2 + $0xf0] sm:$0xff] %v707
  %969 = vst [vmem:[#allocation2 + $0xf8] sm:$0xff] %v836
  %970 = vst [vmem:[#allocation2 + $0x100] sm:$0xff] %v452
  %971 = vst [vmem:[#allocation2 + $0x108] sm:$0xff] %v581
  %972 = vst [vmem:[#allocation2 + $0x110] sm:$0xff] %v710
  %973 = vst [vmem:[#allocation2 + $0x118] sm:$0xff] %v839
  %974 = vst [vmem:[#allocation2 + $0x120] sm:$0xff] %v454
  %975 = vst [vmem:[#allocation2 + $0x128] sm:$0xff] %v583
  %976 = vst [vmem:[#allocation2 + $0x130] sm:$0xff] %v712
  %977 = vst [vmem:[#allocation2 + $0x138] sm:$0xff] %v841
  %978 = vst [vmem:[#allocation2 + $0x140] sm:$0xff] %v457
  %979 = vst [vmem:[#allocation2 + $0x148] sm:$0xff] %v586
  %980 = vst [vmem:[#allocation2 + $0x150] sm:$0xff] %v715
  %981 = vst [vmem:[#allocation2 + $0x158] sm:$0xff] %v844
  %982 = vst [vmem:[#allocation2 + $0x160] sm:$0xff] %v459
  %983 = vst [vmem:[#allocation2 + $0x168] sm:$0xff] %v588
  %984 = vst [vmem:[#allocation2 + $0x170] sm:$0xff] %v717
  %985 = vst [vmem:[#allocation2 + $0x178] sm:$0xff] %v846
  %986 = vst [vmem:[#allocation2 + $0x180] sm:$0xff] %v462
  %987 = vst [vmem:[#allocation2 + $0x188] sm:$0xff] %v591
  %988 = vst [vmem:[#allocation2 + $0x190] sm:$0xff] %v720
  %989 = vst [vmem:[#allocation2 + $0x198] sm:$0xff] %v849
  %990 = vst [vmem:[#allocation2 + $0x1a0] sm:$0xff] %v464
  %991 = vst [vmem:[#allocation2 + $0x1a8] sm:$0xff] %v593
  %992 = vst [vmem:[#allocation2 + $0x1b0] sm:$0xff] %v722
  %993 = vst [vmem:[#allocation2 + $0x1b8] sm:$0xff] %v851
  %994 = vst [vmem:[#allocation2 + $0x1c0] sm:$0xff] %v467
  %995 = vst [vmem:[#allocation2 + $0x1c8] sm:$0xff] %v596
  %996 = vst [vmem:[#allocation2 + $0x1d0] sm:$0xff] %v725
  %997 = vst [vmem:[#allocation2 + $0x1d8] sm:$0xff] %v854
  %998 = vst [vmem:[#allocation2 + $0x1e0] sm:$0xff] %v469
  %999 = vst [vmem:[#allocation2 + $0x1e8] sm:$0xff] %v598
  %1000 = vst [vmem:[#allocation2 + $0x1f0] sm:$0xff] %v727
  %1001 = vst [vmem:[#allocation2 + $0x1f8] sm:$0xff] %v856
  %1002 = vst [vmem:[#allocation2 + $0x200] sm:$0xff] %v472
  %1003 = vst [vmem:[#allocation2 + $0x208] sm:$0xff] %v601
  %1004 = vst [vmem:[#allocation2 + $0x210] sm:$0xff] %v730
  %1005 = vst [vmem:[#allocation2 + $0x218] sm:$0xff] %v859
  %1006 = vst [vmem:[#allocation2 + $0x220] sm:$0xff] %v474
  %1007 = vst [vmem:[#allocation2 + $0x228] sm:$0xff] %v603
  %1008 = vst [vmem:[#allocation2 + $0x230] sm:$0xff] %v732
  %1009 = vst [vmem:[#allocation2 + $0x238] sm:$0xff] %v861
  %1010 = vst [vmem:[#allocation2 + $0x240] sm:$0xff] %v477
  %1011 = vst [vmem:[#allocation2 + $0x248] sm:$0xff] %v606
  %1012 = vst [vmem:[#allocation2 + $0x250] sm:$0xff] %v735
  %1013 = vst [vmem:[#allocation2 + $0x258] sm:$0xff] %v864
  %1014 = vst [vmem:[#allocation2 + $0x260] sm:$0xff] %v479
  %1015 = vst [vmem:[#allocation2 + $0x268] sm:$0xff] %v608
  %1016 = vst [vmem:[#allocation2 + $0x270] sm:$0xff] %v737
  %1017 = vst [vmem:[#allocation2 + $0x278] sm:$0xff] %v866
  %1018 = vst [vmem:[#allocation2 + $0x280] sm:$0xff] %v482
  %1019 = vst [vmem:[#allocation2 + $0x288] sm:$0xff] %v611
  %1020 = vst [vmem:[#allocation2 + $0x290] sm:$0xff] %v740
  %1021 = vst [vmem:[#allocation2 + $0x298] sm:$0xff] %v869
  %1022 = vst [vmem:[#allocation2 + $0x2a0] sm:$0xff] %v484
  %1023 = vst [vmem:[#allocation2 + $0x2a8] sm:$0xff] %v613
  %1024 = vst [vmem:[#allocation2 + $0x2b0] sm:$0xff] %v742
  %1025 = vst [vmem:[#allocation2 + $0x2b8] sm:$0xff] %v871
  %1026 = vst [vmem:[#allocation2 + $0x2c0] sm:$0xff] %v487
  %1027 = vst [vmem:[#allocation2 + $0x2c8] sm:$0xff] %v616
  %1028 = vst [vmem:[#allocation2 + $0x2d0] sm:$0xff] %v745
  %1029 = vst [vmem:[#allocation2 + $0x2d8] sm:$0xff] %v874
  %1030 = vst [vmem:[#allocation2 + $0x2e0] sm:$0xff] %v489
  %1031 = vst [vmem:[#allocation2 + $0x2e8] sm:$0xff] %v618
  %1032 = vst [vmem:[#allocation2 + $0x2f0] sm:$0xff] %v747
  %1033 = vst [vmem:[#allocation2 + $0x2f8] sm:$0xff] %v876
  %1034 = vst [vmem:[#allocation2 + $0x300] sm:$0xff] %v492
  %1035 = vst [vmem:[#allocation2 + $0x308] sm:$0xff] %v621
  %1036 = vst [vmem:[#allocation2 + $0x310] sm:$0xff] %v750
  %1037 = vst [vmem:[#allocation2 + $0x318] sm:$0xff] %v879
  %1038 = vst [vmem:[#allocation2 + $0x320] sm:$0xff] %v494
  %1039 = vst [vmem:[#allocation2 + $0x328] sm:$0xff] %v623
  %1040 = vst [vmem:[#allocation2 + $0x330] sm:$0xff] %v752
  %1041 = vst [vmem:[#allocation2 + $0x338] sm:$0xff] %v881
  %1042 = vst [vmem:[#allocation2 + $0x340] sm:$0xff] %v497
  %1043 = vst [vmem:[#allocation2 + $0x348] sm:$0xff] %v626
  %1044 = vst [vmem:[#allocation2 + $0x350] sm:$0xff] %v755
  %1045 = vst [vmem:[#allocation2 + $0x358] sm:$0xff] %v884
  %1046 = vst [vmem:[#allocation2 + $0x360] sm:$0xff] %v499
  %1047 = vst [vmem:[#allocation2 + $0x368] sm:$0xff] %v628
  %1048 = vst [vmem:[#allocation2 + $0x370] sm:$0xff] %v757
  %1049 = vst [vmem:[#allocation2 + $0x378] sm:$0xff] %v886
  %1050 = vst [vmem:[#allocation2 + $0x380] sm:$0xff] %v502
  %1051 = vst [vmem:[#allocation2 + $0x388] sm:$0xff] %v631
  %1052 = vst [vmem:[#allocation2 + $0x390] sm:$0xff] %v760
  %1053 = vst [vmem:[#allocation2 + $0x398] sm:$0xff] %v889
  %1054 = vst [vmem:[#allocation2 + $0x3a0] sm:$0xff] %v504
  %1055 = vst [vmem:[#allocation2 + $0x3a8] sm:$0xff] %v633
  %1056 = vst [vmem:[#allocation2 + $0x3b0] sm:$0xff] %v762
  %1057 = vst [vmem:[#allocation2 + $0x3b8] sm:$0xff] %v891
  %1058 = vst [vmem:[#allocation2 + $0x3c0] sm:$0xff] %v507
  %1059 = vst [vmem:[#allocation2 + $0x3c8] sm:$0xff] %v636
  %1060 = vst [vmem:[#allocation2 + $0x3d0] sm:$0xff] %v765
  %1061 = vst [vmem:[#allocation2 + $0x3d8] sm:$0xff] %v894
  %1062 = vst [vmem:[#allocation2 + $0x3e0] sm:$0xff] %v509
  %1063 = vst [vmem:[#allocation2 + $0x3e8] sm:$0xff] %v638
  %1064 = vst [vmem:[#allocation2 + $0x3f0] sm:$0xff] %v767
  %1065 = vst [vmem:[#allocation2 + $0x3f8] sm:$0xff] %v896
  %1066 = vst [vmem:[#allocation2 + $0x400] sm:$0xff] %v512
  %1067 = vst [vmem:[#allocation2 + $0x408] sm:$0xff] %v641
  %1068 = vst [vmem:[#allocation2 + $0x410] sm:$0xff] %v770
  %1069 = vst [vmem:[#allocation2 + $0x418] sm:$0xff] %v899
  %1070 = vst [vmem:[#allocation2 + $0x420] sm:$0xff] %v514
  %1071 = vst [vmem:[#allocation2 + $0x428] sm:$0xff] %v643
  %1072 = vst [vmem:[#allocation2 + $0x430] sm:$0xff] %v772
  %1073 = vst [vmem:[#allocation2 + $0x438] sm:$0xff] %v901
  %1074 = vst [vmem:[#allocation2 + $0x440] sm:$0xff] %v517
  %1075 = vst [vmem:[#allocation2 + $0x448] sm:$0xff] %v646
  %1076 = vst [vmem:[#allocation2 + $0x450] sm:$0xff] %v775
  %1077 = vst [vmem:[#allocation2 + $0x458] sm:$0xff] %v904
  %1078 = vst [vmem:[#allocation2 + $0x460] sm:$0xff] %v519
  %1079 = vst [vmem:[#allocation2 + $0x468] sm:$0xff] %v648
  %1080 = vst [vmem:[#allocation2 + $0x470] sm:$0xff] %v777
  %1081 = vst [vmem:[#allocation2 + $0x478] sm:$0xff] %v906
  %1082 = vst [vmem:[#allocation2 + $0x480] sm:$0xff] %v522
  %1083 = vst [vmem:[#allocation2 + $0x488] sm:$0xff] %v651
  %1084 = vst [vmem:[#allocation2 + $0x490] sm:$0xff] %v780
  %1085 = vst [vmem:[#allocation2 + $0x498] sm:$0xff] %v909
  %1086 = vst [vmem:[#allocation2 + $0x4a0] sm:$0xff] %v524
  %1087 = vst [vmem:[#allocation2 + $0x4a8] sm:$0xff] %v653
  %1088 = vst [vmem:[#allocation2 + $0x4b0] sm:$0xff] %v782
  %1089 = vst [vmem:[#allocation2 + $0x4b8] sm:$0xff] %v911
  %1090 = vst [vmem:[#allocation2 + $0x4c0] sm:$0xff] %v527
  %1091 = vst [vmem:[#allocation2 + $0x4c8] sm:$0xff] %v656
  %1092 = vst [vmem:[#allocation2 + $0x4d0] sm:$0xff] %v785
  %1093 = vst [vmem:[#allocation2 + $0x4d8] sm:$0xff] %v914
  %1094 = vst [vmem:[#allocation2 + $0x4e0] sm:$0xff] %v529
  %1095 = vst [vmem:[#allocation2 + $0x4e8] sm:$0xff] %v658
  %1096 = vst [vmem:[#allocation2 + $0x4f0] sm:$0xff] %v787
  %1097 = vst [vmem:[#allocation2 + $0x4f8] sm:$0xff] %v916
  %1098 = vst [vmem:[#allocation2 + $0x500] sm:$0xff] %v532
  %1099 = vst [vmem:[#allocation2 + $0x508] sm:$0xff] %v661
  %1100 = vst [vmem:[#allocation2 + $0x510] sm:$0xff] %v790
  %1101 = vst [vmem:[#allocation2 + $0x518] sm:$0xff] %v919
  %1102 = vst [vmem:[#allocation2 + $0x520] sm:$0xff] %v534
  %1103 = vst [vmem:[#allocation2 + $0x528] sm:$0xff] %v663
  %1104 = vst [vmem:[#allocation2 + $0x530] sm:$0xff] %v792
  %1105 = vst [vmem:[#allocation2 + $0x538] sm:$0xff] %v921
  %1106 = vst [vmem:[#allocation2 + $0x540] sm:$0xff] %v537
  %1107 = vst [vmem:[#allocation2 + $0x548] sm:$0xff] %v666
  %1108 = vst [vmem:[#allocation2 + $0x550] sm:$0xff] %v795
  %1109 = vst [vmem:[#allocation2 + $0x558] sm:$0xff] %v924
  %1110 = vst [vmem:[#allocation2 + $0x560] sm:$0xff] %v539
  %1111 = vst [vmem:[#allocation2 + $0x568] sm:$0xff] %v668
  %1112 = vst [vmem:[#allocation2 + $0x570] sm:$0xff] %v797
  %1113 = vst [vmem:[#allocation2 + $0x578] sm:$0xff] %v926
  %1114 = vst [vmem:[#allocation2 + $0x580] sm:$0xff] %v542
  %1115 = vst [vmem:[#allocation2 + $0x588] sm:$0xff] %v671
  %1116 = vst [vmem:[#allocation2 + $0x590] sm:$0xff] %v800
  %1117 = vst [vmem:[#allocation2 + $0x598] sm:$0xff] %v929
  %1118 = vst [vmem:[#allocation2 + $0x5a0] sm:$0xff] %v544
  %1119 = vst [vmem:[#allocation2 + $0x5a8] sm:$0xff] %v673
  %1120 = vst [vmem:[#allocation2 + $0x5b0] sm:$0xff] %v802
  %1121 = vst [vmem:[#allocation2 + $0x5b8] sm:$0xff] %v931
  %1122 = vst [vmem:[#allocation2 + $0x5c0] sm:$0xff] %v547
  %1123 = vst [vmem:[#allocation2 + $0x5c8] sm:$0xff] %v676
  %1124 = vst [vmem:[#allocation2 + $0x5d0] sm:$0xff] %v805
  %1125 = vst [vmem:[#allocation2 + $0x5d8] sm:$0xff] %v934
  %1126 = vst [vmem:[#allocation2 + $0x5e0] sm:$0xff] %v549
  %1127 = vst [vmem:[#allocation2 + $0x5e8] sm:$0xff] %v678
  %1128 = vst [vmem:[#allocation2 + $0x5f0] sm:$0xff] %v807
  %1129 = vst [vmem:[#allocation2 + $0x5f8] sm:$0xff] %v936
  %v1130 = vld [vmem:[%s0] sm:$0xff]
  %v1131 = vld [vmem:[%s0 + $0x8] sm:$0xff]
  %v1132 = vld [vmem:[#allocation3] sm:$0xff]
  %v1133 = vld [vmem:[#allocation3 + $0x8] sm:$0xff]
  %v1134 = vld [vmem:[#allocation4] sm:$0xff]
  %v1135 = vld [vmem:[#allocation4 + $0x8] sm:$0xff]
  loop: start=0, step=1, limit=3
  $region26: #{batch_rnn_forward.3} parent=0 // loop_pre_header
    _
  $region27: #{batch_rnn_forward.3} parent=0 // loop_header
    %s1137 = sphi 0, %s1141
    %p1138 = scmp.ge.s32.totalorder %s1137, 3
    %v1142 = vphi %v1132, %v4473
    %v1143 = vphi %v1133, %v4474
    %v1144 = vphi %v1134, %v4469
    %v1145 = vphi %v1135, %v4470
  $region28: #{batch_rnn_forward.3} parent=0 // loop_header_branch
    %1140 = sbr.rel (%p1138) target = $region32
  $region29: #{batch_rnn_forward.3} parent=0 // loop_body
    %s1146 = smul.u32 %s1137, 8
    %s1147 = smul.u32 %s1146, 8
    %s1148 = smul.addr %s1147, 8
    %s1149 = scalar_lea.vmem [#allocation2], %s1148
    %v1150 = vld [vmem:[%s1149] sm:$0xff]
    %v1151 = vld [vmem:[%s1149 + $0x8] sm:$0xff]
    %v1152 = vld [vmem:[%s1149 + $0x10] sm:$0xff]
    %v1153 = vld [vmem:[%s1149 + $0x18] sm:$0xff]
    %v1154 = vld [vmem:[%s1149 + $0x20] sm:$0xff]
    %v1155 = vld [vmem:[%s1149 + $0x28] sm:$0xff]
    %v1156 = vld [vmem:[%s1149 + $0x30] sm:$0xff]
    %v1157 = vld [vmem:[%s1149 + $0x38] sm:$0xff]
    %v1158 = vpack.c.bf16 %v1143, %v1142
    %v1159 = vld [vmem:[%s3] sm:$0xff]
    %v1160 = vld [vmem:[%s3 + $0x8] sm:$0xff]
    %v1161 = vld [vmem:[%s3 + $0x10] sm:$0xff]
    %v1162 = vld [vmem:[%s3 + $0x18] sm:$0xff]
    %v1163 = vld [vmem:[%s3 + $0x20] sm:$0xff]
    %v1164 = vld [vmem:[%s3 + $0x28] sm:$0xff]
    %v1165 = vld [vmem:[%s3 + $0x30] sm:$0xff]
    %v1166 = vld [vmem:[%s3 + $0x38] sm:$0xff]
    %v1167 = vld [vmem:[%s3 + $0x40] sm:$0xff]
    %v1168 = vld [vmem:[%s3 + $0x48] sm:$0xff]
    %v1169 = vld [vmem:[%s3 + $0x50] sm:$0xff]
    %v1170 = vld [vmem:[%s3 + $0x58] sm:$0xff]
    %v1171 = vld [vmem:[%s3 + $0x60] sm:$0xff]
    %v1172 = vld [vmem:[%s3 + $0x68] sm:$0xff]
    %v1173 = vld [vmem:[%s3 + $0x70] sm:$0xff]
    %v1174 = vld [vmem:[%s3 + $0x78] sm:$0xff]
    %v1175 = vld [vmem:[%s3 + $0x80] sm:$0xff]
    %v1176 = vld [vmem:[%s3 + $0x88] sm:$0xff]
    %v1177 = vld [vmem:[%s3 + $0x90] sm:$0xff]
    %v1178 = vld [vmem:[%s3 + $0x98] sm:$0xff]
    %v1179 = vld [vmem:[%s3 + $0xa0] sm:$0xff]
    %v1180 = vld [vmem:[%s3 + $0xa8] sm:$0xff]
    %v1181 = vld [vmem:[%s3 + $0xb0] sm:$0xff]
    %v1182 = vld [vmem:[%s3 + $0xb8] sm:$0xff]
    %v1183 = vld [vmem:[%s3 + $0xc0] sm:$0xff]
    %v1184 = vld [vmem:[%s3 + $0xc8] sm:$0xff]
    %v1185 = vld [vmem:[%s3 + $0xd0] sm:$0xff]
    %v1186 = vld [vmem:[%s3 + $0xd8] sm:$0xff]
    %v1187 = vld [vmem:[%s3 + $0xe0] sm:$0xff]
    %v1188 = vld [vmem:[%s3 + $0xe8] sm:$0xff]
    %v1189 = vld [vmem:[%s3 + $0xf0] sm:$0xff]
    %v1190 = vld [vmem:[%s3 + $0xf8] sm:$0xff]
    %v1223 = vunpack.c.l.b16 %v1159
    %v1224 = vunpack.c.h.b16 %v1159
    %v1225 = vunpack.c.l.b16 %v1160
    %v1226 = vunpack.c.h.b16 %v1160
    %v1227 = vunpack.c.l.b16 %v1161
    %v1228 = vunpack.c.h.b16 %v1161
    %v1229 = vunpack.c.l.b16 %v1162
    %v1230 = vunpack.c.h.b16 %v1162
    %v1231 = vunpack.c.l.b16 %v1163
    %v1232 = vunpack.c.h.b16 %v1163
    %v1233 = vunpack.c.l.b16 %v1164
    %v1234 = vunpack.c.h.b16 %v1164
    %v1235 = vunpack.c.l.b16 %v1165
    %v1236 = vunpack.c.h.b16 %v1165
    %v1237 = vunpack.c.l.b16 %v1166
    %v1238 = vunpack.c.h.b16 %v1166
    %v1239 = vunpack.c.l.b16 %v1167
    %v1240 = vunpack.c.h.b16 %v1167
    %v1241 = vunpack.c.l.b16 %v1168
    %v1242 = vunpack.c.h.b16 %v1168
    %v1243 = vunpack.c.l.b16 %v1169
    %v1244 = vunpack.c.h.b16 %v1169
    %v1245 = vunpack.c.l.b16 %v1170
    %v1246 = vunpack.c.h.b16 %v1170
    %v1247 = vunpack.c.l.b16 %v1171
    %v1248 = vunpack.c.h.b16 %v1171
    %v1249 = vunpack.c.l.b16 %v1172
    %v1250 = vunpack.c.h.b16 %v1172
    %v1251 = vunpack.c.l.b16 %v1173
    %v1252 = vunpack.c.h.b16 %v1173
    %v1253 = vunpack.c.l.b16 %v1174
    %v1254 = vunpack.c.h.b16 %v1174
    %v1255 = vunpack.c.l.b16 %v1175
    %v1256 = vunpack.c.h.b16 %v1175
    %v1257 = vunpack.c.l.b16 %v1176
    %v1258 = vunpack.c.h.b16 %v1176
    %v1259 = vunpack.c.l.b16 %v1177
    %v1260 = vunpack.c.h.b16 %v1177
    %v1261 = vunpack.c.l.b16 %v1178
    %v1262 = vunpack.c.h.b16 %v1178
    %v1263 = vunpack.c.l.b16 %v1179
    %v1264 = vunpack.c.h.b16 %v1179
    %v1265 = vunpack.c.l.b16 %v1180
    %v1266 = vunpack.c.h.b16 %v1180
    %v1267 = vunpack.c.l.b16 %v1181
    %v1268 = vunpack.c.h.b16 %v1181
    %v1269 = vunpack.c.l.b16 %v1182
    %v1270 = vunpack.c.h.b16 %v1182
    %v1271 = vunpack.c.l.b16 %v1183
    %v1272 = vunpack.c.h.b16 %v1183
    %v1273 = vunpack.c.l.b16 %v1184
    %v1274 = vunpack.c.h.b16 %v1184
    %v1275 = vunpack.c.l.b16 %v1185
    %v1276 = vunpack.c.h.b16 %v1185
    %v1277 = vunpack.c.l.b16 %v1186
    %v1278 = vunpack.c.h.b16 %v1186
    %v1279 = vunpack.c.l.b16 %v1187
    %v1280 = vunpack.c.h.b16 %v1187
    %v1281 = vunpack.c.l.b16 %v1188
    %v1282 = vunpack.c.h.b16 %v1188
    %v1283 = vunpack.c.l.b16 %v1189
    %v1284 = vunpack.c.h.b16 %v1189
    %v1285 = vunpack.c.l.b16 %v1190
    %v1286 = vunpack.c.h.b16 %v1190
    %v1287 = vpack.c.b16 %v1227, %v1223
    %v1288 = vpack.c.b16 %v1228, %v1224
    %v1289 = vpack.c.b16 %v1229, %v1225
    %v1290 = vpack.c.b16 %v1230, %v1226
    %v1291 = vpack.c.b16 %v1235, %v1231
    %v1292 = vpack.c.b16 %v1236, %v1232
    %v1293 = vpack.c.b16 %v1237, %v1233
    %v1294 = vpack.c.b16 %v1238, %v1234
    %v1295 = vpack.c.b16 %v1243, %v1239
    %v1296 = vpack.c.b16 %v1244, %v1240
    %v1297 = vpack.c.b16 %v1245, %v1241
    %v1298 = vpack.c.b16 %v1246, %v1242
    %v1299 = vpack.c.b16 %v1251, %v1247
    %v1300 = vpack.c.b16 %v1252, %v1248
    %v1301 = vpack.c.b16 %v1253, %v1249
    %v1302 = vpack.c.b16 %v1254, %v1250
    %v1303 = vpack.c.b16 %v1259, %v1255
    %v1304 = vpack.c.b16 %v1260, %v1256
    %v1305 = vpack.c.b16 %v1261, %v1257
    %v1306 = vpack.c.b16 %v1262, %v1258
    %v1307 = vpack.c.b16 %v1267, %v1263
    %v1308 = vpack.c.b16 %v1268, %v1264
    %v1309 = vpack.c.b16 %v1269, %v1265
    %v1310 = vpack.c.b16 %v1270, %v1266
    %v1311 = vpack.c.b16 %v1275, %v1271
    %v1312 = vpack.c.b16 %v1276, %v1272
    %v1313 = vpack.c.b16 %v1277, %v1273
    %v1314 = vpack.c.b16 %v1278, %v1274
    %v1315 = vpack.c.b16 %v1283, %v1279
    %v1316 = vpack.c.b16 %v1284, %v1280
    %v1317 = vpack.c.b16 %v1285, %v1281
    %v1318 = vpack.c.b16 %v1286, %v1282
    %1351 = vmatpush.bf16.msra.mxu0 %v1315
    %1352 = vmatpush.bf16.msra.mxu0 %v1311
    %1353 = vmatpush.bf16.msra.mxu0 %v1307
    %1354 = vmatpush.bf16.msra.mxu0 %v1303
    %1355 = vmatpush.bf16.msra.mxu0 %v1299
    %1356 = vmatpush.bf16.msra.mxu0 %v1295
    %1357 = vmatpush.bf16.msra.mxu0 %v1291
    %1358 = vmatpush.bf16.msra.mxu0 %v1287
    %1359 = vmatmul.bf16.gmra.mxu0 %v1158
    %v1360 = vpop.f32.mrf.mxu0
    %v1361 = vadd.f32 0.0, %v1360
    %v1362 = vpop.f32.mrf.mxu0
    %v1363 = vadd.f32 0.0, %v1362
    %1364 = vdwg.mxu0
    %1365 = vmatpush.bf16.msra.mxu0 %v1316
    %1366 = vmatpush.bf16.msra.mxu0 %v1312
    %1367 = vmatpush.bf16.msra.mxu0 %v1308
    %1368 = vmatpush.bf16.msra.mxu0 %v1304
    %1369 = vmatpush.bf16.msra.mxu0 %v1300
    %1370 = vmatpush.bf16.msra.mxu0 %v1296
    %1371 = vmatpush.bf16.msra.mxu0 %v1292
    %1372 = vmatpush.bf16.msra.mxu0 %v1288
    %1373 = vmatmul.bf16.gmra.mxu0 %v1158
    %v1374 = vpop.f32.mrf.mxu0
    %v1375 = vadd.f32 0.0, %v1374
    %v1376 = vpop.f32.mrf.mxu0
    %v1377 = vadd.f32 0.0, %v1376
    %1378 = vdwg.mxu0
    %1379 = vmatpush.bf16.msra.mxu0 %v1317
    %1380 = vmatpush.bf16.msra.mxu0 %v1313
    %1381 = vmatpush.bf16.msra.mxu0 %v1309
    %1382 = vmatpush.bf16.msra.mxu0 %v1305
    %1383 = vmatpush.bf16.msra.mxu0 %v1301
    %1384 = vmatpush.bf16.msra.mxu0 %v1297
    %1385 = vmatpush.bf16.msra.mxu0 %v1293
    %1386 = vmatpush.bf16.msra.mxu0 %v1289
    %1387 = vmatmul.bf16.gmra.mxu0 %v1158
    %v1388 = vpop.f32.mrf.mxu0
    %v1389 = vadd.f32 0.0, %v1388
    %v1390 = vpop.f32.mrf.mxu0
    %v1391 = vadd.f32 0.0, %v1390
    %1392 = vdwg.mxu0
    %1393 = vmatpush.bf16.msra.mxu0 %v1318
    %1394 = vmatpush.bf16.msra.mxu0 %v1314
    %1395 = vmatpush.bf16.msra.mxu0 %v1310
    %1396 = vmatpush.bf16.msra.mxu0 %v1306
    %1397 = vmatpush.bf16.msra.mxu0 %v1302
    %1398 = vmatpush.bf16.msra.mxu0 %v1298
    %1399 = vmatpush.bf16.msra.mxu0 %v1294
    %1400 = vmatpush.bf16.msra.mxu0 %v1290
    %1401 = vmatmul.bf16.gmra.mxu0 %v1158
    %v1402 = vpop.f32.mrf.mxu0
    %v1403 = vadd.f32 0.0, %v1402
    %v1404 = vpop.f32.mrf.mxu0
    %v1405 = vadd.f32 0.0, %v1404
    %1406 = vdwg.mxu0
    %v1407 = vadd.f32 %v1150, %v1361
    %v1408 = vadd.f32 %v1151, %v1375
    %v1409 = vadd.f32 %v1152, %v1389
    %v1410 = vadd.f32 %v1153, %v1403
    %v1411 = vadd.f32 %v1154, %v1363
    %v1412 = vadd.f32 %v1155, %v1377
    %v1413 = vadd.f32 %v1156, %v1391
    %v1414 = vadd.f32 %v1157, %v1405
    %v1415 = vxor.u32 %v1407, 2147483648
    %v1416 = vxor.u32 %v1408, 2147483648
    %v1417 = vxor.u32 %v1409, 2147483648
    %v1418 = vxor.u32 %v1411, 2147483648
    %v1419 = vxor.u32 %v1412, 2147483648
    %v1420 = vxor.u32 %v1413, 2147483648
    %v1421 = vmul.f32 %v1415, 1.442695
    %v1422 = vpow.pop %v1421
    %v1423 = vmul.f32 %v1416, 1.442695
    %v1424 = vpow.pop %v1423
    %v1425 = vmul.f32 %v1417, 1.442695
    %v1426 = vpow.pop %v1425
    %v1427 = vmul.f32 %v1418, 1.442695
    %v1428 = vpow.pop %v1427
    %v1429 = vmul.f32 %v1419, 1.442695
    %v1430 = vpow.pop %v1429
    %v1431 = vmul.f32 %v1420, 1.442695
    %v1432 = vpow.pop %v1431
    %v1433 = vadd.f32 %v1422, 1.0
    %v1434 = vadd.f32 %v1424, 1.0
    %v1435 = vadd.f32 %v1426, 1.0
    %v1436 = vadd.f32 %v1428, 1.0
    %v1437 = vadd.f32 %v1430, 1.0
    %v1438 = vadd.f32 %v1432, 1.0
    %v1439 = vrcp.pop %v1433
    %v1440 = vmul.f32 %v1433, %v1439
    %v1441 = vsub.f32 1.0, %v1440
    %v1442 = vmul.f32 %v1439, %v1441
    %v1443 = vadd.f32 %v1439, %v1442
    %vm1444 = vweird.f32 %v1433
    %vm1445 = vweird.f32 %v1439
    %vm1446 = vmor %vm1444, %vm1445
    %v1447 = vsel %vm1446, %v1439, %v1443
    %v1448 = vand.u32 2147483647, %v1433
    %vm1449 = vcmp.eq.f32.partialorder %v1448, 8.507059e+37
    %v1450 = vand.u32 %v1433, 2147483648
    %v1451 = vor.u32 1.1754944e-38, %v1450
    %v1452 = vsel %vm1449, %v1451, %v1447
    %v1453 = vmul.f32 1.0, %v1452
    %v1454 = vrcp.pop %v1434
    %v1455 = vmul.f32 %v1434, %v1454
    %v1456 = vsub.f32 1.0, %v1455
    %v1457 = vmul.f32 %v1454, %v1456
    %v1458 = vadd.f32 %v1454, %v1457
    %vm1459 = vweird.f32 %v1434
    %vm1460 = vweird.f32 %v1454
    %vm1461 = vmor %vm1459, %vm1460
    %v1462 = vsel %vm1461, %v1454, %v1458
    %v1463 = vand.u32 2147483647, %v1434
    %vm1464 = vcmp.eq.f32.partialorder %v1463, 8.507059e+37
    %v1465 = vand.u32 %v1434, 2147483648
    %v1466 = vor.u32 1.1754944e-38, %v1465
    %v1467 = vsel %vm1464, %v1466, %v1462
    %v1468 = vmul.f32 1.0, %v1467
    %v1469 = vrcp.pop %v1435
    %v1470 = vmul.f32 %v1435, %v1469
    %v1471 = vsub.f32 1.0, %v1470
    %v1472 = vmul.f32 %v1469, %v1471
    %v1473 = vadd.f32 %v1469, %v1472
    %vm1474 = vweird.f32 %v1435
    %vm1475 = vweird.f32 %v1469
    %vm1476 = vmor %vm1474, %vm1475
    %v1477 = vsel %vm1476, %v1469, %v1473
    %v1478 = vand.u32 2147483647, %v1435
    %vm1479 = vcmp.eq.f32.partialorder %v1478, 8.507059e+37
    %v1480 = vand.u32 %v1435, 2147483648
    %v1481 = vor.u32 1.1754944e-38, %v1480
    %v1482 = vsel %vm1479, %v1481, %v1477
    %v1483 = vmul.f32 1.0, %v1482
    %v1484 = vrcp.pop %v1436
    %v1485 = vmul.f32 %v1436, %v1484
    %v1486 = vsub.f32 1.0, %v1485
    %v1487 = vmul.f32 %v1484, %v1486
    %v1488 = vadd.f32 %v1484, %v1487
    %vm1489 = vweird.f32 %v1436
    %vm1490 = vweird.f32 %v1484
    %vm1491 = vmor %vm1489, %vm1490
    %v1492 = vsel %vm1491, %v1484, %v1488
    %v1493 = vand.u32 2147483647, %v1436
    %vm1494 = vcmp.eq.f32.partialorder %v1493, 8.507059e+37
    %v1495 = vand.u32 %v1436, 2147483648
    %v1496 = vor.u32 1.1754944e-38, %v1495
    %v1497 = vsel %vm1494, %v1496, %v1492
    %v1498 = vmul.f32 1.0, %v1497
    %v1499 = vrcp.pop %v1437
    %v1500 = vmul.f32 %v1437, %v1499
    %v1501 = vsub.f32 1.0, %v1500
    %v1502 = vmul.f32 %v1499, %v1501
    %v1503 = vadd.f32 %v1499, %v1502
    %vm1504 = vweird.f32 %v1437
    %vm1505 = vweird.f32 %v1499
    %vm1506 = vmor %vm1504, %vm1505
    %v1507 = vsel %vm1506, %v1499, %v1503
    %v1508 = vand.u32 2147483647, %v1437
    %vm1509 = vcmp.eq.f32.partialorder %v1508, 8.507059e+37
    %v1510 = vand.u32 %v1437, 2147483648
    %v1511 = vor.u32 1.1754944e-38, %v1510
    %v1512 = vsel %vm1509, %v1511, %v1507
    %v1513 = vmul.f32 1.0, %v1512
    %v1514 = vrcp.pop %v1438
    %v1515 = vmul.f32 %v1438, %v1514
    %v1516 = vsub.f32 1.0, %v1515
    %v1517 = vmul.f32 %v1514, %v1516
    %v1518 = vadd.f32 %v1514, %v1517
    %vm1519 = vweird.f32 %v1438
    %vm1520 = vweird.f32 %v1514
    %vm1521 = vmor %vm1519, %vm1520
    %v1522 = vsel %vm1521, %v1514, %v1518
    %v1523 = vand.u32 2147483647, %v1438
    %vm1524 = vcmp.eq.f32.partialorder %v1523, 8.507059e+37
    %v1525 = vand.u32 %v1438, 2147483648
    %v1526 = vor.u32 1.1754944e-38, %v1525
    %v1527 = vsel %vm1524, %v1526, %v1522
    %v1528 = vmul.f32 1.0, %v1527
    %v1529 = vtanh.pop %v1410
    %v1530 = vtanh.pop %v1414
    %v1531 = vmul.f32 %v1468, %v1144
    %v1532 = vmul.f32 %v1513, %v1145
    %v1533 = vmul.f32 %v1453, %v1529
    %v1534 = vmul.f32 %v1498, %v1530
    %v1535 = vadd.f32 %v1531, %v1533
    %v1536 = vadd.f32 %v1532, %v1534
    %v1537 = vtanh.pop %v1535
    %v1538 = vtanh.pop %v1536
    %v1539 = vmul.f32 %v1483, %v1537
    %v1540 = vmul.f32 %v1528, %v1538
    %s1541 = smul.u32 0, 24
    %s1542 = sadd.s32 %s1541, %s1146
    %v1543 = vstv %s1542
    %vm1544 = vcmp.gt.s32.totalorder %v1130, %v1543
    %vm1545 = vcmp.gt.s32.totalorder %v1131, %v1543
    %v1546 = vsel %vm1544, 1, 0
    %v1547 = vsel %vm1545, 1, 0
    %v1548 = vcvt.s32.f32 %v1546
    %v1549 = vcvt.s32.f32 %v1547
    %1551 = vset.pattern.permute.xlu0 0
    %1552 = vperm.xlu0 %1551, %v1548
    %v1553 = vpop.permute.xlu0 %1552
    %1556 = vset.pattern.permute.xlu0 0
    %1557 = vperm.xlu0 %1556, %v1549
    %v1558 = vpop.permute.xlu0 %1557
    %v1560 = vmul.f32 %v1539, %v1553
    %v1561 = vmul.f32 %v1540, %v1558
    %s1562 = smul.u32 %s1146, 16
    %s1563 = scalar_lea.vmem %s5, %s1562
    %1564 = vst [vmem:[%s1563] sm:$0xff] %v1560
    %1565 = vst [vmem:[%s1563 + $0x8] sm:$0xff] %v1561
    %s1566 = sadd.s32 %s1146, 1
    %s1567 = smul.u32 %s1566, 8
    %s1568 = smul.addr %s1567, 8
    %s1569 = scalar_lea.vmem [#allocation2], %s1568
    %v1570 = vld [vmem:[%s1569] sm:$0xff]
    %v1571 = vld [vmem:[%s1569 + $0x8] sm:$0xff]
    %v1572 = vld [vmem:[%s1569 + $0x10] sm:$0xff]
    %v1573 = vld [vmem:[%s1569 + $0x18] sm:$0xff]
    %v1574 = vld [vmem:[%s1569 + $0x20] sm:$0xff]
    %v1575 = vld [vmem:[%s1569 + $0x28] sm:$0xff]
    %v1576 = vld [vmem:[%s1569 + $0x30] sm:$0xff]
    %v1577 = vld [vmem:[%s1569 + $0x38] sm:$0xff]
    %v1578 = vpack.c.bf16 %v1540, %v1539
    %v1579 = vld [vmem:[%s3] sm:$0xff]
    %v1580 = vld [vmem:[%s3 + $0x8] sm:$0xff]
    %v1581 = vld [vmem:[%s3 + $0x10] sm:$0xff]
    %v1582 = vld [vmem:[%s3 + $0x18] sm:$0xff]
    %v1583 = vld [vmem:[%s3 + $0x20] sm:$0xff]
    %v1584 = vld [vmem:[%s3 + $0x28] sm:$0xff]
    %v1585 = vld [vmem:[%s3 + $0x30] sm:$0xff]
    %v1586 = vld [vmem:[%s3 + $0x38] sm:$0xff]
    %v1587 = vld [vmem:[%s3 + $0x40] sm:$0xff]
    %v1588 = vld [vmem:[%s3 + $0x48] sm:$0xff]
    %v1589 = vld [vmem:[%s3 + $0x50] sm:$0xff]
    %v1590 = vld [vmem:[%s3 + $0x58] sm:$0xff]
    %v1591 = vld [vmem:[%s3 + $0x60] sm:$0xff]
    %v1592 = vld [vmem:[%s3 + $0x68] sm:$0xff]
    %v1593 = vld [vmem:[%s3 + $0x70] sm:$0xff]
    %v1594 = vld [vmem:[%s3 + $0x78] sm:$0xff]
    %v1595 = vld [vmem:[%s3 + $0x80] sm:$0xff]
    %v1596 = vld [vmem:[%s3 + $0x88] sm:$0xff]
    %v1597 = vld [vmem:[%s3 + $0x90] sm:$0xff]
    %v1598 = vld [vmem:[%s3 + $0x98] sm:$0xff]
    %v1599 = vld [vmem:[%s3 + $0xa0] sm:$0xff]
    %v1600 = vld [vmem:[%s3 + $0xa8] sm:$0xff]
    %v1601 = vld [vmem:[%s3 + $0xb0] sm:$0xff]
    %v1602 = vld [vmem:[%s3 + $0xb8] sm:$0xff]
    %v1603 = vld [vmem:[%s3 + $0xc0] sm:$0xff]
    %v1604 = vld [vmem:[%s3 + $0xc8] sm:$0xff]
    %v1605 = vld [vmem:[%s3 + $0xd0] sm:$0xff]
    %v1606 = vld [vmem:[%s3 + $0xd8] sm:$0xff]
    %v1607 = vld [vmem:[%s3 + $0xe0] sm:$0xff]
    %v1608 = vld [vmem:[%s3 + $0xe8] sm:$0xff]
    %v1609 = vld [vmem:[%s3 + $0xf0] sm:$0xff]
    %v1610 = vld [vmem:[%s3 + $0xf8] sm:$0xff]
    %v1643 = vunpack.c.l.b16 %v1579
    %v1644 = vunpack.c.h.b16 %v1579
    %v1645 = vunpack.c.l.b16 %v1580
    %v1646 = vunpack.c.h.b16 %v1580
    %v1647 = vunpack.c.l.b16 %v1581
    %v1648 = vunpack.c.h.b16 %v1581
    %v1649 = vunpack.c.l.b16 %v1582
    %v1650 = vunpack.c.h.b16 %v1582
    %v1651 = vunpack.c.l.b16 %v1583
    %v1652 = vunpack.c.h.b16 %v1583
    %v1653 = vunpack.c.l.b16 %v1584
    %v1654 = vunpack.c.h.b16 %v1584
    %v1655 = vunpack.c.l.b16 %v1585
    %v1656 = vunpack.c.h.b16 %v1585
    %v1657 = vunpack.c.l.b16 %v1586
    %v1658 = vunpack.c.h.b16 %v1586
    %v1659 = vunpack.c.l.b16 %v1587
    %v1660 = vunpack.c.h.b16 %v1587
    %v1661 = vunpack.c.l.b16 %v1588
    %v1662 = vunpack.c.h.b16 %v1588
    %v1663 = vunpack.c.l.b16 %v1589
    %v1664 = vunpack.c.h.b16 %v1589
    %v1665 = vunpack.c.l.b16 %v1590
    %v1666 = vunpack.c.h.b16 %v1590
    %v1667 = vunpack.c.l.b16 %v1591
    %v1668 = vunpack.c.h.b16 %v1591
    %v1669 = vunpack.c.l.b16 %v1592
    %v1670 = vunpack.c.h.b16 %v1592
    %v1671 = vunpack.c.l.b16 %v1593
    %v1672 = vunpack.c.h.b16 %v1593
    %v1673 = vunpack.c.l.b16 %v1594
    %v1674 = vunpack.c.h.b16 %v1594
    %v1675 = vunpack.c.l.b16 %v1595
    %v1676 = vunpack.c.h.b16 %v1595
    %v1677 = vunpack.c.l.b16 %v1596
    %v1678 = vunpack.c.h.b16 %v1596
    %v1679 = vunpack.c.l.b16 %v1597
    %v1680 = vunpack.c.h.b16 %v1597
    %v1681 = vunpack.c.l.b16 %v1598
    %v1682 = vunpack.c.h.b16 %v1598
    %v1683 = vunpack.c.l.b16 %v1599
    %v1684 = vunpack.c.h.b16 %v1599
    %v1685 = vunpack.c.l.b16 %v1600
    %v1686 = vunpack.c.h.b16 %v1600
    %v1687 = vunpack.c.l.b16 %v1601
    %v1688 = vunpack.c.h.b16 %v1601
    %v1689 = vunpack.c.l.b16 %v1602
    %v1690 = vunpack.c.h.b16 %v1602
    %v1691 = vunpack.c.l.b16 %v1603
    %v1692 = vunpack.c.h.b16 %v1603
    %v1693 = vunpack.c.l.b16 %v1604
    %v1694 = vunpack.c.h.b16 %v1604
    %v1695 = vunpack.c.l.b16 %v1605
    %v1696 = vunpack.c.h.b16 %v1605
    %v1697 = vunpack.c.l.b16 %v1606
    %v1698 = vunpack.c.h.b16 %v1606
    %v1699 = vunpack.c.l.b16 %v1607
    %v1700 = vunpack.c.h.b16 %v1607
    %v1701 = vunpack.c.l.b16 %v1608
    %v1702 = vunpack.c.h.b16 %v1608
    %v1703 = vunpack.c.l.b16 %v1609
    %v1704 = vunpack.c.h.b16 %v1609
    %v1705 = vunpack.c.l.b16 %v1610
    %v1706 = vunpack.c.h.b16 %v1610
    %v1707 = vpack.c.b16 %v1647, %v1643
    %v1708 = vpack.c.b16 %v1648, %v1644
    %v1709 = vpack.c.b16 %v1649, %v1645
    %v1710 = vpack.c.b16 %v1650, %v1646
    %v1711 = vpack.c.b16 %v1655, %v1651
    %v1712 = vpack.c.b16 %v1656, %v1652
    %v1713 = vpack.c.b16 %v1657, %v1653
    %v1714 = vpack.c.b16 %v1658, %v1654
    %v1715 = vpack.c.b16 %v1663, %v1659
    %v1716 = vpack.c.b16 %v1664, %v1660
    %v1717 = vpack.c.b16 %v1665, %v1661
    %v1718 = vpack.c.b16 %v1666, %v1662
    %v1719 = vpack.c.b16 %v1671, %v1667
    %v1720 = vpack.c.b16 %v1672, %v1668
    %v1721 = vpack.c.b16 %v1673, %v1669
    %v1722 = vpack.c.b16 %v1674, %v1670
    %v1723 = vpack.c.b16 %v1679, %v1675
    %v1724 = vpack.c.b16 %v1680, %v1676
    %v1725 = vpack.c.b16 %v1681, %v1677
    %v1726 = vpack.c.b16 %v1682, %v1678
    %v1727 = vpack.c.b16 %v1687, %v1683
    %v1728 = vpack.c.b16 %v1688, %v1684
    %v1729 = vpack.c.b16 %v1689, %v1685
    %v1730 = vpack.c.b16 %v1690, %v1686
    %v1731 = vpack.c.b16 %v1695, %v1691
    %v1732 = vpack.c.b16 %v1696, %v1692
    %v1733 = vpack.c.b16 %v1697, %v1693
    %v1734 = vpack.c.b16 %v1698, %v1694
    %v1735 = vpack.c.b16 %v1703, %v1699
    %v1736 = vpack.c.b16 %v1704, %v1700
    %v1737 = vpack.c.b16 %v1705, %v1701
    %v1738 = vpack.c.b16 %v1706, %v1702
    %1771 = vmatpush.bf16.msra.mxu0 %v1735
    %1772 = vmatpush.bf16.msra.mxu0 %v1731
    %1773 = vmatpush.bf16.msra.mxu0 %v1727
    %1774 = vmatpush.bf16.msra.mxu0 %v1723
    %1775 = vmatpush.bf16.msra.mxu0 %v1719
    %1776 = vmatpush.bf16.msra.mxu0 %v1715
    %1777 = vmatpush.bf16.msra.mxu0 %v1711
    %1778 = vmatpush.bf16.msra.mxu0 %v1707
    %1779 = vmatmul.bf16.gmra.mxu0 %v1578
    %v1780 = vpop.f32.mrf.mxu0
    %v1781 = vadd.f32 0.0, %v1780
    %v1782 = vpop.f32.mrf.mxu0
    %v1783 = vadd.f32 0.0, %v1782
    %1784 = vdwg.mxu0
    %1785 = vmatpush.bf16.msra.mxu0 %v1736
    %1786 = vmatpush.bf16.msra.mxu0 %v1732
    %1787 = vmatpush.bf16.msra.mxu0 %v1728
    %1788 = vmatpush.bf16.msra.mxu0 %v1724
    %1789 = vmatpush.bf16.msra.mxu0 %v1720
    %1790 = vmatpush.bf16.msra.mxu0 %v1716
    %1791 = vmatpush.bf16.msra.mxu0 %v1712
    %1792 = vmatpush.bf16.msra.mxu0 %v1708
    %1793 = vmatmul.bf16.gmra.mxu0 %v1578
    %v1794 = vpop.f32.mrf.mxu0
    %v1795 = vadd.f32 0.0, %v1794
    %v1796 = vpop.f32.mrf.mxu0
    %v1797 = vadd.f32 0.0, %v1796
    %1798 = vdwg.mxu0
    %1799 = vmatpush.bf16.msra.mxu0 %v1737
    %1800 = vmatpush.bf16.msra.mxu0 %v1733
    %1801 = vmatpush.bf16.msra.mxu0 %v1729
    %1802 = vmatpush.bf16.msra.mxu0 %v1725
    %1803 = vmatpush.bf16.msra.mxu0 %v1721
    %1804 = vmatpush.bf16.msra.mxu0 %v1717
    %1805 = vmatpush.bf16.msra.mxu0 %v1713
    %1806 = vmatpush.bf16.msra.mxu0 %v1709
    %1807 = vmatmul.bf16.gmra.mxu0 %v1578
    %v1808 = vpop.f32.mrf.mxu0
    %v1809 = vadd.f32 0.0, %v1808
    %v1810 = vpop.f32.mrf.mxu0
    %v1811 = vadd.f32 0.0, %v1810
    %1812 = vdwg.mxu0
    %1813 = vmatpush.bf16.msra.mxu0 %v1738
    %1814 = vmatpush.bf16.msra.mxu0 %v1734
    %1815 = vmatpush.bf16.msra.mxu0 %v1730
    %1816 = vmatpush.bf16.msra.mxu0 %v1726
    %1817 = vmatpush.bf16.msra.mxu0 %v1722
    %1818 = vmatpush.bf16.msra.mxu0 %v1718
    %1819 = vmatpush.bf16.msra.mxu0 %v1714
    %1820 = vmatpush.bf16.msra.mxu0 %v1710
    %1821 = vmatmul.bf16.gmra.mxu0 %v1578
    %v1822 = vpop.f32.mrf.mxu0
    %v1823 = vadd.f32 0.0, %v1822
    %v1824 = vpop.f32.mrf.mxu0
    %v1825 = vadd.f32 0.0, %v1824
    %1826 = vdwg.mxu0
    %v1827 = vadd.f32 %v1570, %v1781
    %v1828 = vadd.f32 %v1571, %v1795
    %v1829 = vadd.f32 %v1572, %v1809
    %v1830 = vadd.f32 %v1573, %v1823
    %v1831 = vadd.f32 %v1574, %v1783
    %v1832 = vadd.f32 %v1575, %v1797
    %v1833 = vadd.f32 %v1576, %v1811
    %v1834 = vadd.f32 %v1577, %v1825
    %v1835 = vxor.u32 %v1827, 2147483648
    %v1836 = vxor.u32 %v1828, 2147483648
    %v1837 = vxor.u32 %v1829, 2147483648
    %v1838 = vxor.u32 %v1831, 2147483648
    %v1839 = vxor.u32 %v1832, 2147483648
    %v1840 = vxor.u32 %v1833, 2147483648
    %v1841 = vmul.f32 %v1835, 1.442695
    %v1842 = vpow.pop %v1841
    %v1843 = vmul.f32 %v1836, 1.442695
    %v1844 = vpow.pop %v1843
    %v1845 = vmul.f32 %v1837, 1.442695
    %v1846 = vpow.pop %v1845
    %v1847 = vmul.f32 %v1838, 1.442695
    %v1848 = vpow.pop %v1847
    %v1849 = vmul.f32 %v1839, 1.442695
    %v1850 = vpow.pop %v1849
    %v1851 = vmul.f32 %v1840, 1.442695
    %v1852 = vpow.pop %v1851
    %v1853 = vadd.f32 %v1842, 1.0
    %v1854 = vadd.f32 %v1844, 1.0
    %v1855 = vadd.f32 %v1846, 1.0
    %v1856 = vadd.f32 %v1848, 1.0
    %v1857 = vadd.f32 %v1850, 1.0
    %v1858 = vadd.f32 %v1852, 1.0
    %v1859 = vrcp.pop %v1853
    %v1860 = vmul.f32 %v1853, %v1859
    %v1861 = vsub.f32 1.0, %v1860
    %v1862 = vmul.f32 %v1859, %v1861
    %v1863 = vadd.f32 %v1859, %v1862
    %vm1864 = vweird.f32 %v1853
    %vm1865 = vweird.f32 %v1859
    %vm1866 = vmor %vm1864, %vm1865
    %v1867 = vsel %vm1866, %v1859, %v1863
    %v1868 = vand.u32 2147483647, %v1853
    %vm1869 = vcmp.eq.f32.partialorder %v1868, 8.507059e+37
    %v1870 = vand.u32 %v1853, 2147483648
    %v1871 = vor.u32 1.1754944e-38, %v1870
    %v1872 = vsel %vm1869, %v1871, %v1867
    %v1873 = vmul.f32 1.0, %v1872
    %v1874 = vrcp.pop %v1854
    %v1875 = vmul.f32 %v1854, %v1874
    %v1876 = vsub.f32 1.0, %v1875
    %v1877 = vmul.f32 %v1874, %v1876
    %v1878 = vadd.f32 %v1874, %v1877
    %vm1879 = vweird.f32 %v1854
    %vm1880 = vweird.f32 %v1874
    %vm1881 = vmor %vm1879, %vm1880
    %v1882 = vsel %vm1881, %v1874, %v1878
    %v1883 = vand.u32 2147483647, %v1854
    %vm1884 = vcmp.eq.f32.partialorder %v1883, 8.507059e+37
    %v1885 = vand.u32 %v1854, 2147483648
    %v1886 = vor.u32 1.1754944e-38, %v1885
    %v1887 = vsel %vm1884, %v1886, %v1882
    %v1888 = vmul.f32 1.0, %v1887
    %v1889 = vrcp.pop %v1855
    %v1890 = vmul.f32 %v1855, %v1889
    %v1891 = vsub.f32 1.0, %v1890
    %v1892 = vmul.f32 %v1889, %v1891
    %v1893 = vadd.f32 %v1889, %v1892
    %vm1894 = vweird.f32 %v1855
    %vm1895 = vweird.f32 %v1889
    %vm1896 = vmor %vm1894, %vm1895
    %v1897 = vsel %vm1896, %v1889, %v1893
    %v1898 = vand.u32 2147483647, %v1855
    %vm1899 = vcmp.eq.f32.partialorder %v1898, 8.507059e+37
    %v1900 = vand.u32 %v1855, 2147483648
    %v1901 = vor.u32 1.1754944e-38, %v1900
    %v1902 = vsel %vm1899, %v1901, %v1897
    %v1903 = vmul.f32 1.0, %v1902
    %v1904 = vrcp.pop %v1856
    %v1905 = vmul.f32 %v1856, %v1904
    %v1906 = vsub.f32 1.0, %v1905
    %v1907 = vmul.f32 %v1904, %v1906
    %v1908 = vadd.f32 %v1904, %v1907
    %vm1909 = vweird.f32 %v1856
    %vm1910 = vweird.f32 %v1904
    %vm1911 = vmor %vm1909, %vm1910
    %v1912 = vsel %vm1911, %v1904, %v1908
    %v1913 = vand.u32 2147483647, %v1856
    %vm1914 = vcmp.eq.f32.partialorder %v1913, 8.507059e+37
    %v1915 = vand.u32 %v1856, 2147483648
    %v1916 = vor.u32 1.1754944e-38, %v1915
    %v1917 = vsel %vm1914, %v1916, %v1912
    %v1918 = vmul.f32 1.0, %v1917
    %v1919 = vrcp.pop %v1857
    %v1920 = vmul.f32 %v1857, %v1919
    %v1921 = vsub.f32 1.0, %v1920
    %v1922 = vmul.f32 %v1919, %v1921
    %v1923 = vadd.f32 %v1919, %v1922
    %vm1924 = vweird.f32 %v1857
    %vm1925 = vweird.f32 %v1919
    %vm1926 = vmor %vm1924, %vm1925
    %v1927 = vsel %vm1926, %v1919, %v1923
    %v1928 = vand.u32 2147483647, %v1857
    %vm1929 = vcmp.eq.f32.partialorder %v1928, 8.507059e+37
    %v1930 = vand.u32 %v1857, 2147483648
    %v1931 = vor.u32 1.1754944e-38, %v1930
    %v1932 = vsel %vm1929, %v1931, %v1927
    %v1933 = vmul.f32 1.0, %v1932
    %v1934 = vrcp.pop %v1858
    %v1935 = vmul.f32 %v1858, %v1934
    %v1936 = vsub.f32 1.0, %v1935
    %v1937 = vmul.f32 %v1934, %v1936
    %v1938 = vadd.f32 %v1934, %v1937
    %vm1939 = vweird.f32 %v1858
    %vm1940 = vweird.f32 %v1934
    %vm1941 = vmor %vm1939, %vm1940
    %v1942 = vsel %vm1941, %v1934, %v1938
    %v1943 = vand.u32 2147483647, %v1858
    %vm1944 = vcmp.eq.f32.partialorder %v1943, 8.507059e+37
    %v1945 = vand.u32 %v1858, 2147483648
    %v1946 = vor.u32 1.1754944e-38, %v1945
    %v1947 = vsel %vm1944, %v1946, %v1942
    %v1948 = vmul.f32 1.0, %v1947
    %v1949 = vtanh.pop %v1830
    %v1950 = vtanh.pop %v1834
    %v1951 = vmul.f32 %v1888, %v1535
    %v1952 = vmul.f32 %v1933, %v1536
    %v1953 = vmul.f32 %v1873, %v1949
    %v1954 = vmul.f32 %v1918, %v1950
    %v1955 = vadd.f32 %v1951, %v1953
    %v1956 = vadd.f32 %v1952, %v1954
    %v1957 = vtanh.pop %v1955
    %v1958 = vtanh.pop %v1956
    %v1959 = vmul.f32 %v1903, %v1957
    %v1960 = vmul.f32 %v1948, %v1958
    %s1961 = sadd.s32 %s1541, %s1566
    %v1962 = vstv %s1961
    %vm1963 = vcmp.gt.s32.totalorder %v1130, %v1962
    %vm1964 = vcmp.gt.s32.totalorder %v1131, %v1962
    %v1965 = vsel %vm1963, 1, 0
    %v1966 = vsel %vm1964, 1, 0
    %v1967 = vcvt.s32.f32 %v1965
    %v1968 = vcvt.s32.f32 %v1966
    %1970 = vset.pattern.permute.xlu0 0
    %1971 = vperm.xlu0 %1970, %v1967
    %v1972 = vpop.permute.xlu0 %1971
    %1975 = vset.pattern.permute.xlu0 0
    %1976 = vperm.xlu0 %1975, %v1968
    %v1977 = vpop.permute.xlu0 %1976
    %v1979 = vmul.f32 %v1959, %v1972
    %v1980 = vmul.f32 %v1960, %v1977
    %s1981 = smul.u32 %s1566, 16
    %s1982 = scalar_lea.vmem %s5, %s1981
    %1983 = vst [vmem:[%s1982] sm:$0xff] %v1979
    %1984 = vst [vmem:[%s1982 + $0x8] sm:$0xff] %v1980
    %s1985 = sadd.s32 %s1146, 2
    %s1986 = smul.u32 %s1985, 8
    %s1987 = smul.addr %s1986, 8
    %s1988 = scalar_lea.vmem [#allocation2], %s1987
    %v1989 = vld [vmem:[%s1988] sm:$0xff]
    %v1990 = vld [vmem:[%s1988 + $0x8] sm:$0xff]
    %v1991 = vld [vmem:[%s1988 + $0x10] sm:$0xff]
    %v1992 = vld [vmem:[%s1988 + $0x18] sm:$0xff]
    %v1993 = vld [vmem:[%s1988 + $0x20] sm:$0xff]
    %v1994 = vld [vmem:[%s1988 + $0x28] sm:$0xff]
    %v1995 = vld [vmem:[%s1988 + $0x30] sm:$0xff]
    %v1996 = vld [vmem:[%s1988 + $0x38] sm:$0xff]
    %v1997 = vpack.c.bf16 %v1960, %v1959
    %v1998 = vld [vmem:[%s3] sm:$0xff]
    %v1999 = vld [vmem:[%s3 + $0x8] sm:$0xff]
    %v2000 = vld [vmem:[%s3 + $0x10] sm:$0xff]
    %v2001 = vld [vmem:[%s3 + $0x18] sm:$0xff]
    %v2002 = vld [vmem:[%s3 + $0x20] sm:$0xff]
    %v2003 = vld [vmem:[%s3 + $0x28] sm:$0xff]
    %v2004 = vld [vmem:[%s3 + $0x30] sm:$0xff]
    %v2005 = vld [vmem:[%s3 + $0x38] sm:$0xff]
    %v2006 = vld [vmem:[%s3 + $0x40] sm:$0xff]
    %v2007 = vld [vmem:[%s3 + $0x48] sm:$0xff]
    %v2008 = vld [vmem:[%s3 + $0x50] sm:$0xff]
    %v2009 = vld [vmem:[%s3 + $0x58] sm:$0xff]
    %v2010 = vld [vmem:[%s3 + $0x60] sm:$0xff]
    %v2011 = vld [vmem:[%s3 + $0x68] sm:$0xff]
    %v2012 = vld [vmem:[%s3 + $0x70] sm:$0xff]
    %v2013 = vld [vmem:[%s3 + $0x78] sm:$0xff]
    %v2014 = vld [vmem:[%s3 + $0x80] sm:$0xff]
    %v2015 = vld [vmem:[%s3 + $0x88] sm:$0xff]
    %v2016 = vld [vmem:[%s3 + $0x90] sm:$0xff]
    %v2017 = vld [vmem:[%s3 + $0x98] sm:$0xff]
    %v2018 = vld [vmem:[%s3 + $0xa0] sm:$0xff]
    %v2019 = vld [vmem:[%s3 + $0xa8] sm:$0xff]
    %v2020 = vld [vmem:[%s3 + $0xb0] sm:$0xff]
    %v2021 = vld [vmem:[%s3 + $0xb8] sm:$0xff]
    %v2022 = vld [vmem:[%s3 + $0xc0] sm:$0xff]
    %v2023 = vld [vmem:[%s3 + $0xc8] sm:$0xff]
    %v2024 = vld [vmem:[%s3 + $0xd0] sm:$0xff]
    %v2025 = vld [vmem:[%s3 + $0xd8] sm:$0xff]
    %v2026 = vld [vmem:[%s3 + $0xe0] sm:$0xff]
    %v2027 = vld [vmem:[%s3 + $0xe8] sm:$0xff]
    %v2028 = vld [vmem:[%s3 + $0xf0] sm:$0xff]
    %v2029 = vld [vmem:[%s3 + $0xf8] sm:$0xff]
    %v2062 = vunpack.c.l.b16 %v1998
    %v2063 = vunpack.c.h.b16 %v1998
    %v2064 = vunpack.c.l.b16 %v1999
    %v2065 = vunpack.c.h.b16 %v1999
    %v2066 = vunpack.c.l.b16 %v2000
    %v2067 = vunpack.c.h.b16 %v2000
    %v2068 = vunpack.c.l.b16 %v2001
    %v2069 = vunpack.c.h.b16 %v2001
    %v2070 = vunpack.c.l.b16 %v2002
    %v2071 = vunpack.c.h.b16 %v2002
    %v2072 = vunpack.c.l.b16 %v2003
    %v2073 = vunpack.c.h.b16 %v2003
    %v2074 = vunpack.c.l.b16 %v2004
    %v2075 = vunpack.c.h.b16 %v2004
    %v2076 = vunpack.c.l.b16 %v2005
    %v2077 = vunpack.c.h.b16 %v2005
    %v2078 = vunpack.c.l.b16 %v2006
    %v2079 = vunpack.c.h.b16 %v2006
    %v2080 = vunpack.c.l.b16 %v2007
    %v2081 = vunpack.c.h.b16 %v2007
    %v2082 = vunpack.c.l.b16 %v2008
    %v2083 = vunpack.c.h.b16 %v2008
    %v2084 = vunpack.c.l.b16 %v2009
    %v2085 = vunpack.c.h.b16 %v2009
    %v2086 = vunpack.c.l.b16 %v2010
    %v2087 = vunpack.c.h.b16 %v2010
    %v2088 = vunpack.c.l.b16 %v2011
    %v2089 = vunpack.c.h.b16 %v2011
    %v2090 = vunpack.c.l.b16 %v2012
    %v2091 = vunpack.c.h.b16 %v2012
    %v2092 = vunpack.c.l.b16 %v2013
    %v2093 = vunpack.c.h.b16 %v2013
    %v2094 = vunpack.c.l.b16 %v2014
    %v2095 = vunpack.c.h.b16 %v2014
    %v2096 = vunpack.c.l.b16 %v2015
    %v2097 = vunpack.c.h.b16 %v2015
    %v2098 = vunpack.c.l.b16 %v2016
    %v2099 = vunpack.c.h.b16 %v2016
    %v2100 = vunpack.c.l.b16 %v2017
    %v2101 = vunpack.c.h.b16 %v2017
    %v2102 = vunpack.c.l.b16 %v2018
    %v2103 = vunpack.c.h.b16 %v2018
    %v2104 = vunpack.c.l.b16 %v2019
    %v2105 = vunpack.c.h.b16 %v2019
    %v2106 = vunpack.c.l.b16 %v2020
    %v2107 = vunpack.c.h.b16 %v2020
    %v2108 = vunpack.c.l.b16 %v2021
    %v2109 = vunpack.c.h.b16 %v2021
    %v2110 = vunpack.c.l.b16 %v2022
    %v2111 = vunpack.c.h.b16 %v2022
    %v2112 = vunpack.c.l.b16 %v2023
    %v2113 = vunpack.c.h.b16 %v2023
    %v2114 = vunpack.c.l.b16 %v2024
    %v2115 = vunpack.c.h.b16 %v2024
    %v2116 = vunpack.c.l.b16 %v2025
    %v2117 = vunpack.c.h.b16 %v2025
    %v2118 = vunpack.c.l.b16 %v2026
    %v2119 = vunpack.c.h.b16 %v2026
    %v2120 = vunpack.c.l.b16 %v2027
    %v2121 = vunpack.c.h.b16 %v2027
    %v2122 = vunpack.c.l.b16 %v2028
    %v2123 = vunpack.c.h.b16 %v2028
    %v2124 = vunpack.c.l.b16 %v2029
    %v2125 = vunpack.c.h.b16 %v2029
    %v2126 = vpack.c.b16 %v2066, %v2062
    %v2127 = vpack.c.b16 %v2067, %v2063
    %v2128 = vpack.c.b16 %v2068, %v2064
    %v2129 = vpack.c.b16 %v2069, %v2065
    %v2130 = vpack.c.b16 %v2074, %v2070
    %v2131 = vpack.c.b16 %v2075, %v2071
    %v2132 = vpack.c.b16 %v2076, %v2072
    %v2133 = vpack.c.b16 %v2077, %v2073
    %v2134 = vpack.c.b16 %v2082, %v2078
    %v2135 = vpack.c.b16 %v2083, %v2079
    %v2136 = vpack.c.b16 %v2084, %v2080
    %v2137 = vpack.c.b16 %v2085, %v2081
    %v2138 = vpack.c.b16 %v2090, %v2086
    %v2139 = vpack.c.b16 %v2091, %v2087
    %v2140 = vpack.c.b16 %v2092, %v2088
    %v2141 = vpack.c.b16 %v2093, %v2089
    %v2142 = vpack.c.b16 %v2098, %v2094
    %v2143 = vpack.c.b16 %v2099, %v2095
    %v2144 = vpack.c.b16 %v2100, %v2096
    %v2145 = vpack.c.b16 %v2101, %v2097
    %v2146 = vpack.c.b16 %v2106, %v2102
    %v2147 = vpack.c.b16 %v2107, %v2103
    %v2148 = vpack.c.b16 %v2108, %v2104
    %v2149 = vpack.c.b16 %v2109, %v2105
    %v2150 = vpack.c.b16 %v2114, %v2110
    %v2151 = vpack.c.b16 %v2115, %v2111
    %v2152 = vpack.c.b16 %v2116, %v2112
    %v2153 = vpack.c.b16 %v2117, %v2113
    %v2154 = vpack.c.b16 %v2122, %v2118
    %v2155 = vpack.c.b16 %v2123, %v2119
    %v2156 = vpack.c.b16 %v2124, %v2120
    %v2157 = vpack.c.b16 %v2125, %v2121
    %2190 = vmatpush.bf16.msra.mxu0 %v2154
    %2191 = vmatpush.bf16.msra.mxu0 %v2150
    %2192 = vmatpush.bf16.msra.mxu0 %v2146
    %2193 = vmatpush.bf16.msra.mxu0 %v2142
    %2194 = vmatpush.bf16.msra.mxu0 %v2138
    %2195 = vmatpush.bf16.msra.mxu0 %v2134
    %2196 = vmatpush.bf16.msra.mxu0 %v2130
    %2197 = vmatpush.bf16.msra.mxu0 %v2126
    %2198 = vmatmul.bf16.gmra.mxu0 %v1997
    %v2199 = vpop.f32.mrf.mxu0
    %v2200 = vadd.f32 0.0, %v2199
    %v2201 = vpop.f32.mrf.mxu0
    %v2202 = vadd.f32 0.0, %v2201
    %2203 = vdwg.mxu0
    %2204 = vmatpush.bf16.msra.mxu0 %v2155
    %2205 = vmatpush.bf16.msra.mxu0 %v2151
    %2206 = vmatpush.bf16.msra.mxu0 %v2147
    %2207 = vmatpush.bf16.msra.mxu0 %v2143
    %2208 = vmatpush.bf16.msra.mxu0 %v2139
    %2209 = vmatpush.bf16.msra.mxu0 %v2135
    %2210 = vmatpush.bf16.msra.mxu0 %v2131
    %2211 = vmatpush.bf16.msra.mxu0 %v2127
    %2212 = vmatmul.bf16.gmra.mxu0 %v1997
    %v2213 = vpop.f32.mrf.mxu0
    %v2214 = vadd.f32 0.0, %v2213
    %v2215 = vpop.f32.mrf.mxu0
    %v2216 = vadd.f32 0.0, %v2215
    %2217 = vdwg.mxu0
    %2218 = vmatpush.bf16.msra.mxu0 %v2156
    %2219 = vmatpush.bf16.msra.mxu0 %v2152
    %2220 = vmatpush.bf16.msra.mxu0 %v2148
    %2221 = vmatpush.bf16.msra.mxu0 %v2144
    %2222 = vmatpush.bf16.msra.mxu0 %v2140
    %2223 = vmatpush.bf16.msra.mxu0 %v2136
    %2224 = vmatpush.bf16.msra.mxu0 %v2132
    %2225 = vmatpush.bf16.msra.mxu0 %v2128
    %2226 = vmatmul.bf16.gmra.mxu0 %v1997
    %v2227 = vpop.f32.mrf.mxu0
    %v2228 = vadd.f32 0.0, %v2227
    %v2229 = vpop.f32.mrf.mxu0
    %v2230 = vadd.f32 0.0, %v2229
    %2231 = vdwg.mxu0
    %2232 = vmatpush.bf16.msra.mxu0 %v2157
    %2233 = vmatpush.bf16.msra.mxu0 %v2153
    %2234 = vmatpush.bf16.msra.mxu0 %v2149
    %2235 = vmatpush.bf16.msra.mxu0 %v2145
    %2236 = vmatpush.bf16.msra.mxu0 %v2141
    %2237 = vmatpush.bf16.msra.mxu0 %v2137
    %2238 = vmatpush.bf16.msra.mxu0 %v2133
    %2239 = vmatpush.bf16.msra.mxu0 %v2129
    %2240 = vmatmul.bf16.gmra.mxu0 %v1997
    %v2241 = vpop.f32.mrf.mxu0
    %v2242 = vadd.f32 0.0, %v2241
    %v2243 = vpop.f32.mrf.mxu0
    %v2244 = vadd.f32 0.0, %v2243
    %2245 = vdwg.mxu0
    %v2246 = vadd.f32 %v1989, %v2200
    %v2247 = vadd.f32 %v1990, %v2214
    %v2248 = vadd.f32 %v1991, %v2228
    %v2249 = vadd.f32 %v1992, %v2242
    %v2250 = vadd.f32 %v1993, %v2202
    %v2251 = vadd.f32 %v1994, %v2216
    %v2252 = vadd.f32 %v1995, %v2230
    %v2253 = vadd.f32 %v1996, %v2244
    %v2254 = vxor.u32 %v2246, 2147483648
    %v2255 = vxor.u32 %v2247, 2147483648
    %v2256 = vxor.u32 %v2248, 2147483648
    %v2257 = vxor.u32 %v2250, 2147483648
    %v2258 = vxor.u32 %v2251, 2147483648
    %v2259 = vxor.u32 %v2252, 2147483648
    %v2260 = vmul.f32 %v2254, 1.442695
    %v2261 = vpow.pop %v2260
    %v2262 = vmul.f32 %v2255, 1.442695
    %v2263 = vpow.pop %v2262
    %v2264 = vmul.f32 %v2256, 1.442695
    %v2265 = vpow.pop %v2264
    %v2266 = vmul.f32 %v2257, 1.442695
    %v2267 = vpow.pop %v2266
    %v2268 = vmul.f32 %v2258, 1.442695
    %v2269 = vpow.pop %v2268
    %v2270 = vmul.f32 %v2259, 1.442695
    %v2271 = vpow.pop %v2270
    %v2272 = vadd.f32 %v2261, 1.0
    %v2273 = vadd.f32 %v2263, 1.0
    %v2274 = vadd.f32 %v2265, 1.0
    %v2275 = vadd.f32 %v2267, 1.0
    %v2276 = vadd.f32 %v2269, 1.0
    %v2277 = vadd.f32 %v2271, 1.0
    %v2278 = vrcp.pop %v2272
    %v2279 = vmul.f32 %v2272, %v2278
    %v2280 = vsub.f32 1.0, %v2279
    %v2281 = vmul.f32 %v2278, %v2280
    %v2282 = vadd.f32 %v2278, %v2281
    %vm2283 = vweird.f32 %v2272
    %vm2284 = vweird.f32 %v2278
    %vm2285 = vmor %vm2283, %vm2284
    %v2286 = vsel %vm2285, %v2278, %v2282
    %v2287 = vand.u32 2147483647, %v2272
    %vm2288 = vcmp.eq.f32.partialorder %v2287, 8.507059e+37
    %v2289 = vand.u32 %v2272, 2147483648
    %v2290 = vor.u32 1.1754944e-38, %v2289
    %v2291 = vsel %vm2288, %v2290, %v2286
    %v2292 = vmul.f32 1.0, %v2291
    %v2293 = vrcp.pop %v2273
    %v2294 = vmul.f32 %v2273, %v2293
    %v2295 = vsub.f32 1.0, %v2294
    %v2296 = vmul.f32 %v2293, %v2295
    %v2297 = vadd.f32 %v2293, %v2296
    %vm2298 = vweird.f32 %v2273
    %vm2299 = vweird.f32 %v2293
    %vm2300 = vmor %vm2298, %vm2299
    %v2301 = vsel %vm2300, %v2293, %v2297
    %v2302 = vand.u32 2147483647, %v2273
    %vm2303 = vcmp.eq.f32.partialorder %v2302, 8.507059e+37
    %v2304 = vand.u32 %v2273, 2147483648
    %v2305 = vor.u32 1.1754944e-38, %v2304
    %v2306 = vsel %vm2303, %v2305, %v2301
    %v2307 = vmul.f32 1.0, %v2306
    %v2308 = vrcp.pop %v2274
    %v2309 = vmul.f32 %v2274, %v2308
    %v2310 = vsub.f32 1.0, %v2309
    %v2311 = vmul.f32 %v2308, %v2310
    %v2312 = vadd.f32 %v2308, %v2311
    %vm2313 = vweird.f32 %v2274
    %vm2314 = vweird.f32 %v2308
    %vm2315 = vmor %vm2313, %vm2314
    %v2316 = vsel %vm2315, %v2308, %v2312
    %v2317 = vand.u32 2147483647, %v2274
    %vm2318 = vcmp.eq.f32.partialorder %v2317, 8.507059e+37
    %v2319 = vand.u32 %v2274, 2147483648
    %v2320 = vor.u32 1.1754944e-38, %v2319
    %v2321 = vsel %vm2318, %v2320, %v2316
    %v2322 = vmul.f32 1.0, %v2321
    %v2323 = vrcp.pop %v2275
    %v2324 = vmul.f32 %v2275, %v2323
    %v2325 = vsub.f32 1.0, %v2324
    %v2326 = vmul.f32 %v2323, %v2325
    %v2327 = vadd.f32 %v2323, %v2326
    %vm2328 = vweird.f32 %v2275
    %vm2329 = vweird.f32 %v2323
    %vm2330 = vmor %vm2328, %vm2329
    %v2331 = vsel %vm2330, %v2323, %v2327
    %v2332 = vand.u32 2147483647, %v2275
    %vm2333 = vcmp.eq.f32.partialorder %v2332, 8.507059e+37
    %v2334 = vand.u32 %v2275, 2147483648
    %v2335 = vor.u32 1.1754944e-38, %v2334
    %v2336 = vsel %vm2333, %v2335, %v2331
    %v2337 = vmul.f32 1.0, %v2336
    %v2338 = vrcp.pop %v2276
    %v2339 = vmul.f32 %v2276, %v2338
    %v2340 = vsub.f32 1.0, %v2339
    %v2341 = vmul.f32 %v2338, %v2340
    %v2342 = vadd.f32 %v2338, %v2341
    %vm2343 = vweird.f32 %v2276
    %vm2344 = vweird.f32 %v2338
    %vm2345 = vmor %vm2343, %vm2344
    %v2346 = vsel %vm2345, %v2338, %v2342
    %v2347 = vand.u32 2147483647, %v2276
    %vm2348 = vcmp.eq.f32.partialorder %v2347, 8.507059e+37
    %v2349 = vand.u32 %v2276, 2147483648
    %v2350 = vor.u32 1.1754944e-38, %v2349
    %v2351 = vsel %vm2348, %v2350, %v2346
    %v2352 = vmul.f32 1.0, %v2351
    %v2353 = vrcp.pop %v2277
    %v2354 = vmul.f32 %v2277, %v2353
    %v2355 = vsub.f32 1.0, %v2354
    %v2356 = vmul.f32 %v2353, %v2355
    %v2357 = vadd.f32 %v2353, %v2356
    %vm2358 = vweird.f32 %v2277
    %vm2359 = vweird.f32 %v2353
    %vm2360 = vmor %vm2358, %vm2359
    %v2361 = vsel %vm2360, %v2353, %v2357
    %v2362 = vand.u32 2147483647, %v2277
    %vm2363 = vcmp.eq.f32.partialorder %v2362, 8.507059e+37
    %v2364 = vand.u32 %v2277, 2147483648
    %v2365 = vor.u32 1.1754944e-38, %v2364
    %v2366 = vsel %vm2363, %v2365, %v2361
    %v2367 = vmul.f32 1.0, %v2366
    %v2368 = vtanh.pop %v2249
    %v2369 = vtanh.pop %v2253
    %v2370 = vmul.f32 %v2307, %v1955
    %v2371 = vmul.f32 %v2352, %v1956
    %v2372 = vmul.f32 %v2292, %v2368
    %v2373 = vmul.f32 %v2337, %v2369
    %v2374 = vadd.f32 %v2370, %v2372
    %v2375 = vadd.f32 %v2371, %v2373
    %v2376 = vtanh.pop %v2374
    %v2377 = vtanh.pop %v2375
    %v2378 = vmul.f32 %v2322, %v2376
    %v2379 = vmul.f32 %v2367, %v2377
    %s2380 = sadd.s32 %s1541, %s1985
    %v2381 = vstv %s2380
    %vm2382 = vcmp.gt.s32.totalorder %v1130, %v2381
    %vm2383 = vcmp.gt.s32.totalorder %v1131, %v2381
    %v2384 = vsel %vm2382, 1, 0
    %v2385 = vsel %vm2383, 1, 0
    %v2386 = vcvt.s32.f32 %v2384
    %v2387 = vcvt.s32.f32 %v2385
    %2389 = vset.pattern.permute.xlu0 0
    %2390 = vperm.xlu0 %2389, %v2386
    %v2391 = vpop.permute.xlu0 %2390
    %2394 = vset.pattern.permute.xlu0 0
    %2395 = vperm.xlu0 %2394, %v2387
    %v2396 = vpop.permute.xlu0 %2395
    %v2398 = vmul.f32 %v2378, %v2391
    %v2399 = vmul.f32 %v2379, %v2396
    %s2400 = smul.u32 %s1985, 16
    %s2401 = scalar_lea.vmem %s5, %s2400
    %2402 = vst [vmem:[%s2401] sm:$0xff] %v2398
    %2403 = vst [vmem:[%s2401 + $0x8] sm:$0xff] %v2399
    %s2404 = sadd.s32 %s1146, 3
    %s2405 = smul.u32 %s2404, 8
    %s2406 = smul.addr %s2405, 8
    %s2407 = scalar_lea.vmem [#allocation2], %s2406
    %v2408 = vld [vmem:[%s2407] sm:$0xff]
    %v2409 = vld [vmem:[%s2407 + $0x8] sm:$0xff]
    %v2410 = vld [vmem:[%s2407 + $0x10] sm:$0xff]
    %v2411 = vld [vmem:[%s2407 + $0x18] sm:$0xff]
    %v2412 = vld [vmem:[%s2407 + $0x20] sm:$0xff]
    %v2413 = vld [vmem:[%s2407 + $0x28] sm:$0xff]
    %v2414 = vld [vmem:[%s2407 + $0x30] sm:$0xff]
    %v2415 = vld [vmem:[%s2407 + $0x38] sm:$0xff]
    %v2416 = vpack.c.bf16 %v2379, %v2378
    %v2417 = vld [vmem:[%s3] sm:$0xff]
    %v2418 = vld [vmem:[%s3 + $0x8] sm:$0xff]
    %v2419 = vld [vmem:[%s3 + $0x10] sm:$0xff]
    %v2420 = vld [vmem:[%s3 + $0x18] sm:$0xff]
    %v2421 = vld [vmem:[%s3 + $0x20] sm:$0xff]
    %v2422 = vld [vmem:[%s3 + $0x28] sm:$0xff]
    %v2423 = vld [vmem:[%s3 + $0x30] sm:$0xff]
    %v2424 = vld [vmem:[%s3 + $0x38] sm:$0xff]
    %v2425 = vld [vmem:[%s3 + $0x40] sm:$0xff]
    %v2426 = vld [vmem:[%s3 + $0x48] sm:$0xff]
    %v2427 = vld [vmem:[%s3 + $0x50] sm:$0xff]
    %v2428 = vld [vmem:[%s3 + $0x58] sm:$0xff]
    %v2429 = vld [vmem:[%s3 + $0x60] sm:$0xff]
    %v2430 = vld [vmem:[%s3 + $0x68] sm:$0xff]
    %v2431 = vld [vmem:[%s3 + $0x70] sm:$0xff]
    %v2432 = vld [vmem:[%s3 + $0x78] sm:$0xff]
    %v2433 = vld [vmem:[%s3 + $0x80] sm:$0xff]
    %v2434 = vld [vmem:[%s3 + $0x88] sm:$0xff]
    %v2435 = vld [vmem:[%s3 + $0x90] sm:$0xff]
    %v2436 = vld [vmem:[%s3 + $0x98] sm:$0xff]
    %v2437 = vld [vmem:[%s3 + $0xa0] sm:$0xff]
    %v2438 = vld [vmem:[%s3 + $0xa8] sm:$0xff]
    %v2439 = vld [vmem:[%s3 + $0xb0] sm:$0xff]
    %v2440 = vld [vmem:[%s3 + $0xb8] sm:$0xff]
    %v2441 = vld [vmem:[%s3 + $0xc0] sm:$0xff]
    %v2442 = vld [vmem:[%s3 + $0xc8] sm:$0xff]
    %v2443 = vld [vmem:[%s3 + $0xd0] sm:$0xff]
    %v2444 = vld [vmem:[%s3 + $0xd8] sm:$0xff]
    %v2445 = vld [vmem:[%s3 + $0xe0] sm:$0xff]
    %v2446 = vld [vmem:[%s3 + $0xe8] sm:$0xff]
    %v2447 = vld [vmem:[%s3 + $0xf0] sm:$0xff]
    %v2448 = vld [vmem:[%s3 + $0xf8] sm:$0xff]
    %v2481 = vunpack.c.l.b16 %v2417
    %v2482 = vunpack.c.h.b16 %v2417
    %v2483 = vunpack.c.l.b16 %v2418
    %v2484 = vunpack.c.h.b16 %v2418
    %v2485 = vunpack.c.l.b16 %v2419
    %v2486 = vunpack.c.h.b16 %v2419
    %v2487 = vunpack.c.l.b16 %v2420
    %v2488 = vunpack.c.h.b16 %v2420
    %v2489 = vunpack.c.l.b16 %v2421
    %v2490 = vunpack.c.h.b16 %v2421
    %v2491 = vunpack.c.l.b16 %v2422
    %v2492 = vunpack.c.h.b16 %v2422
    %v2493 = vunpack.c.l.b16 %v2423
    %v2494 = vunpack.c.h.b16 %v2423
    %v2495 = vunpack.c.l.b16 %v2424
    %v2496 = vunpack.c.h.b16 %v2424
    %v2497 = vunpack.c.l.b16 %v2425
    %v2498 = vunpack.c.h.b16 %v2425
    %v2499 = vunpack.c.l.b16 %v2426
    %v2500 = vunpack.c.h.b16 %v2426
    %v2501 = vunpack.c.l.b16 %v2427
    %v2502 = vunpack.c.h.b16 %v2427
    %v2503 = vunpack.c.l.b16 %v2428
    %v2504 = vunpack.c.h.b16 %v2428
    %v2505 = vunpack.c.l.b16 %v2429
    %v2506 = vunpack.c.h.b16 %v2429
    %v2507 = vunpack.c.l.b16 %v2430
    %v2508 = vunpack.c.h.b16 %v2430
    %v2509 = vunpack.c.l.b16 %v2431
    %v2510 = vunpack.c.h.b16 %v2431
    %v2511 = vunpack.c.l.b16 %v2432
    %v2512 = vunpack.c.h.b16 %v2432
    %v2513 = vunpack.c.l.b16 %v2433
    %v2514 = vunpack.c.h.b16 %v2433
    %v2515 = vunpack.c.l.b16 %v2434
    %v2516 = vunpack.c.h.b16 %v2434
    %v2517 = vunpack.c.l.b16 %v2435
    %v2518 = vunpack.c.h.b16 %v2435
    %v2519 = vunpack.c.l.b16 %v2436
    %v2520 = vunpack.c.h.b16 %v2436
    %v2521 = vunpack.c.l.b16 %v2437
    %v2522 = vunpack.c.h.b16 %v2437
    %v2523 = vunpack.c.l.b16 %v2438
    %v2524 = vunpack.c.h.b16 %v2438
    %v2525 = vunpack.c.l.b16 %v2439
    %v2526 = vunpack.c.h.b16 %v2439
    %v2527 = vunpack.c.l.b16 %v2440
    %v2528 = vunpack.c.h.b16 %v2440
    %v2529 = vunpack.c.l.b16 %v2441
    %v2530 = vunpack.c.h.b16 %v2441
    %v2531 = vunpack.c.l.b16 %v2442
    %v2532 = vunpack.c.h.b16 %v2442
    %v2533 = vunpack.c.l.b16 %v2443
    %v2534 = vunpack.c.h.b16 %v2443
    %v2535 = vunpack.c.l.b16 %v2444
    %v2536 = vunpack.c.h.b16 %v2444
    %v2537 = vunpack.c.l.b16 %v2445
    %v2538 = vunpack.c.h.b16 %v2445
    %v2539 = vunpack.c.l.b16 %v2446
    %v2540 = vunpack.c.h.b16 %v2446
    %v2541 = vunpack.c.l.b16 %v2447
    %v2542 = vunpack.c.h.b16 %v2447
    %v2543 = vunpack.c.l.b16 %v2448
    %v2544 = vunpack.c.h.b16 %v2448
    %v2545 = vpack.c.b16 %v2485, %v2481
    %v2546 = vpack.c.b16 %v2486, %v2482
    %v2547 = vpack.c.b16 %v2487, %v2483
    %v2548 = vpack.c.b16 %v2488, %v2484
    %v2549 = vpack.c.b16 %v2493, %v2489
    %v2550 = vpack.c.b16 %v2494, %v2490
    %v2551 = vpack.c.b16 %v2495, %v2491
    %v2552 = vpack.c.b16 %v2496, %v2492
    %v2553 = vpack.c.b16 %v2501, %v2497
    %v2554 = vpack.c.b16 %v2502, %v2498
    %v2555 = vpack.c.b16 %v2503, %v2499
    %v2556 = vpack.c.b16 %v2504, %v2500
    %v2557 = vpack.c.b16 %v2509, %v2505
    %v2558 = vpack.c.b16 %v2510, %v2506
    %v2559 = vpack.c.b16 %v2511, %v2507
    %v2560 = vpack.c.b16 %v2512, %v2508
    %v2561 = vpack.c.b16 %v2517, %v2513
    %v2562 = vpack.c.b16 %v2518, %v2514
    %v2563 = vpack.c.b16 %v2519, %v2515
    %v2564 = vpack.c.b16 %v2520, %v2516
    %v2565 = vpack.c.b16 %v2525, %v2521
    %v2566 = vpack.c.b16 %v2526, %v2522
    %v2567 = vpack.c.b16 %v2527, %v2523
    %v2568 = vpack.c.b16 %v2528, %v2524
    %v2569 = vpack.c.b16 %v2533, %v2529
    %v2570 = vpack.c.b16 %v2534, %v2530
    %v2571 = vpack.c.b16 %v2535, %v2531
    %v2572 = vpack.c.b16 %v2536, %v2532
    %v2573 = vpack.c.b16 %v2541, %v2537
    %v2574 = vpack.c.b16 %v2542, %v2538
    %v2575 = vpack.c.b16 %v2543, %v2539
    %v2576 = vpack.c.b16 %v2544, %v2540
    %2609 = vmatpush.bf16.msra.mxu0 %v2573
    %2610 = vmatpush.bf16.msra.mxu0 %v2569
    %2611 = vmatpush.bf16.msra.mxu0 %v2565
    %2612 = vmatpush.bf16.msra.mxu0 %v2561
    %2613 = vmatpush.bf16.msra.mxu0 %v2557
    %2614 = vmatpush.bf16.msra.mxu0 %v2553
    %2615 = vmatpush.bf16.msra.mxu0 %v2549
    %2616 = vmatpush.bf16.msra.mxu0 %v2545
    %2617 = vmatmul.bf16.gmra.mxu0 %v2416
    %v2618 = vpop.f32.mrf.mxu0
    %v2619 = vadd.f32 0.0, %v2618
    %v2620 = vpop.f32.mrf.mxu0
    %v2621 = vadd.f32 0.0, %v2620
    %2622 = vdwg.mxu0
    %2623 = vmatpush.bf16.msra.mxu0 %v2574
    %2624 = vmatpush.bf16.msra.mxu0 %v2570
    %2625 = vmatpush.bf16.msra.mxu0 %v2566
    %2626 = vmatpush.bf16.msra.mxu0 %v2562
    %2627 = vmatpush.bf16.msra.mxu0 %v2558
    %2628 = vmatpush.bf16.msra.mxu0 %v2554
    %2629 = vmatpush.bf16.msra.mxu0 %v2550
    %2630 = vmatpush.bf16.msra.mxu0 %v2546
    %2631 = vmatmul.bf16.gmra.mxu0 %v2416
    %v2632 = vpop.f32.mrf.mxu0
    %v2633 = vadd.f32 0.0, %v2632
    %v2634 = vpop.f32.mrf.mxu0
    %v2635 = vadd.f32 0.0, %v2634
    %2636 = vdwg.mxu0
    %2637 = vmatpush.bf16.msra.mxu0 %v2575
    %2638 = vmatpush.bf16.msra.mxu0 %v2571
    %2639 = vmatpush.bf16.msra.mxu0 %v2567
    %2640 = vmatpush.bf16.msra.mxu0 %v2563
    %2641 = vmatpush.bf16.msra.mxu0 %v2559
    %2642 = vmatpush.bf16.msra.mxu0 %v2555
    %2643 = vmatpush.bf16.msra.mxu0 %v2551
    %2644 = vmatpush.bf16.msra.mxu0 %v2547
    %2645 = vmatmul.bf16.gmra.mxu0 %v2416
    %v2646 = vpop.f32.mrf.mxu0
    %v2647 = vadd.f32 0.0, %v2646
    %v2648 = vpop.f32.mrf.mxu0
    %v2649 = vadd.f32 0.0, %v2648
    %2650 = vdwg.mxu0
    %2651 = vmatpush.bf16.msra.mxu0 %v2576
    %2652 = vmatpush.bf16.msra.mxu0 %v2572
    %2653 = vmatpush.bf16.msra.mxu0 %v2568
    %2654 = vmatpush.bf16.msra.mxu0 %v2564
    %2655 = vmatpush.bf16.msra.mxu0 %v2560
    %2656 = vmatpush.bf16.msra.mxu0 %v2556
    %2657 = vmatpush.bf16.msra.mxu0 %v2552
    %2658 = vmatpush.bf16.msra.mxu0 %v2548
    %2659 = vmatmul.bf16.gmra.mxu0 %v2416
    %v2660 = vpop.f32.mrf.mxu0
    %v2661 = vadd.f32 0.0, %v2660
    %v2662 = vpop.f32.mrf.mxu0
    %v2663 = vadd.f32 0.0, %v2662
    %2664 = vdwg.mxu0
    %v2665 = vadd.f32 %v2408, %v2619
    %v2666 = vadd.f32 %v2409, %v2633
    %v2667 = vadd.f32 %v2410, %v2647
    %v2668 = vadd.f32 %v2411, %v2661
    %v2669 = vadd.f32 %v2412, %v2621
    %v2670 = vadd.f32 %v2413, %v2635
    %v2671 = vadd.f32 %v2414, %v2649
    %v2672 = vadd.f32 %v2415, %v2663
    %v2673 = vxor.u32 %v2665, 2147483648
    %v2674 = vxor.u32 %v2666, 2147483648
    %v2675 = vxor.u32 %v2667, 2147483648
    %v2676 = vxor.u32 %v2669, 2147483648
    %v2677 = vxor.u32 %v2670, 2147483648
    %v2678 = vxor.u32 %v2671, 2147483648
    %v2679 = vmul.f32 %v2673, 1.442695
    %v2680 = vpow.pop %v2679
    %v2681 = vmul.f32 %v2674, 1.442695
    %v2682 = vpow.pop %v2681
    %v2683 = vmul.f32 %v2675, 1.442695
    %v2684 = vpow.pop %v2683
    %v2685 = vmul.f32 %v2676, 1.442695
    %v2686 = vpow.pop %v2685
    %v2687 = vmul.f32 %v2677, 1.442695
    %v2688 = vpow.pop %v2687
    %v2689 = vmul.f32 %v2678, 1.442695
    %v2690 = vpow.pop %v2689
    %v2691 = vadd.f32 %v2680, 1.0
    %v2692 = vadd.f32 %v2682, 1.0
    %v2693 = vadd.f32 %v2684, 1.0
    %v2694 = vadd.f32 %v2686, 1.0
    %v2695 = vadd.f32 %v2688, 1.0
    %v2696 = vadd.f32 %v2690, 1.0
    %v2697 = vrcp.pop %v2691
    %v2698 = vmul.f32 %v2691, %v2697
    %v2699 = vsub.f32 1.0, %v2698
    %v2700 = vmul.f32 %v2697, %v2699
    %v2701 = vadd.f32 %v2697, %v2700
    %vm2702 = vweird.f32 %v2691
    %vm2703 = vweird.f32 %v2697
    %vm2704 = vmor %vm2702, %vm2703
    %v2705 = vsel %vm2704, %v2697, %v2701
    %v2706 = vand.u32 2147483647, %v2691
    %vm2707 = vcmp.eq.f32.partialorder %v2706, 8.507059e+37
    %v2708 = vand.u32 %v2691, 2147483648
    %v2709 = vor.u32 1.1754944e-38, %v2708
    %v2710 = vsel %vm2707, %v2709, %v2705
    %v2711 = vmul.f32 1.0, %v2710
    %v2712 = vrcp.pop %v2692
    %v2713 = vmul.f32 %v2692, %v2712
    %v2714 = vsub.f32 1.0, %v2713
    %v2715 = vmul.f32 %v2712, %v2714
    %v2716 = vadd.f32 %v2712, %v2715
    %vm2717 = vweird.f32 %v2692
    %vm2718 = vweird.f32 %v2712
    %vm2719 = vmor %vm2717, %vm2718
    %v2720 = vsel %vm2719, %v2712, %v2716
    %v2721 = vand.u32 2147483647, %v2692
    %vm2722 = vcmp.eq.f32.partialorder %v2721, 8.507059e+37
    %v2723 = vand.u32 %v2692, 2147483648
    %v2724 = vor.u32 1.1754944e-38, %v2723
    %v2725 = vsel %vm2722, %v2724, %v2720
    %v2726 = vmul.f32 1.0, %v2725
    %v2727 = vrcp.pop %v2693
    %v2728 = vmul.f32 %v2693, %v2727
    %v2729 = vsub.f32 1.0, %v2728
    %v2730 = vmul.f32 %v2727, %v2729
    %v2731 = vadd.f32 %v2727, %v2730
    %vm2732 = vweird.f32 %v2693
    %vm2733 = vweird.f32 %v2727
    %vm2734 = vmor %vm2732, %vm2733
    %v2735 = vsel %vm2734, %v2727, %v2731
    %v2736 = vand.u32 2147483647, %v2693
    %vm2737 = vcmp.eq.f32.partialorder %v2736, 8.507059e+37
    %v2738 = vand.u32 %v2693, 2147483648
    %v2739 = vor.u32 1.1754944e-38, %v2738
    %v2740 = vsel %vm2737, %v2739, %v2735
    %v2741 = vmul.f32 1.0, %v2740
    %v2742 = vrcp.pop %v2694
    %v2743 = vmul.f32 %v2694, %v2742
    %v2744 = vsub.f32 1.0, %v2743
    %v2745 = vmul.f32 %v2742, %v2744
    %v2746 = vadd.f32 %v2742, %v2745
    %vm2747 = vweird.f32 %v2694
    %vm2748 = vweird.f32 %v2742
    %vm2749 = vmor %vm2747, %vm2748
    %v2750 = vsel %vm2749, %v2742, %v2746
    %v2751 = vand.u32 2147483647, %v2694
    %vm2752 = vcmp.eq.f32.partialorder %v2751, 8.507059e+37
    %v2753 = vand.u32 %v2694, 2147483648
    %v2754 = vor.u32 1.1754944e-38, %v2753
    %v2755 = vsel %vm2752, %v2754, %v2750
    %v2756 = vmul.f32 1.0, %v2755
    %v2757 = vrcp.pop %v2695
    %v2758 = vmul.f32 %v2695, %v2757
    %v2759 = vsub.f32 1.0, %v2758
    %v2760 = vmul.f32 %v2757, %v2759
    %v2761 = vadd.f32 %v2757, %v2760
    %vm2762 = vweird.f32 %v2695
    %vm2763 = vweird.f32 %v2757
    %vm2764 = vmor %vm2762, %vm2763
    %v2765 = vsel %vm2764, %v2757, %v2761
    %v2766 = vand.u32 2147483647, %v2695
    %vm2767 = vcmp.eq.f32.partialorder %v2766, 8.507059e+37
    %v2768 = vand.u32 %v2695, 2147483648
    %v2769 = vor.u32 1.1754944e-38, %v2768
    %v2770 = vsel %vm2767, %v2769, %v2765
    %v2771 = vmul.f32 1.0, %v2770
    %v2772 = vrcp.pop %v2696
    %v2773 = vmul.f32 %v2696, %v2772
    %v2774 = vsub.f32 1.0, %v2773
    %v2775 = vmul.f32 %v2772, %v2774
    %v2776 = vadd.f32 %v2772, %v2775
    %vm2777 = vweird.f32 %v2696
    %vm2778 = vweird.f32 %v2772
    %vm2779 = vmor %vm2777, %vm2778
    %v2780 = vsel %vm2779, %v2772, %v2776
    %v2781 = vand.u32 2147483647, %v2696
    %vm2782 = vcmp.eq.f32.partialorder %v2781, 8.507059e+37
    %v2783 = vand.u32 %v2696, 2147483648
    %v2784 = vor.u32 1.1754944e-38, %v2783
    %v2785 = vsel %vm2782, %v2784, %v2780
    %v2786 = vmul.f32 1.0, %v2785
    %v2787 = vtanh.pop %v2668
    %v2788 = vtanh.pop %v2672
    %v2789 = vmul.f32 %v2726, %v2374
    %v2790 = vmul.f32 %v2771, %v2375
    %v2791 = vmul.f32 %v2711, %v2787
    %v2792 = vmul.f32 %v2756, %v2788
    %v2793 = vadd.f32 %v2789, %v2791
    %v2794 = vadd.f32 %v2790, %v2792
    %v2795 = vtanh.pop %v2793
    %v2796 = vtanh.pop %v2794
    %v2797 = vmul.f32 %v2741, %v2795
    %v2798 = vmul.f32 %v2786, %v2796
    %s2799 = sadd.s32 %s1541, %s2404
    %v2800 = vstv %s2799
    %vm2801 = vcmp.gt.s32.totalorder %v1130, %v2800
    %vm2802 = vcmp.gt.s32.totalorder %v1131, %v2800
    %v2803 = vsel %vm2801, 1, 0
    %v2804 = vsel %vm2802, 1, 0
    %v2805 = vcvt.s32.f32 %v2803
    %v2806 = vcvt.s32.f32 %v2804
    %2808 = vset.pattern.permute.xlu0 0
    %2809 = vperm.xlu0 %2808, %v2805
    %v2810 = vpop.permute.xlu0 %2809
    %2813 = vset.pattern.permute.xlu0 0
    %2814 = vperm.xlu0 %2813, %v2806
    %v2815 = vpop.permute.xlu0 %2814
    %v2817 = vmul.f32 %v2797, %v2810
    %v2818 = vmul.f32 %v2798, %v2815
    %s2819 = smul.u32 %s2404, 16
    %s2820 = scalar_lea.vmem %s5, %s2819
    %2821 = vst [vmem:[%s2820] sm:$0xff] %v2817
    %2822 = vst [vmem:[%s2820 + $0x8] sm:$0xff] %v2818
    %s2823 = sadd.s32 %s1146, 4
    %s2824 = smul.u32 %s2823, 8
    %s2825 = smul.addr %s2824, 8
    %s2826 = scalar_lea.vmem [#allocation2], %s2825
    %v2827 = vld [vmem:[%s2826] sm:$0xff]
    %v2828 = vld [vmem:[%s2826 + $0x8] sm:$0xff]
    %v2829 = vld [vmem:[%s2826 + $0x10] sm:$0xff]
    %v2830 = vld [vmem:[%s2826 + $0x18] sm:$0xff]
    %v2831 = vld [vmem:[%s2826 + $0x20] sm:$0xff]
    %v2832 = vld [vmem:[%s2826 + $0x28] sm:$0xff]
    %v2833 = vld [vmem:[%s2826 + $0x30] sm:$0xff]
    %v2834 = vld [vmem:[%s2826 + $0x38] sm:$0xff]
    %v2835 = vpack.c.bf16 %v2798, %v2797
    %v2836 = vld [vmem:[%s3] sm:$0xff]
    %v2837 = vld [vmem:[%s3 + $0x8] sm:$0xff]
    %v2838 = vld [vmem:[%s3 + $0x10] sm:$0xff]
    %v2839 = vld [vmem:[%s3 + $0x18] sm:$0xff]
    %v2840 = vld [vmem:[%s3 + $0x20] sm:$0xff]
    %v2841 = vld [vmem:[%s3 + $0x28] sm:$0xff]
    %v2842 = vld [vmem:[%s3 + $0x30] sm:$0xff]
    %v2843 = vld [vmem:[%s3 + $0x38] sm:$0xff]
    %v2844 = vld [vmem:[%s3 + $0x40] sm:$0xff]
    %v2845 = vld [vmem:[%s3 + $0x48] sm:$0xff]
    %v2846 = vld [vmem:[%s3 + $0x50] sm:$0xff]
    %v2847 = vld [vmem:[%s3 + $0x58] sm:$0xff]
    %v2848 = vld [vmem:[%s3 + $0x60] sm:$0xff]
    %v2849 = vld [vmem:[%s3 + $0x68] sm:$0xff]
    %v2850 = vld [vmem:[%s3 + $0x70] sm:$0xff]
    %v2851 = vld [vmem:[%s3 + $0x78] sm:$0xff]
    %v2852 = vld [vmem:[%s3 + $0x80] sm:$0xff]
    %v2853 = vld [vmem:[%s3 + $0x88] sm:$0xff]
    %v2854 = vld [vmem:[%s3 + $0x90] sm:$0xff]
    %v2855 = vld [vmem:[%s3 + $0x98] sm:$0xff]
    %v2856 = vld [vmem:[%s3 + $0xa0] sm:$0xff]
    %v2857 = vld [vmem:[%s3 + $0xa8] sm:$0xff]
    %v2858 = vld [vmem:[%s3 + $0xb0] sm:$0xff]
    %v2859 = vld [vmem:[%s3 + $0xb8] sm:$0xff]
    %v2860 = vld [vmem:[%s3 + $0xc0] sm:$0xff]
    %v2861 = vld [vmem:[%s3 + $0xc8] sm:$0xff]
    %v2862 = vld [vmem:[%s3 + $0xd0] sm:$0xff]
    %v2863 = vld [vmem:[%s3 + $0xd8] sm:$0xff]
    %v2864 = vld [vmem:[%s3 + $0xe0] sm:$0xff]
    %v2865 = vld [vmem:[%s3 + $0xe8] sm:$0xff]
    %v2866 = vld [vmem:[%s3 + $0xf0] sm:$0xff]
    %v2867 = vld [vmem:[%s3 + $0xf8] sm:$0xff]
    %v2900 = vunpack.c.l.b16 %v2836
    %v2901 = vunpack.c.h.b16 %v2836
    %v2902 = vunpack.c.l.b16 %v2837
    %v2903 = vunpack.c.h.b16 %v2837
    %v2904 = vunpack.c.l.b16 %v2838
    %v2905 = vunpack.c.h.b16 %v2838
    %v2906 = vunpack.c.l.b16 %v2839
    %v2907 = vunpack.c.h.b16 %v2839
    %v2908 = vunpack.c.l.b16 %v2840
    %v2909 = vunpack.c.h.b16 %v2840
    %v2910 = vunpack.c.l.b16 %v2841
    %v2911 = vunpack.c.h.b16 %v2841
    %v2912 = vunpack.c.l.b16 %v2842
    %v2913 = vunpack.c.h.b16 %v2842
    %v2914 = vunpack.c.l.b16 %v2843
    %v2915 = vunpack.c.h.b16 %v2843
    %v2916 = vunpack.c.l.b16 %v2844
    %v2917 = vunpack.c.h.b16 %v2844
    %v2918 = vunpack.c.l.b16 %v2845
    %v2919 = vunpack.c.h.b16 %v2845
    %v2920 = vunpack.c.l.b16 %v2846
    %v2921 = vunpack.c.h.b16 %v2846
    %v2922 = vunpack.c.l.b16 %v2847
    %v2923 = vunpack.c.h.b16 %v2847
    %v2924 = vunpack.c.l.b16 %v2848
    %v2925 = vunpack.c.h.b16 %v2848
    %v2926 = vunpack.c.l.b16 %v2849
    %v2927 = vunpack.c.h.b16 %v2849
    %v2928 = vunpack.c.l.b16 %v2850
    %v2929 = vunpack.c.h.b16 %v2850
    %v2930 = vunpack.c.l.b16 %v2851
    %v2931 = vunpack.c.h.b16 %v2851
    %v2932 = vunpack.c.l.b16 %v2852
    %v2933 = vunpack.c.h.b16 %v2852
    %v2934 = vunpack.c.l.b16 %v2853
    %v2935 = vunpack.c.h.b16 %v2853
    %v2936 = vunpack.c.l.b16 %v2854
    %v2937 = vunpack.c.h.b16 %v2854
    %v2938 = vunpack.c.l.b16 %v2855
    %v2939 = vunpack.c.h.b16 %v2855
    %v2940 = vunpack.c.l.b16 %v2856
    %v2941 = vunpack.c.h.b16 %v2856
    %v2942 = vunpack.c.l.b16 %v2857
    %v2943 = vunpack.c.h.b16 %v2857
    %v2944 = vunpack.c.l.b16 %v2858
    %v2945 = vunpack.c.h.b16 %v2858
    %v2946 = vunpack.c.l.b16 %v2859
    %v2947 = vunpack.c.h.b16 %v2859
    %v2948 = vunpack.c.l.b16 %v2860
    %v2949 = vunpack.c.h.b16 %v2860
    %v2950 = vunpack.c.l.b16 %v2861
    %v2951 = vunpack.c.h.b16 %v2861
    %v2952 = vunpack.c.l.b16 %v2862
    %v2953 = vunpack.c.h.b16 %v2862
    %v2954 = vunpack.c.l.b16 %v2863
    %v2955 = vunpack.c.h.b16 %v2863
    %v2956 = vunpack.c.l.b16 %v2864
    %v2957 = vunpack.c.h.b16 %v2864
    %v2958 = vunpack.c.l.b16 %v2865
    %v2959 = vunpack.c.h.b16 %v2865
    %v2960 = vunpack.c.l.b16 %v2866
    %v2961 = vunpack.c.h.b16 %v2866
    %v2962 = vunpack.c.l.b16 %v2867
    %v2963 = vunpack.c.h.b16 %v2867
    %v2964 = vpack.c.b16 %v2904, %v2900
    %v2965 = vpack.c.b16 %v2905, %v2901
    %v2966 = vpack.c.b16 %v2906, %v2902
    %v2967 = vpack.c.b16 %v2907, %v2903
    %v2968 = vpack.c.b16 %v2912, %v2908
    %v2969 = vpack.c.b16 %v2913, %v2909
    %v2970 = vpack.c.b16 %v2914, %v2910
    %v2971 = vpack.c.b16 %v2915, %v2911
    %v2972 = vpack.c.b16 %v2920, %v2916
    %v2973 = vpack.c.b16 %v2921, %v2917
    %v2974 = vpack.c.b16 %v2922, %v2918
    %v2975 = vpack.c.b16 %v2923, %v2919
    %v2976 = vpack.c.b16 %v2928, %v2924
    %v2977 = vpack.c.b16 %v2929, %v2925
    %v2978 = vpack.c.b16 %v2930, %v2926
    %v2979 = vpack.c.b16 %v2931, %v2927
    %v2980 = vpack.c.b16 %v2936, %v2932
    %v2981 = vpack.c.b16 %v2937, %v2933
    %v2982 = vpack.c.b16 %v2938, %v2934
    %v2983 = vpack.c.b16 %v2939, %v2935
    %v2984 = vpack.c.b16 %v2944, %v2940
    %v2985 = vpack.c.b16 %v2945, %v2941
    %v2986 = vpack.c.b16 %v2946, %v2942
    %v2987 = vpack.c.b16 %v2947, %v2943
    %v2988 = vpack.c.b16 %v2952, %v2948
    %v2989 = vpack.c.b16 %v2953, %v2949
    %v2990 = vpack.c.b16 %v2954, %v2950
    %v2991 = vpack.c.b16 %v2955, %v2951
    %v2992 = vpack.c.b16 %v2960, %v2956
    %v2993 = vpack.c.b16 %v2961, %v2957
    %v2994 = vpack.c.b16 %v2962, %v2958
    %v2995 = vpack.c.b16 %v2963, %v2959
    %3028 = vmatpush.bf16.msra.mxu0 %v2992
    %3029 = vmatpush.bf16.msra.mxu0 %v2988
    %3030 = vmatpush.bf16.msra.mxu0 %v2984
    %3031 = vmatpush.bf16.msra.mxu0 %v2980
    %3032 = vmatpush.bf16.msra.mxu0 %v2976
    %3033 = vmatpush.bf16.msra.mxu0 %v2972
    %3034 = vmatpush.bf16.msra.mxu0 %v2968
    %3035 = vmatpush.bf16.msra.mxu0 %v2964
    %3036 = vmatmul.bf16.gmra.mxu0 %v2835
    %v3037 = vpop.f32.mrf.mxu0
    %v3038 = vadd.f32 0.0, %v3037
    %v3039 = vpop.f32.mrf.mxu0
    %v3040 = vadd.f32 0.0, %v3039
    %3041 = vdwg.mxu0
    %3042 = vmatpush.bf16.msra.mxu0 %v2993
    %3043 = vmatpush.bf16.msra.mxu0 %v2989
    %3044 = vmatpush.bf16.msra.mxu0 %v2985
    %3045 = vmatpush.bf16.msra.mxu0 %v2981
    %3046 = vmatpush.bf16.msra.mxu0 %v2977
    %3047 = vmatpush.bf16.msra.mxu0 %v2973
    %3048 = vmatpush.bf16.msra.mxu0 %v2969
    %3049 = vmatpush.bf16.msra.mxu0 %v2965
    %3050 = vmatmul.bf16.gmra.mxu0 %v2835
    %v3051 = vpop.f32.mrf.mxu0
    %v3052 = vadd.f32 0.0, %v3051
    %v3053 = vpop.f32.mrf.mxu0
    %v3054 = vadd.f32 0.0, %v3053
    %3055 = vdwg.mxu0
    %3056 = vmatpush.bf16.msra.mxu0 %v2994
    %3057 = vmatpush.bf16.msra.mxu0 %v2990
    %3058 = vmatpush.bf16.msra.mxu0 %v2986
    %3059 = vmatpush.bf16.msra.mxu0 %v2982
    %3060 = vmatpush.bf16.msra.mxu0 %v2978
    %3061 = vmatpush.bf16.msra.mxu0 %v2974
    %3062 = vmatpush.bf16.msra.mxu0 %v2970
    %3063 = vmatpush.bf16.msra.mxu0 %v2966
    %3064 = vmatmul.bf16.gmra.mxu0 %v2835
    %v3065 = vpop.f32.mrf.mxu0
    %v3066 = vadd.f32 0.0, %v3065
    %v3067 = vpop.f32.mrf.mxu0
    %v3068 = vadd.f32 0.0, %v3067
    %3069 = vdwg.mxu0
    %3070 = vmatpush.bf16.msra.mxu0 %v2995
    %3071 = vmatpush.bf16.msra.mxu0 %v2991
    %3072 = vmatpush.bf16.msra.mxu0 %v2987
    %3073 = vmatpush.bf16.msra.mxu0 %v2983
    %3074 = vmatpush.bf16.msra.mxu0 %v2979
    %3075 = vmatpush.bf16.msra.mxu0 %v2975
    %3076 = vmatpush.bf16.msra.mxu0 %v2971
    %3077 = vmatpush.bf16.msra.mxu0 %v2967
    %3078 = vmatmul.bf16.gmra.mxu0 %v2835
    %v3079 = vpop.f32.mrf.mxu0
    %v3080 = vadd.f32 0.0, %v3079
    %v3081 = vpop.f32.mrf.mxu0
    %v3082 = vadd.f32 0.0, %v3081
    %3083 = vdwg.mxu0
    %v3084 = vadd.f32 %v2827, %v3038
    %v3085 = vadd.f32 %v2828, %v3052
    %v3086 = vadd.f32 %v2829, %v3066
    %v3087 = vadd.f32 %v2830, %v3080
    %v3088 = vadd.f32 %v2831, %v3040
    %v3089 = vadd.f32 %v2832, %v3054
    %v3090 = vadd.f32 %v2833, %v3068
    %v3091 = vadd.f32 %v2834, %v3082
    %v3092 = vxor.u32 %v3084, 2147483648
    %v3093 = vxor.u32 %v3085, 2147483648
    %v3094 = vxor.u32 %v3086, 2147483648
    %v3095 = vxor.u32 %v3088, 2147483648
    %v3096 = vxor.u32 %v3089, 2147483648
    %v3097 = vxor.u32 %v3090, 2147483648
    %v3098 = vmul.f32 %v3092, 1.442695
    %v3099 = vpow.pop %v3098
    %v3100 = vmul.f32 %v3093, 1.442695
    %v3101 = vpow.pop %v3100
    %v3102 = vmul.f32 %v3094, 1.442695
    %v3103 = vpow.pop %v3102
    %v3104 = vmul.f32 %v3095, 1.442695
    %v3105 = vpow.pop %v3104
    %v3106 = vmul.f32 %v3096, 1.442695
    %v3107 = vpow.pop %v3106
    %v3108 = vmul.f32 %v3097, 1.442695
    %v3109 = vpow.pop %v3108
    %v3110 = vadd.f32 %v3099, 1.0
    %v3111 = vadd.f32 %v3101, 1.0
    %v3112 = vadd.f32 %v3103, 1.0
    %v3113 = vadd.f32 %v3105, 1.0
    %v3114 = vadd.f32 %v3107, 1.0
    %v3115 = vadd.f32 %v3109, 1.0
    %v3116 = vrcp.pop %v3110
    %v3117 = vmul.f32 %v3110, %v3116
    %v3118 = vsub.f32 1.0, %v3117
    %v3119 = vmul.f32 %v3116, %v3118
    %v3120 = vadd.f32 %v3116, %v3119
    %vm3121 = vweird.f32 %v3110
    %vm3122 = vweird.f32 %v3116
    %vm3123 = vmor %vm3121, %vm3122
    %v3124 = vsel %vm3123, %v3116, %v3120
    %v3125 = vand.u32 2147483647, %v3110
    %vm3126 = vcmp.eq.f32.partialorder %v3125, 8.507059e+37
    %v3127 = vand.u32 %v3110, 2147483648
    %v3128 = vor.u32 1.1754944e-38, %v3127
    %v3129 = vsel %vm3126, %v3128, %v3124
    %v3130 = vmul.f32 1.0, %v3129
    %v3131 = vrcp.pop %v3111
    %v3132 = vmul.f32 %v3111, %v3131
    %v3133 = vsub.f32 1.0, %v3132
    %v3134 = vmul.f32 %v3131, %v3133
    %v3135 = vadd.f32 %v3131, %v3134
    %vm3136 = vweird.f32 %v3111
    %vm3137 = vweird.f32 %v3131
    %vm3138 = vmor %vm3136, %vm3137
    %v3139 = vsel %vm3138, %v3131, %v3135
    %v3140 = vand.u32 2147483647, %v3111
    %vm3141 = vcmp.eq.f32.partialorder %v3140, 8.507059e+37
    %v3142 = vand.u32 %v3111, 2147483648
    %v3143 = vor.u32 1.1754944e-38, %v3142
    %v3144 = vsel %vm3141, %v3143, %v3139
    %v3145 = vmul.f32 1.0, %v3144
    %v3146 = vrcp.pop %v3112
    %v3147 = vmul.f32 %v3112, %v3146
    %v3148 = vsub.f32 1.0, %v3147
    %v3149 = vmul.f32 %v3146, %v3148
    %v3150 = vadd.f32 %v3146, %v3149
    %vm3151 = vweird.f32 %v3112
    %vm3152 = vweird.f32 %v3146
    %vm3153 = vmor %vm3151, %vm3152
    %v3154 = vsel %vm3153, %v3146, %v3150
    %v3155 = vand.u32 2147483647, %v3112
    %vm3156 = vcmp.eq.f32.partialorder %v3155, 8.507059e+37
    %v3157 = vand.u32 %v3112, 2147483648
    %v3158 = vor.u32 1.1754944e-38, %v3157
    %v3159 = vsel %vm3156, %v3158, %v3154
    %v3160 = vmul.f32 1.0, %v3159
    %v3161 = vrcp.pop %v3113
    %v3162 = vmul.f32 %v3113, %v3161
    %v3163 = vsub.f32 1.0, %v3162
    %v3164 = vmul.f32 %v3161, %v3163
    %v3165 = vadd.f32 %v3161, %v3164
    %vm3166 = vweird.f32 %v3113
    %vm3167 = vweird.f32 %v3161
    %vm3168 = vmor %vm3166, %vm3167
    %v3169 = vsel %vm3168, %v3161, %v3165
    %v3170 = vand.u32 2147483647, %v3113
    %vm3171 = vcmp.eq.f32.partialorder %v3170, 8.507059e+37
    %v3172 = vand.u32 %v3113, 2147483648
    %v3173 = vor.u32 1.1754944e-38, %v3172
    %v3174 = vsel %vm3171, %v3173, %v3169
    %v3175 = vmul.f32 1.0, %v3174
    %v3176 = vrcp.pop %v3114
    %v3177 = vmul.f32 %v3114, %v3176
    %v3178 = vsub.f32 1.0, %v3177
    %v3179 = vmul.f32 %v3176, %v3178
    %v3180 = vadd.f32 %v3176, %v3179
    %vm3181 = vweird.f32 %v3114
    %vm3182 = vweird.f32 %v3176
    %vm3183 = vmor %vm3181, %vm3182
    %v3184 = vsel %vm3183, %v3176, %v3180
    %v3185 = vand.u32 2147483647, %v3114
    %vm3186 = vcmp.eq.f32.partialorder %v3185, 8.507059e+37
    %v3187 = vand.u32 %v3114, 2147483648
    %v3188 = vor.u32 1.1754944e-38, %v3187
    %v3189 = vsel %vm3186, %v3188, %v3184
    %v3190 = vmul.f32 1.0, %v3189
    %v3191 = vrcp.pop %v3115
    %v3192 = vmul.f32 %v3115, %v3191
    %v3193 = vsub.f32 1.0, %v3192
    %v3194 = vmul.f32 %v3191, %v3193
    %v3195 = vadd.f32 %v3191, %v3194
    %vm3196 = vweird.f32 %v3115
    %vm3197 = vweird.f32 %v3191
    %vm3198 = vmor %vm3196, %vm3197
    %v3199 = vsel %vm3198, %v3191, %v3195
    %v3200 = vand.u32 2147483647, %v3115
    %vm3201 = vcmp.eq.f32.partialorder %v3200, 8.507059e+37
    %v3202 = vand.u32 %v3115, 2147483648
    %v3203 = vor.u32 1.1754944e-38, %v3202
    %v3204 = vsel %vm3201, %v3203, %v3199
    %v3205 = vmul.f32 1.0, %v3204
    %v3206 = vtanh.pop %v3087
    %v3207 = vtanh.pop %v3091
    %v3208 = vmul.f32 %v3145, %v2793
    %v3209 = vmul.f32 %v3190, %v2794
    %v3210 = vmul.f32 %v3130, %v3206
    %v3211 = vmul.f32 %v3175, %v3207
    %v3212 = vadd.f32 %v3208, %v3210
    %v3213 = vadd.f32 %v3209, %v3211
    %v3214 = vtanh.pop %v3212
    %v3215 = vtanh.pop %v3213
    %v3216 = vmul.f32 %v3160, %v3214
    %v3217 = vmul.f32 %v3205, %v3215
    %s3218 = sadd.s32 %s1541, %s2823
    %v3219 = vstv %s3218
    %vm3220 = vcmp.gt.s32.totalorder %v1130, %v3219
    %vm3221 = vcmp.gt.s32.totalorder %v1131, %v3219
    %v3222 = vsel %vm3220, 1, 0
    %v3223 = vsel %vm3221, 1, 0
    %v3224 = vcvt.s32.f32 %v3222
    %v3225 = vcvt.s32.f32 %v3223
    %3227 = vset.pattern.permute.xlu0 0
    %3228 = vperm.xlu0 %3227, %v3224
    %v3229 = vpop.permute.xlu0 %3228
    %3232 = vset.pattern.permute.xlu0 0
    %3233 = vperm.xlu0 %3232, %v3225
    %v3234 = vpop.permute.xlu0 %3233
    %v3236 = vmul.f32 %v3216, %v3229
    %v3237 = vmul.f32 %v3217, %v3234
    %s3238 = smul.u32 %s2823, 16
    %s3239 = scalar_lea.vmem %s5, %s3238
    %3240 = vst [vmem:[%s3239] sm:$0xff] %v3236
    %3241 = vst [vmem:[%s3239 + $0x8] sm:$0xff] %v3237
    %s3242 = sadd.s32 %s1146, 5
    %s3243 = smul.u32 %s3242, 8
    %s3244 = smul.addr %s3243, 8
    %s3245 = scalar_lea.vmem [#allocation2], %s3244
    %v3246 = vld [vmem:[%s3245] sm:$0xff]
    %v3247 = vld [vmem:[%s3245 + $0x8] sm:$0xff]
    %v3248 = vld [vmem:[%s3245 + $0x10] sm:$0xff]
    %v3249 = vld [vmem:[%s3245 + $0x18] sm:$0xff]
    %v3250 = vld [vmem:[%s3245 + $0x20] sm:$0xff]
    %v3251 = vld [vmem:[%s3245 + $0x28] sm:$0xff]
    %v3252 = vld [vmem:[%s3245 + $0x30] sm:$0xff]
    %v3253 = vld [vmem:[%s3245 + $0x38] sm:$0xff]
    %v3254 = vpack.c.bf16 %v3217, %v3216
    %v3255 = vld [vmem:[%s3] sm:$0xff]
    %v3256 = vld [vmem:[%s3 + $0x8] sm:$0xff]
    %v3257 = vld [vmem:[%s3 + $0x10] sm:$0xff]
    %v3258 = vld [vmem:[%s3 + $0x18] sm:$0xff]
    %v3259 = vld [vmem:[%s3 + $0x20] sm:$0xff]
    %v3260 = vld [vmem:[%s3 + $0x28] sm:$0xff]
    %v3261 = vld [vmem:[%s3 + $0x30] sm:$0xff]
    %v3262 = vld [vmem:[%s3 + $0x38] sm:$0xff]
    %v3263 = vld [vmem:[%s3 + $0x40] sm:$0xff]
    %v3264 = vld [vmem:[%s3 + $0x48] sm:$0xff]
    %v3265 = vld [vmem:[%s3 + $0x50] sm:$0xff]
    %v3266 = vld [vmem:[%s3 + $0x58] sm:$0xff]
    %v3267 = vld [vmem:[%s3 + $0x60] sm:$0xff]
    %v3268 = vld [vmem:[%s3 + $0x68] sm:$0xff]
    %v3269 = vld [vmem:[%s3 + $0x70] sm:$0xff]
    %v3270 = vld [vmem:[%s3 + $0x78] sm:$0xff]
    %v3271 = vld [vmem:[%s3 + $0x80] sm:$0xff]
    %v3272 = vld [vmem:[%s3 + $0x88] sm:$0xff]
    %v3273 = vld [vmem:[%s3 + $0x90] sm:$0xff]
    %v3274 = vld [vmem:[%s3 + $0x98] sm:$0xff]
    %v3275 = vld [vmem:[%s3 + $0xa0] sm:$0xff]
    %v3276 = vld [vmem:[%s3 + $0xa8] sm:$0xff]
    %v3277 = vld [vmem:[%s3 + $0xb0] sm:$0xff]
    %v3278 = vld [vmem:[%s3 + $0xb8] sm:$0xff]
    %v3279 = vld [vmem:[%s3 + $0xc0] sm:$0xff]
    %v3280 = vld [vmem:[%s3 + $0xc8] sm:$0xff]
    %v3281 = vld [vmem:[%s3 + $0xd0] sm:$0xff]
    %v3282 = vld [vmem:[%s3 + $0xd8] sm:$0xff]
    %v3283 = vld [vmem:[%s3 + $0xe0] sm:$0xff]
    %v3284 = vld [vmem:[%s3 + $0xe8] sm:$0xff]
    %v3285 = vld [vmem:[%s3 + $0xf0] sm:$0xff]
    %v3286 = vld [vmem:[%s3 + $0xf8] sm:$0xff]
    %v3319 = vunpack.c.l.b16 %v3255
    %v3320 = vunpack.c.h.b16 %v3255
    %v3321 = vunpack.c.l.b16 %v3256
    %v3322 = vunpack.c.h.b16 %v3256
    %v3323 = vunpack.c.l.b16 %v3257
    %v3324 = vunpack.c.h.b16 %v3257
    %v3325 = vunpack.c.l.b16 %v3258
    %v3326 = vunpack.c.h.b16 %v3258
    %v3327 = vunpack.c.l.b16 %v3259
    %v3328 = vunpack.c.h.b16 %v3259
    %v3329 = vunpack.c.l.b16 %v3260
    %v3330 = vunpack.c.h.b16 %v3260
    %v3331 = vunpack.c.l.b16 %v3261
    %v3332 = vunpack.c.h.b16 %v3261
    %v3333 = vunpack.c.l.b16 %v3262
    %v3334 = vunpack.c.h.b16 %v3262
    %v3335 = vunpack.c.l.b16 %v3263
    %v3336 = vunpack.c.h.b16 %v3263
    %v3337 = vunpack.c.l.b16 %v3264
    %v3338 = vunpack.c.h.b16 %v3264
    %v3339 = vunpack.c.l.b16 %v3265
    %v3340 = vunpack.c.h.b16 %v3265
    %v3341 = vunpack.c.l.b16 %v3266
    %v3342 = vunpack.c.h.b16 %v3266
    %v3343 = vunpack.c.l.b16 %v3267
    %v3344 = vunpack.c.h.b16 %v3267
    %v3345 = vunpack.c.l.b16 %v3268
    %v3346 = vunpack.c.h.b16 %v3268
    %v3347 = vunpack.c.l.b16 %v3269
    %v3348 = vunpack.c.h.b16 %v3269
    %v3349 = vunpack.c.l.b16 %v3270
    %v3350 = vunpack.c.h.b16 %v3270
    %v3351 = vunpack.c.l.b16 %v3271
    %v3352 = vunpack.c.h.b16 %v3271
    %v3353 = vunpack.c.l.b16 %v3272
    %v3354 = vunpack.c.h.b16 %v3272
    %v3355 = vunpack.c.l.b16 %v3273
    %v3356 = vunpack.c.h.b16 %v3273
    %v3357 = vunpack.c.l.b16 %v3274
    %v3358 = vunpack.c.h.b16 %v3274
    %v3359 = vunpack.c.l.b16 %v3275
    %v3360 = vunpack.c.h.b16 %v3275
    %v3361 = vunpack.c.l.b16 %v3276
    %v3362 = vunpack.c.h.b16 %v3276
    %v3363 = vunpack.c.l.b16 %v3277
    %v3364 = vunpack.c.h.b16 %v3277
    %v3365 = vunpack.c.l.b16 %v3278
    %v3366 = vunpack.c.h.b16 %v3278
    %v3367 = vunpack.c.l.b16 %v3279
    %v3368 = vunpack.c.h.b16 %v3279
    %v3369 = vunpack.c.l.b16 %v3280
    %v3370 = vunpack.c.h.b16 %v3280
    %v3371 = vunpack.c.l.b16 %v3281
    %v3372 = vunpack.c.h.b16 %v3281
    %v3373 = vunpack.c.l.b16 %v3282
    %v3374 = vunpack.c.h.b16 %v3282
    %v3375 = vunpack.c.l.b16 %v3283
    %v3376 = vunpack.c.h.b16 %v3283
    %v3377 = vunpack.c.l.b16 %v3284
    %v3378 = vunpack.c.h.b16 %v3284
    %v3379 = vunpack.c.l.b16 %v3285
    %v3380 = vunpack.c.h.b16 %v3285
    %v3381 = vunpack.c.l.b16 %v3286
    %v3382 = vunpack.c.h.b16 %v3286
    %v3383 = vpack.c.b16 %v3323, %v3319
    %v3384 = vpack.c.b16 %v3324, %v3320
    %v3385 = vpack.c.b16 %v3325, %v3321
    %v3386 = vpack.c.b16 %v3326, %v3322
    %v3387 = vpack.c.b16 %v3331, %v3327
    %v3388 = vpack.c.b16 %v3332, %v3328
    %v3389 = vpack.c.b16 %v3333, %v3329
    %v3390 = vpack.c.b16 %v3334, %v3330
    %v3391 = vpack.c.b16 %v3339, %v3335
    %v3392 = vpack.c.b16 %v3340, %v3336
    %v3393 = vpack.c.b16 %v3341, %v3337
    %v3394 = vpack.c.b16 %v3342, %v3338
    %v3395 = vpack.c.b16 %v3347, %v3343
    %v3396 = vpack.c.b16 %v3348, %v3344
    %v3397 = vpack.c.b16 %v3349, %v3345
    %v3398 = vpack.c.b16 %v3350, %v3346
    %v3399 = vpack.c.b16 %v3355, %v3351
    %v3400 = vpack.c.b16 %v3356, %v3352
    %v3401 = vpack.c.b16 %v3357, %v3353
    %v3402 = vpack.c.b16 %v3358, %v3354
    %v3403 = vpack.c.b16 %v3363, %v3359
    %v3404 = vpack.c.b16 %v3364, %v3360
    %v3405 = vpack.c.b16 %v3365, %v3361
    %v3406 = vpack.c.b16 %v3366, %v3362
    %v3407 = vpack.c.b16 %v3371, %v3367
    %v3408 = vpack.c.b16 %v3372, %v3368
    %v3409 = vpack.c.b16 %v3373, %v3369
    %v3410 = vpack.c.b16 %v3374, %v3370
    %v3411 = vpack.c.b16 %v3379, %v3375
    %v3412 = vpack.c.b16 %v3380, %v3376
    %v3413 = vpack.c.b16 %v3381, %v3377
    %v3414 = vpack.c.b16 %v3382, %v3378
    %3447 = vmatpush.bf16.msra.mxu0 %v3411
    %3448 = vmatpush.bf16.msra.mxu0 %v3407
    %3449 = vmatpush.bf16.msra.mxu0 %v3403
    %3450 = vmatpush.bf16.msra.mxu0 %v3399
    %3451 = vmatpush.bf16.msra.mxu0 %v3395
    %3452 = vmatpush.bf16.msra.mxu0 %v3391
    %3453 = vmatpush.bf16.msra.mxu0 %v3387
    %3454 = vmatpush.bf16.msra.mxu0 %v3383
    %3455 = vmatmul.bf16.gmra.mxu0 %v3254
    %v3456 = vpop.f32.mrf.mxu0
    %v3457 = vadd.f32 0.0, %v3456
    %v3458 = vpop.f32.mrf.mxu0
    %v3459 = vadd.f32 0.0, %v3458
    %3460 = vdwg.mxu0
    %3461 = vmatpush.bf16.msra.mxu0 %v3412
    %3462 = vmatpush.bf16.msra.mxu0 %v3408
    %3463 = vmatpush.bf16.msra.mxu0 %v3404
    %3464 = vmatpush.bf16.msra.mxu0 %v3400
    %3465 = vmatpush.bf16.msra.mxu0 %v3396
    %3466 = vmatpush.bf16.msra.mxu0 %v3392
    %3467 = vmatpush.bf16.msra.mxu0 %v3388
    %3468 = vmatpush.bf16.msra.mxu0 %v3384
    %3469 = vmatmul.bf16.gmra.mxu0 %v3254
    %v3470 = vpop.f32.mrf.mxu0
    %v3471 = vadd.f32 0.0, %v3470
    %v3472 = vpop.f32.mrf.mxu0
    %v3473 = vadd.f32 0.0, %v3472
    %3474 = vdwg.mxu0
    %3475 = vmatpush.bf16.msra.mxu0 %v3413
    %3476 = vmatpush.bf16.msra.mxu0 %v3409
    %3477 = vmatpush.bf16.msra.mxu0 %v3405
    %3478 = vmatpush.bf16.msra.mxu0 %v3401
    %3479 = vmatpush.bf16.msra.mxu0 %v3397
    %3480 = vmatpush.bf16.msra.mxu0 %v3393
    %3481 = vmatpush.bf16.msra.mxu0 %v3389
    %3482 = vmatpush.bf16.msra.mxu0 %v3385
    %3483 = vmatmul.bf16.gmra.mxu0 %v3254
    %v3484 = vpop.f32.mrf.mxu0
    %v3485 = vadd.f32 0.0, %v3484
    %v3486 = vpop.f32.mrf.mxu0
    %v3487 = vadd.f32 0.0, %v3486
    %3488 = vdwg.mxu0
    %3489 = vmatpush.bf16.msra.mxu0 %v3414
    %3490 = vmatpush.bf16.msra.mxu0 %v3410
    %3491 = vmatpush.bf16.msra.mxu0 %v3406
    %3492 = vmatpush.bf16.msra.mxu0 %v3402
    %3493 = vmatpush.bf16.msra.mxu0 %v3398
    %3494 = vmatpush.bf16.msra.mxu0 %v3394
    %3495 = vmatpush.bf16.msra.mxu0 %v3390
    %3496 = vmatpush.bf16.msra.mxu0 %v3386
    %3497 = vmatmul.bf16.gmra.mxu0 %v3254
    %v3498 = vpop.f32.mrf.mxu0
    %v3499 = vadd.f32 0.0, %v3498
    %v3500 = vpop.f32.mrf.mxu0
    %v3501 = vadd.f32 0.0, %v3500
    %3502 = vdwg.mxu0
    %v3503 = vadd.f32 %v3246, %v3457
    %v3504 = vadd.f32 %v3247, %v3471
    %v3505 = vadd.f32 %v3248, %v3485
    %v3506 = vadd.f32 %v3249, %v3499
    %v3507 = vadd.f32 %v3250, %v3459
    %v3508 = vadd.f32 %v3251, %v3473
    %v3509 = vadd.f32 %v3252, %v3487
    %v3510 = vadd.f32 %v3253, %v3501
    %v3511 = vxor.u32 %v3503, 2147483648
    %v3512 = vxor.u32 %v3504, 2147483648
    %v3513 = vxor.u32 %v3505, 2147483648
    %v3514 = vxor.u32 %v3507, 2147483648
    %v3515 = vxor.u32 %v3508, 2147483648
    %v3516 = vxor.u32 %v3509, 2147483648
    %v3517 = vmul.f32 %v3511, 1.442695
    %v3518 = vpow.pop %v3517
    %v3519 = vmul.f32 %v3512, 1.442695
    %v3520 = vpow.pop %v3519
    %v3521 = vmul.f32 %v3513, 1.442695
    %v3522 = vpow.pop %v3521
    %v3523 = vmul.f32 %v3514, 1.442695
    %v3524 = vpow.pop %v3523
    %v3525 = vmul.f32 %v3515, 1.442695
    %v3526 = vpow.pop %v3525
    %v3527 = vmul.f32 %v3516, 1.442695
    %v3528 = vpow.pop %v3527
    %v3529 = vadd.f32 %v3518, 1.0
    %v3530 = vadd.f32 %v3520, 1.0
    %v3531 = vadd.f32 %v3522, 1.0
    %v3532 = vadd.f32 %v3524, 1.0
    %v3533 = vadd.f32 %v3526, 1.0
    %v3534 = vadd.f32 %v3528, 1.0
    %v3535 = vrcp.pop %v3529
    %v3536 = vmul.f32 %v3529, %v3535
    %v3537 = vsub.f32 1.0, %v3536
    %v3538 = vmul.f32 %v3535, %v3537
    %v3539 = vadd.f32 %v3535, %v3538
    %vm3540 = vweird.f32 %v3529
    %vm3541 = vweird.f32 %v3535
    %vm3542 = vmor %vm3540, %vm3541
    %v3543 = vsel %vm3542, %v3535, %v3539
    %v3544 = vand.u32 2147483647, %v3529
    %vm3545 = vcmp.eq.f32.partialorder %v3544, 8.507059e+37
    %v3546 = vand.u32 %v3529, 2147483648
    %v3547 = vor.u32 1.1754944e-38, %v3546
    %v3548 = vsel %vm3545, %v3547, %v3543
    %v3549 = vmul.f32 1.0, %v3548
    %v3550 = vrcp.pop %v3530
    %v3551 = vmul.f32 %v3530, %v3550
    %v3552 = vsub.f32 1.0, %v3551
    %v3553 = vmul.f32 %v3550, %v3552
    %v3554 = vadd.f32 %v3550, %v3553
    %vm3555 = vweird.f32 %v3530
    %vm3556 = vweird.f32 %v3550
    %vm3557 = vmor %vm3555, %vm3556
    %v3558 = vsel %vm3557, %v3550, %v3554
    %v3559 = vand.u32 2147483647, %v3530
    %vm3560 = vcmp.eq.f32.partialorder %v3559, 8.507059e+37
    %v3561 = vand.u32 %v3530, 2147483648
    %v3562 = vor.u32 1.1754944e-38, %v3561
    %v3563 = vsel %vm3560, %v3562, %v3558
    %v3564 = vmul.f32 1.0, %v3563
    %v3565 = vrcp.pop %v3531
    %v3566 = vmul.f32 %v3531, %v3565
    %v3567 = vsub.f32 1.0, %v3566
    %v3568 = vmul.f32 %v3565, %v3567
    %v3569 = vadd.f32 %v3565, %v3568
    %vm3570 = vweird.f32 %v3531
    %vm3571 = vweird.f32 %v3565
    %vm3572 = vmor %vm3570, %vm3571
    %v3573 = vsel %vm3572, %v3565, %v3569
    %v3574 = vand.u32 2147483647, %v3531
    %vm3575 = vcmp.eq.f32.partialorder %v3574, 8.507059e+37
    %v3576 = vand.u32 %v3531, 2147483648
    %v3577 = vor.u32 1.1754944e-38, %v3576
    %v3578 = vsel %vm3575, %v3577, %v3573
    %v3579 = vmul.f32 1.0, %v3578
    %v3580 = vrcp.pop %v3532
    %v3581 = vmul.f32 %v3532, %v3580
    %v3582 = vsub.f32 1.0, %v3581
    %v3583 = vmul.f32 %v3580, %v3582
    %v3584 = vadd.f32 %v3580, %v3583
    %vm3585 = vweird.f32 %v3532
    %vm3586 = vweird.f32 %v3580
    %vm3587 = vmor %vm3585, %vm3586
    %v3588 = vsel %vm3587, %v3580, %v3584
    %v3589 = vand.u32 2147483647, %v3532
    %vm3590 = vcmp.eq.f32.partialorder %v3589, 8.507059e+37
    %v3591 = vand.u32 %v3532, 2147483648
    %v3592 = vor.u32 1.1754944e-38, %v3591
    %v3593 = vsel %vm3590, %v3592, %v3588
    %v3594 = vmul.f32 1.0, %v3593
    %v3595 = vrcp.pop %v3533
    %v3596 = vmul.f32 %v3533, %v3595
    %v3597 = vsub.f32 1.0, %v3596
    %v3598 = vmul.f32 %v3595, %v3597
    %v3599 = vadd.f32 %v3595, %v3598
    %vm3600 = vweird.f32 %v3533
    %vm3601 = vweird.f32 %v3595
    %vm3602 = vmor %vm3600, %vm3601
    %v3603 = vsel %vm3602, %v3595, %v3599
    %v3604 = vand.u32 2147483647, %v3533
    %vm3605 = vcmp.eq.f32.partialorder %v3604, 8.507059e+37
    %v3606 = vand.u32 %v3533, 2147483648
    %v3607 = vor.u32 1.1754944e-38, %v3606
    %v3608 = vsel %vm3605, %v3607, %v3603
    %v3609 = vmul.f32 1.0, %v3608
    %v3610 = vrcp.pop %v3534
    %v3611 = vmul.f32 %v3534, %v3610
    %v3612 = vsub.f32 1.0, %v3611
    %v3613 = vmul.f32 %v3610, %v3612
    %v3614 = vadd.f32 %v3610, %v3613
    %vm3615 = vweird.f32 %v3534
    %vm3616 = vweird.f32 %v3610
    %vm3617 = vmor %vm3615, %vm3616
    %v3618 = vsel %vm3617, %v3610, %v3614
    %v3619 = vand.u32 2147483647, %v3534
    %vm3620 = vcmp.eq.f32.partialorder %v3619, 8.507059e+37
    %v3621 = vand.u32 %v3534, 2147483648
    %v3622 = vor.u32 1.1754944e-38, %v3621
    %v3623 = vsel %vm3620, %v3622, %v3618
    %v3624 = vmul.f32 1.0, %v3623
    %v3625 = vtanh.pop %v3506
    %v3626 = vtanh.pop %v3510
    %v3627 = vmul.f32 %v3564, %v3212
    %v3628 = vmul.f32 %v3609, %v3213
    %v3629 = vmul.f32 %v3549, %v3625
    %v3630 = vmul.f32 %v3594, %v3626
    %v3631 = vadd.f32 %v3627, %v3629
    %v3632 = vadd.f32 %v3628, %v3630
    %v3633 = vtanh.pop %v3631
    %v3634 = vtanh.pop %v3632
    %v3635 = vmul.f32 %v3579, %v3633
    %v3636 = vmul.f32 %v3624, %v3634
    %s3637 = sadd.s32 %s1541, %s3242
    %v3638 = vstv %s3637
    %vm3639 = vcmp.gt.s32.totalorder %v1130, %v3638
    %vm3640 = vcmp.gt.s32.totalorder %v1131, %v3638
    %v3641 = vsel %vm3639, 1, 0
    %v3642 = vsel %vm3640, 1, 0
    %v3643 = vcvt.s32.f32 %v3641
    %v3644 = vcvt.s32.f32 %v3642
    %3646 = vset.pattern.permute.xlu0 0
    %3647 = vperm.xlu0 %3646, %v3643
    %v3648 = vpop.permute.xlu0 %3647
    %3651 = vset.pattern.permute.xlu0 0
    %3652 = vperm.xlu0 %3651, %v3644
    %v3653 = vpop.permute.xlu0 %3652
    %v3655 = vmul.f32 %v3635, %v3648
    %v3656 = vmul.f32 %v3636, %v3653
    %s3657 = smul.u32 %s3242, 16
    %s3658 = scalar_lea.vmem %s5, %s3657
    %3659 = vst [vmem:[%s3658] sm:$0xff] %v3655
    %3660 = vst [vmem:[%s3658 + $0x8] sm:$0xff] %v3656
    %s3661 = sadd.s32 %s1146, 6
    %s3662 = smul.u32 %s3661, 8
    %s3663 = smul.addr %s3662, 8
    %s3664 = scalar_lea.vmem [#allocation2], %s3663
    %v3665 = vld [vmem:[%s3664] sm:$0xff]
    %v3666 = vld [vmem:[%s3664 + $0x8] sm:$0xff]
    %v3667 = vld [vmem:[%s3664 + $0x10] sm:$0xff]
    %v3668 = vld [vmem:[%s3664 + $0x18] sm:$0xff]
    %v3669 = vld [vmem:[%s3664 + $0x20] sm:$0xff]
    %v3670 = vld [vmem:[%s3664 + $0x28] sm:$0xff]
    %v3671 = vld [vmem:[%s3664 + $0x30] sm:$0xff]
    %v3672 = vld [vmem:[%s3664 + $0x38] sm:$0xff]
    %v3673 = vpack.c.bf16 %v3636, %v3635
    %v3674 = vld [vmem:[%s3] sm:$0xff]
    %v3675 = vld [vmem:[%s3 + $0x8] sm:$0xff]
    %v3676 = vld [vmem:[%s3 + $0x10] sm:$0xff]
    %v3677 = vld [vmem:[%s3 + $0x18] sm:$0xff]
    %v3678 = vld [vmem:[%s3 + $0x20] sm:$0xff]
    %v3679 = vld [vmem:[%s3 + $0x28] sm:$0xff]
    %v3680 = vld [vmem:[%s3 + $0x30] sm:$0xff]
    %v3681 = vld [vmem:[%s3 + $0x38] sm:$0xff]
    %v3682 = vld [vmem:[%s3 + $0x40] sm:$0xff]
    %v3683 = vld [vmem:[%s3 + $0x48] sm:$0xff]
    %v3684 = vld [vmem:[%s3 + $0x50] sm:$0xff]
    %v3685 = vld [vmem:[%s3 + $0x58] sm:$0xff]
    %v3686 = vld [vmem:[%s3 + $0x60] sm:$0xff]
    %v3687 = vld [vmem:[%s3 + $0x68] sm:$0xff]
    %v3688 = vld [vmem:[%s3 + $0x70] sm:$0xff]
    %v3689 = vld [vmem:[%s3 + $0x78] sm:$0xff]
    %v3690 = vld [vmem:[%s3 + $0x80] sm:$0xff]
    %v3691 = vld [vmem:[%s3 + $0x88] sm:$0xff]
    %v3692 = vld [vmem:[%s3 + $0x90] sm:$0xff]
    %v3693 = vld [vmem:[%s3 + $0x98] sm:$0xff]
    %v3694 = vld [vmem:[%s3 + $0xa0] sm:$0xff]
    %v3695 = vld [vmem:[%s3 + $0xa8] sm:$0xff]
    %v3696 = vld [vmem:[%s3 + $0xb0] sm:$0xff]
    %v3697 = vld [vmem:[%s3 + $0xb8] sm:$0xff]
    %v3698 = vld [vmem:[%s3 + $0xc0] sm:$0xff]
    %v3699 = vld [vmem:[%s3 + $0xc8] sm:$0xff]
    %v3700 = vld [vmem:[%s3 + $0xd0] sm:$0xff]
    %v3701 = vld [vmem:[%s3 + $0xd8] sm:$0xff]
    %v3702 = vld [vmem:[%s3 + $0xe0] sm:$0xff]
    %v3703 = vld [vmem:[%s3 + $0xe8] sm:$0xff]
    %v3704 = vld [vmem:[%s3 + $0xf0] sm:$0xff]
    %v3705 = vld [vmem:[%s3 + $0xf8] sm:$0xff]
    %v3738 = vunpack.c.l.b16 %v3674
    %v3739 = vunpack.c.h.b16 %v3674
    %v3740 = vunpack.c.l.b16 %v3675
    %v3741 = vunpack.c.h.b16 %v3675
    %v3742 = vunpack.c.l.b16 %v3676
    %v3743 = vunpack.c.h.b16 %v3676
    %v3744 = vunpack.c.l.b16 %v3677
    %v3745 = vunpack.c.h.b16 %v3677
    %v3746 = vunpack.c.l.b16 %v3678
    %v3747 = vunpack.c.h.b16 %v3678
    %v3748 = vunpack.c.l.b16 %v3679
    %v3749 = vunpack.c.h.b16 %v3679
    %v3750 = vunpack.c.l.b16 %v3680
    %v3751 = vunpack.c.h.b16 %v3680
    %v3752 = vunpack.c.l.b16 %v3681
    %v3753 = vunpack.c.h.b16 %v3681
    %v3754 = vunpack.c.l.b16 %v3682
    %v3755 = vunpack.c.h.b16 %v3682
    %v3756 = vunpack.c.l.b16 %v3683
    %v3757 = vunpack.c.h.b16 %v3683
    %v3758 = vunpack.c.l.b16 %v3684
    %v3759 = vunpack.c.h.b16 %v3684
    %v3760 = vunpack.c.l.b16 %v3685
    %v3761 = vunpack.c.h.b16 %v3685
    %v3762 = vunpack.c.l.b16 %v3686
    %v3763 = vunpack.c.h.b16 %v3686
    %v3764 = vunpack.c.l.b16 %v3687
    %v3765 = vunpack.c.h.b16 %v3687
    %v3766 = vunpack.c.l.b16 %v3688
    %v3767 = vunpack.c.h.b16 %v3688
    %v3768 = vunpack.c.l.b16 %v3689
    %v3769 = vunpack.c.h.b16 %v3689
    %v3770 = vunpack.c.l.b16 %v3690
    %v3771 = vunpack.c.h.b16 %v3690
    %v3772 = vunpack.c.l.b16 %v3691
    %v3773 = vunpack.c.h.b16 %v3691
    %v3774 = vunpack.c.l.b16 %v3692
    %v3775 = vunpack.c.h.b16 %v3692
    %v3776 = vunpack.c.l.b16 %v3693
    %v3777 = vunpack.c.h.b16 %v3693
    %v3778 = vunpack.c.l.b16 %v3694
    %v3779 = vunpack.c.h.b16 %v3694
    %v3780 = vunpack.c.l.b16 %v3695
    %v3781 = vunpack.c.h.b16 %v3695
    %v3782 = vunpack.c.l.b16 %v3696
    %v3783 = vunpack.c.h.b16 %v3696
    %v3784 = vunpack.c.l.b16 %v3697
    %v3785 = vunpack.c.h.b16 %v3697
    %v3786 = vunpack.c.l.b16 %v3698
    %v3787 = vunpack.c.h.b16 %v3698
    %v3788 = vunpack.c.l.b16 %v3699
    %v3789 = vunpack.c.h.b16 %v3699
    %v3790 = vunpack.c.l.b16 %v3700
    %v3791 = vunpack.c.h.b16 %v3700
    %v3792 = vunpack.c.l.b16 %v3701
    %v3793 = vunpack.c.h.b16 %v3701
    %v3794 = vunpack.c.l.b16 %v3702
    %v3795 = vunpack.c.h.b16 %v3702
    %v3796 = vunpack.c.l.b16 %v3703
    %v3797 = vunpack.c.h.b16 %v3703
    %v3798 = vunpack.c.l.b16 %v3704
    %v3799 = vunpack.c.h.b16 %v3704
    %v3800 = vunpack.c.l.b16 %v3705
    %v3801 = vunpack.c.h.b16 %v3705
    %v3802 = vpack.c.b16 %v3742, %v3738
    %v3803 = vpack.c.b16 %v3743, %v3739
    %v3804 = vpack.c.b16 %v3744, %v3740
    %v3805 = vpack.c.b16 %v3745, %v3741
    %v3806 = vpack.c.b16 %v3750, %v3746
    %v3807 = vpack.c.b16 %v3751, %v3747
    %v3808 = vpack.c.b16 %v3752, %v3748
    %v3809 = vpack.c.b16 %v3753, %v3749
    %v3810 = vpack.c.b16 %v3758, %v3754
    %v3811 = vpack.c.b16 %v3759, %v3755
    %v3812 = vpack.c.b16 %v3760, %v3756
    %v3813 = vpack.c.b16 %v3761, %v3757
    %v3814 = vpack.c.b16 %v3766, %v3762
    %v3815 = vpack.c.b16 %v3767, %v3763
    %v3816 = vpack.c.b16 %v3768, %v3764
    %v3817 = vpack.c.b16 %v3769, %v3765
    %v3818 = vpack.c.b16 %v3774, %v3770
    %v3819 = vpack.c.b16 %v3775, %v3771
    %v3820 = vpack.c.b16 %v3776, %v3772
    %v3821 = vpack.c.b16 %v3777, %v3773
    %v3822 = vpack.c.b16 %v3782, %v3778
    %v3823 = vpack.c.b16 %v3783, %v3779
    %v3824 = vpack.c.b16 %v3784, %v3780
    %v3825 = vpack.c.b16 %v3785, %v3781
    %v3826 = vpack.c.b16 %v3790, %v3786
    %v3827 = vpack.c.b16 %v3791, %v3787
    %v3828 = vpack.c.b16 %v3792, %v3788
    %v3829 = vpack.c.b16 %v3793, %v3789
    %v3830 = vpack.c.b16 %v3798, %v3794
    %v3831 = vpack.c.b16 %v3799, %v3795
    %v3832 = vpack.c.b16 %v3800, %v3796
    %v3833 = vpack.c.b16 %v3801, %v3797
    %3866 = vmatpush.bf16.msra.mxu0 %v3830
    %3867 = vmatpush.bf16.msra.mxu0 %v3826
    %3868 = vmatpush.bf16.msra.mxu0 %v3822
    %3869 = vmatpush.bf16.msra.mxu0 %v3818
    %3870 = vmatpush.bf16.msra.mxu0 %v3814
    %3871 = vmatpush.bf16.msra.mxu0 %v3810
    %3872 = vmatpush.bf16.msra.mxu0 %v3806
    %3873 = vmatpush.bf16.msra.mxu0 %v3802
    %3874 = vmatmul.bf16.gmra.mxu0 %v3673
    %v3875 = vpop.f32.mrf.mxu0
    %v3876 = vadd.f32 0.0, %v3875
    %v3877 = vpop.f32.mrf.mxu0
    %v3878 = vadd.f32 0.0, %v3877
    %3879 = vdwg.mxu0
    %3880 = vmatpush.bf16.msra.mxu0 %v3831
    %3881 = vmatpush.bf16.msra.mxu0 %v3827
    %3882 = vmatpush.bf16.msra.mxu0 %v3823
    %3883 = vmatpush.bf16.msra.mxu0 %v3819
    %3884 = vmatpush.bf16.msra.mxu0 %v3815
    %3885 = vmatpush.bf16.msra.mxu0 %v3811
    %3886 = vmatpush.bf16.msra.mxu0 %v3807
    %3887 = vmatpush.bf16.msra.mxu0 %v3803
    %3888 = vmatmul.bf16.gmra.mxu0 %v3673
    %v3889 = vpop.f32.mrf.mxu0
    %v3890 = vadd.f32 0.0, %v3889
    %v3891 = vpop.f32.mrf.mxu0
    %v3892 = vadd.f32 0.0, %v3891
    %3893 = vdwg.mxu0
    %3894 = vmatpush.bf16.msra.mxu0 %v3832
    %3895 = vmatpush.bf16.msra.mxu0 %v3828
    %3896 = vmatpush.bf16.msra.mxu0 %v3824
    %3897 = vmatpush.bf16.msra.mxu0 %v3820
    %3898 = vmatpush.bf16.msra.mxu0 %v3816
    %3899 = vmatpush.bf16.msra.mxu0 %v3812
    %3900 = vmatpush.bf16.msra.mxu0 %v3808
    %3901 = vmatpush.bf16.msra.mxu0 %v3804
    %3902 = vmatmul.bf16.gmra.mxu0 %v3673
    %v3903 = vpop.f32.mrf.mxu0
    %v3904 = vadd.f32 0.0, %v3903
    %v3905 = vpop.f32.mrf.mxu0
    %v3906 = vadd.f32 0.0, %v3905
    %3907 = vdwg.mxu0
    %3908 = vmatpush.bf16.msra.mxu0 %v3833
    %3909 = vmatpush.bf16.msra.mxu0 %v3829
    %3910 = vmatpush.bf16.msra.mxu0 %v3825
    %3911 = vmatpush.bf16.msra.mxu0 %v3821
    %3912 = vmatpush.bf16.msra.mxu0 %v3817
    %3913 = vmatpush.bf16.msra.mxu0 %v3813
    %3914 = vmatpush.bf16.msra.mxu0 %v3809
    %3915 = vmatpush.bf16.msra.mxu0 %v3805
    %3916 = vmatmul.bf16.gmra.mxu0 %v3673
    %v3917 = vpop.f32.mrf.mxu0
    %v3918 = vadd.f32 0.0, %v3917
    %v3919 = vpop.f32.mrf.mxu0
    %v3920 = vadd.f32 0.0, %v3919
    %3921 = vdwg.mxu0
    %v3922 = vadd.f32 %v3665, %v3876
    %v3923 = vadd.f32 %v3666, %v3890
    %v3924 = vadd.f32 %v3667, %v3904
    %v3925 = vadd.f32 %v3668, %v3918
    %v3926 = vadd.f32 %v3669, %v3878
    %v3927 = vadd.f32 %v3670, %v3892
    %v3928 = vadd.f32 %v3671, %v3906
    %v3929 = vadd.f32 %v3672, %v3920
    %v3930 = vxor.u32 %v3922, 2147483648
    %v3931 = vxor.u32 %v3923, 2147483648
    %v3932 = vxor.u32 %v3924, 2147483648
    %v3933 = vxor.u32 %v3926, 2147483648
    %v3934 = vxor.u32 %v3927, 2147483648
    %v3935 = vxor.u32 %v3928, 2147483648
    %v3936 = vmul.f32 %v3930, 1.442695
    %v3937 = vpow.pop %v3936
    %v3938 = vmul.f32 %v3931, 1.442695
    %v3939 = vpow.pop %v3938
    %v3940 = vmul.f32 %v3932, 1.442695
    %v3941 = vpow.pop %v3940
    %v3942 = vmul.f32 %v3933, 1.442695
    %v3943 = vpow.pop %v3942
    %v3944 = vmul.f32 %v3934, 1.442695
    %v3945 = vpow.pop %v3944
    %v3946 = vmul.f32 %v3935, 1.442695
    %v3947 = vpow.pop %v3946
    %v3948 = vadd.f32 %v3937, 1.0
    %v3949 = vadd.f32 %v3939, 1.0
    %v3950 = vadd.f32 %v3941, 1.0
    %v3951 = vadd.f32 %v3943, 1.0
    %v3952 = vadd.f32 %v3945, 1.0
    %v3953 = vadd.f32 %v3947, 1.0
    %v3954 = vrcp.pop %v3948
    %v3955 = vmul.f32 %v3948, %v3954
    %v3956 = vsub.f32 1.0, %v3955
    %v3957 = vmul.f32 %v3954, %v3956
    %v3958 = vadd.f32 %v3954, %v3957
    %vm3959 = vweird.f32 %v3948
    %vm3960 = vweird.f32 %v3954
    %vm3961 = vmor %vm3959, %vm3960
    %v3962 = vsel %vm3961, %v3954, %v3958
    %v3963 = vand.u32 2147483647, %v3948
    %vm3964 = vcmp.eq.f32.partialorder %v3963, 8.507059e+37
    %v3965 = vand.u32 %v3948, 2147483648
    %v3966 = vor.u32 1.1754944e-38, %v3965
    %v3967 = vsel %vm3964, %v3966, %v3962
    %v3968 = vmul.f32 1.0, %v3967
    %v3969 = vrcp.pop %v3949
    %v3970 = vmul.f32 %v3949, %v3969
    %v3971 = vsub.f32 1.0, %v3970
    %v3972 = vmul.f32 %v3969, %v3971
    %v3973 = vadd.f32 %v3969, %v3972
    %vm3974 = vweird.f32 %v3949
    %vm3975 = vweird.f32 %v3969
    %vm3976 = vmor %vm3974, %vm3975
    %v3977 = vsel %vm3976, %v3969, %v3973
    %v3978 = vand.u32 2147483647, %v3949
    %vm3979 = vcmp.eq.f32.partialorder %v3978, 8.507059e+37
    %v3980 = vand.u32 %v3949, 2147483648
    %v3981 = vor.u32 1.1754944e-38, %v3980
    %v3982 = vsel %vm3979, %v3981, %v3977
    %v3983 = vmul.f32 1.0, %v3982
    %v3984 = vrcp.pop %v3950
    %v3985 = vmul.f32 %v3950, %v3984
    %v3986 = vsub.f32 1.0, %v3985
    %v3987 = vmul.f32 %v3984, %v3986
    %v3988 = vadd.f32 %v3984, %v3987
    %vm3989 = vweird.f32 %v3950
    %vm3990 = vweird.f32 %v3984
    %vm3991 = vmor %vm3989, %vm3990
    %v3992 = vsel %vm3991, %v3984, %v3988
    %v3993 = vand.u32 2147483647, %v3950
    %vm3994 = vcmp.eq.f32.partialorder %v3993, 8.507059e+37
    %v3995 = vand.u32 %v3950, 2147483648
    %v3996 = vor.u32 1.1754944e-38, %v3995
    %v3997 = vsel %vm3994, %v3996, %v3992
    %v3998 = vmul.f32 1.0, %v3997
    %v3999 = vrcp.pop %v3951
    %v4000 = vmul.f32 %v3951, %v3999
    %v4001 = vsub.f32 1.0, %v4000
    %v4002 = vmul.f32 %v3999, %v4001
    %v4003 = vadd.f32 %v3999, %v4002
    %vm4004 = vweird.f32 %v3951
    %vm4005 = vweird.f32 %v3999
    %vm4006 = vmor %vm4004, %vm4005
    %v4007 = vsel %vm4006, %v3999, %v4003
    %v4008 = vand.u32 2147483647, %v3951
    %vm4009 = vcmp.eq.f32.partialorder %v4008, 8.507059e+37
    %v4010 = vand.u32 %v3951, 2147483648
    %v4011 = vor.u32 1.1754944e-38, %v4010
    %v4012 = vsel %vm4009, %v4011, %v4007
    %v4013 = vmul.f32 1.0, %v4012
    %v4014 = vrcp.pop %v3952
    %v4015 = vmul.f32 %v3952, %v4014
    %v4016 = vsub.f32 1.0, %v4015
    %v4017 = vmul.f32 %v4014, %v4016
    %v4018 = vadd.f32 %v4014, %v4017
    %vm4019 = vweird.f32 %v3952
    %vm4020 = vweird.f32 %v4014
    %vm4021 = vmor %vm4019, %vm4020
    %v4022 = vsel %vm4021, %v4014, %v4018
    %v4023 = vand.u32 2147483647, %v3952
    %vm4024 = vcmp.eq.f32.partialorder %v4023, 8.507059e+37
    %v4025 = vand.u32 %v3952, 2147483648
    %v4026 = vor.u32 1.1754944e-38, %v4025
    %v4027 = vsel %vm4024, %v4026, %v4022
    %v4028 = vmul.f32 1.0, %v4027
    %v4029 = vrcp.pop %v3953
    %v4030 = vmul.f32 %v3953, %v4029
    %v4031 = vsub.f32 1.0, %v4030
    %v4032 = vmul.f32 %v4029, %v4031
    %v4033 = vadd.f32 %v4029, %v4032
    %vm4034 = vweird.f32 %v3953
    %vm4035 = vweird.f32 %v4029
    %vm4036 = vmor %vm4034, %vm4035
    %v4037 = vsel %vm4036, %v4029, %v4033
    %v4038 = vand.u32 2147483647, %v3953
    %vm4039 = vcmp.eq.f32.partialorder %v4038, 8.507059e+37
    %v4040 = vand.u32 %v3953, 2147483648
    %v4041 = vor.u32 1.1754944e-38, %v4040
    %v4042 = vsel %vm4039, %v4041, %v4037
    %v4043 = vmul.f32 1.0, %v4042
    %v4044 = vtanh.pop %v3925
    %v4045 = vtanh.pop %v3929
    %v4046 = vmul.f32 %v3983, %v3631
    %v4047 = vmul.f32 %v4028, %v3632
    %v4048 = vmul.f32 %v3968, %v4044
    %v4049 = vmul.f32 %v4013, %v4045
    %v4050 = vadd.f32 %v4046, %v4048
    %v4051 = vadd.f32 %v4047, %v4049
    %v4052 = vtanh.pop %v4050
    %v4053 = vtanh.pop %v4051
    %v4054 = vmul.f32 %v3998, %v4052
    %v4055 = vmul.f32 %v4043, %v4053
    %s4056 = sadd.s32 %s1541, %s3661
    %v4057 = vstv %s4056
    %vm4058 = vcmp.gt.s32.totalorder %v1130, %v4057
    %vm4059 = vcmp.gt.s32.totalorder %v1131, %v4057
    %v4060 = vsel %vm4058, 1, 0
    %v4061 = vsel %vm4059, 1, 0
    %v4062 = vcvt.s32.f32 %v4060
    %v4063 = vcvt.s32.f32 %v4061
    %4065 = vset.pattern.permute.xlu0 0
    %4066 = vperm.xlu0 %4065, %v4062
    %v4067 = vpop.permute.xlu0 %4066
    %4070 = vset.pattern.permute.xlu0 0
    %4071 = vperm.xlu0 %4070, %v4063
    %v4072 = vpop.permute.xlu0 %4071
    %v4074 = vmul.f32 %v4054, %v4067
    %v4075 = vmul.f32 %v4055, %v4072
    %s4076 = smul.u32 %s3661, 16
    %s4077 = scalar_lea.vmem %s5, %s4076
    %4078 = vst [vmem:[%s4077] sm:$0xff] %v4074
    %4079 = vst [vmem:[%s4077 + $0x8] sm:$0xff] %v4075
    %s4080 = sadd.s32 %s1146, 7
    %s4081 = smul.u32 %s4080, 8
    %s4082 = smul.addr %s4081, 8
    %s4083 = scalar_lea.vmem [#allocation2], %s4082
    %v4084 = vld [vmem:[%s4083] sm:$0xff]
    %v4085 = vld [vmem:[%s4083 + $0x8] sm:$0xff]
    %v4086 = vld [vmem:[%s4083 + $0x10] sm:$0xff]
    %v4087 = vld [vmem:[%s4083 + $0x18] sm:$0xff]
    %v4088 = vld [vmem:[%s4083 + $0x20] sm:$0xff]
    %v4089 = vld [vmem:[%s4083 + $0x28] sm:$0xff]
    %v4090 = vld [vmem:[%s4083 + $0x30] sm:$0xff]
    %v4091 = vld [vmem:[%s4083 + $0x38] sm:$0xff]
    %v4092 = vpack.c.bf16 %v4055, %v4054
    %v4093 = vld [vmem:[%s3] sm:$0xff]
    %v4094 = vld [vmem:[%s3 + $0x8] sm:$0xff]
    %v4095 = vld [vmem:[%s3 + $0x10] sm:$0xff]
    %v4096 = vld [vmem:[%s3 + $0x18] sm:$0xff]
    %v4097 = vld [vmem:[%s3 + $0x20] sm:$0xff]
    %v4098 = vld [vmem:[%s3 + $0x28] sm:$0xff]
    %v4099 = vld [vmem:[%s3 + $0x30] sm:$0xff]
    %v4100 = vld [vmem:[%s3 + $0x38] sm:$0xff]
    %v4101 = vld [vmem:[%s3 + $0x40] sm:$0xff]
    %v4102 = vld [vmem:[%s3 + $0x48] sm:$0xff]
    %v4103 = vld [vmem:[%s3 + $0x50] sm:$0xff]
    %v4104 = vld [vmem:[%s3 + $0x58] sm:$0xff]
    %v4105 = vld [vmem:[%s3 + $0x60] sm:$0xff]
    %v4106 = vld [vmem:[%s3 + $0x68] sm:$0xff]
    %v4107 = vld [vmem:[%s3 + $0x70] sm:$0xff]
    %v4108 = vld [vmem:[%s3 + $0x78] sm:$0xff]
    %v4109 = vld [vmem:[%s3 + $0x80] sm:$0xff]
    %v4110 = vld [vmem:[%s3 + $0x88] sm:$0xff]
    %v4111 = vld [vmem:[%s3 + $0x90] sm:$0xff]
    %v4112 = vld [vmem:[%s3 + $0x98] sm:$0xff]
    %v4113 = vld [vmem:[%s3 + $0xa0] sm:$0xff]
    %v4114 = vld [vmem:[%s3 + $0xa8] sm:$0xff]
    %v4115 = vld [vmem:[%s3 + $0xb0] sm:$0xff]
    %v4116 = vld [vmem:[%s3 + $0xb8] sm:$0xff]
    %v4117 = vld [vmem:[%s3 + $0xc0] sm:$0xff]
    %v4118 = vld [vmem:[%s3 + $0xc8] sm:$0xff]
    %v4119 = vld [vmem:[%s3 + $0xd0] sm:$0xff]
    %v4120 = vld [vmem:[%s3 + $0xd8] sm:$0xff]
    %v4121 = vld [vmem:[%s3 + $0xe0] sm:$0xff]
    %v4122 = vld [vmem:[%s3 + $0xe8] sm:$0xff]
    %v4123 = vld [vmem:[%s3 + $0xf0] sm:$0xff]
    %v4124 = vld [vmem:[%s3 + $0xf8] sm:$0xff]
    %v4157 = vunpack.c.l.b16 %v4093
    %v4158 = vunpack.c.h.b16 %v4093
    %v4159 = vunpack.c.l.b16 %v4094
    %v4160 = vunpack.c.h.b16 %v4094
    %v4161 = vunpack.c.l.b16 %v4095
    %v4162 = vunpack.c.h.b16 %v4095
    %v4163 = vunpack.c.l.b16 %v4096
    %v4164 = vunpack.c.h.b16 %v4096
    %v4165 = vunpack.c.l.b16 %v4097
    %v4166 = vunpack.c.h.b16 %v4097
    %v4167 = vunpack.c.l.b16 %v4098
    %v4168 = vunpack.c.h.b16 %v4098
    %v4169 = vunpack.c.l.b16 %v4099
    %v4170 = vunpack.c.h.b16 %v4099
    %v4171 = vunpack.c.l.b16 %v4100
    %v4172 = vunpack.c.h.b16 %v4100
    %v4173 = vunpack.c.l.b16 %v4101
    %v4174 = vunpack.c.h.b16 %v4101
    %v4175 = vunpack.c.l.b16 %v4102
    %v4176 = vunpack.c.h.b16 %v4102
    %v4177 = vunpack.c.l.b16 %v4103
    %v4178 = vunpack.c.h.b16 %v4103
    %v4179 = vunpack.c.l.b16 %v4104
    %v4180 = vunpack.c.h.b16 %v4104
    %v4181 = vunpack.c.l.b16 %v4105
    %v4182 = vunpack.c.h.b16 %v4105
    %v4183 = vunpack.c.l.b16 %v4106
    %v4184 = vunpack.c.h.b16 %v4106
    %v4185 = vunpack.c.l.b16 %v4107
    %v4186 = vunpack.c.h.b16 %v4107
    %v4187 = vunpack.c.l.b16 %v4108
    %v4188 = vunpack.c.h.b16 %v4108
    %v4189 = vunpack.c.l.b16 %v4109
    %v4190 = vunpack.c.h.b16 %v4109
    %v4191 = vunpack.c.l.b16 %v4110
    %v4192 = vunpack.c.h.b16 %v4110
    %v4193 = vunpack.c.l.b16 %v4111
    %v4194 = vunpack.c.h.b16 %v4111
    %v4195 = vunpack.c.l.b16 %v4112
    %v4196 = vunpack.c.h.b16 %v4112
    %v4197 = vunpack.c.l.b16 %v4113
    %v4198 = vunpack.c.h.b16 %v4113
    %v4199 = vunpack.c.l.b16 %v4114
    %v4200 = vunpack.c.h.b16 %v4114
    %v4201 = vunpack.c.l.b16 %v4115
    %v4202 = vunpack.c.h.b16 %v4115
    %v4203 = vunpack.c.l.b16 %v4116
    %v4204 = vunpack.c.h.b16 %v4116
    %v4205 = vunpack.c.l.b16 %v4117
    %v4206 = vunpack.c.h.b16 %v4117
    %v4207 = vunpack.c.l.b16 %v4118
    %v4208 = vunpack.c.h.b16 %v4118
    %v4209 = vunpack.c.l.b16 %v4119
    %v4210 = vunpack.c.h.b16 %v4119
    %v4211 = vunpack.c.l.b16 %v4120
    %v4212 = vunpack.c.h.b16 %v4120
    %v4213 = vunpack.c.l.b16 %v4121
    %v4214 = vunpack.c.h.b16 %v4121
    %v4215 = vunpack.c.l.b16 %v4122
    %v4216 = vunpack.c.h.b16 %v4122
    %v4217 = vunpack.c.l.b16 %v4123
    %v4218 = vunpack.c.h.b16 %v4123
    %v4219 = vunpack.c.l.b16 %v4124
    %v4220 = vunpack.c.h.b16 %v4124
    %v4221 = vpack.c.b16 %v4161, %v4157
    %v4222 = vpack.c.b16 %v4162, %v4158
    %v4223 = vpack.c.b16 %v4163, %v4159
    %v4224 = vpack.c.b16 %v4164, %v4160
    %v4225 = vpack.c.b16 %v4169, %v4165
    %v4226 = vpack.c.b16 %v4170, %v4166
    %v4227 = vpack.c.b16 %v4171, %v4167
    %v4228 = vpack.c.b16 %v4172, %v4168
    %v4229 = vpack.c.b16 %v4177, %v4173
    %v4230 = vpack.c.b16 %v4178, %v4174
    %v4231 = vpack.c.b16 %v4179, %v4175
    %v4232 = vpack.c.b16 %v4180, %v4176
    %v4233 = vpack.c.b16 %v4185, %v4181
    %v4234 = vpack.c.b16 %v4186, %v4182
    %v4235 = vpack.c.b16 %v4187, %v4183
    %v4236 = vpack.c.b16 %v4188, %v4184
    %v4237 = vpack.c.b16 %v4193, %v4189
    %v4238 = vpack.c.b16 %v4194, %v4190
    %v4239 = vpack.c.b16 %v4195, %v4191
    %v4240 = vpack.c.b16 %v4196, %v4192
    %v4241 = vpack.c.b16 %v4201, %v4197
    %v4242 = vpack.c.b16 %v4202, %v4198
    %v4243 = vpack.c.b16 %v4203, %v4199
    %v4244 = vpack.c.b16 %v4204, %v4200
    %v4245 = vpack.c.b16 %v4209, %v4205
    %v4246 = vpack.c.b16 %v4210, %v4206
    %v4247 = vpack.c.b16 %v4211, %v4207
    %v4248 = vpack.c.b16 %v4212, %v4208
    %v4249 = vpack.c.b16 %v4217, %v4213
    %v4250 = vpack.c.b16 %v4218, %v4214
    %v4251 = vpack.c.b16 %v4219, %v4215
    %v4252 = vpack.c.b16 %v4220, %v4216
    %4285 = vmatpush.bf16.msra.mxu0 %v4249
    %4286 = vmatpush.bf16.msra.mxu0 %v4245
    %4287 = vmatpush.bf16.msra.mxu0 %v4241
    %4288 = vmatpush.bf16.msra.mxu0 %v4237
    %4289 = vmatpush.bf16.msra.mxu0 %v4233
    %4290 = vmatpush.bf16.msra.mxu0 %v4229
    %4291 = vmatpush.bf16.msra.mxu0 %v4225
    %4292 = vmatpush.bf16.msra.mxu0 %v4221
    %4293 = vmatmul.bf16.gmra.mxu0 %v4092
    %v4294 = vpop.f32.mrf.mxu0
    %v4295 = vadd.f32 0.0, %v4294
    %v4296 = vpop.f32.mrf.mxu0
    %v4297 = vadd.f32 0.0, %v4296
    %4298 = vdwg.mxu0
    %4299 = vmatpush.bf16.msra.mxu0 %v4250
    %4300 = vmatpush.bf16.msra.mxu0 %v4246
    %4301 = vmatpush.bf16.msra.mxu0 %v4242
    %4302 = vmatpush.bf16.msra.mxu0 %v4238
    %4303 = vmatpush.bf16.msra.mxu0 %v4234
    %4304 = vmatpush.bf16.msra.mxu0 %v4230
    %4305 = vmatpush.bf16.msra.mxu0 %v4226
    %4306 = vmatpush.bf16.msra.mxu0 %v4222
    %4307 = vmatmul.bf16.gmra.mxu0 %v4092
    %v4308 = vpop.f32.mrf.mxu0
    %v4309 = vadd.f32 0.0, %v4308
    %v4310 = vpop.f32.mrf.mxu0
    %v4311 = vadd.f32 0.0, %v4310
    %4312 = vdwg.mxu0
    %4313 = vmatpush.bf16.msra.mxu0 %v4251
    %4314 = vmatpush.bf16.msra.mxu0 %v4247
    %4315 = vmatpush.bf16.msra.mxu0 %v4243
    %4316 = vmatpush.bf16.msra.mxu0 %v4239
    %4317 = vmatpush.bf16.msra.mxu0 %v4235
    %4318 = vmatpush.bf16.msra.mxu0 %v4231
    %4319 = vmatpush.bf16.msra.mxu0 %v4227
    %4320 = vmatpush.bf16.msra.mxu0 %v4223
    %4321 = vmatmul.bf16.gmra.mxu0 %v4092
    %v4322 = vpop.f32.mrf.mxu0
    %v4323 = vadd.f32 0.0, %v4322
    %v4324 = vpop.f32.mrf.mxu0
    %v4325 = vadd.f32 0.0, %v4324
    %4326 = vdwg.mxu0
    %4327 = vmatpush.bf16.msra.mxu0 %v4252
    %4328 = vmatpush.bf16.msra.mxu0 %v4248
    %4329 = vmatpush.bf16.msra.mxu0 %v4244
    %4330 = vmatpush.bf16.msra.mxu0 %v4240
    %4331 = vmatpush.bf16.msra.mxu0 %v4236
    %4332 = vmatpush.bf16.msra.mxu0 %v4232
    %4333 = vmatpush.bf16.msra.mxu0 %v4228
    %4334 = vmatpush.bf16.msra.mxu0 %v4224
    %4335 = vmatmul.bf16.gmra.mxu0 %v4092
    %v4336 = vpop.f32.mrf.mxu0
    %v4337 = vadd.f32 0.0, %v4336
    %v4338 = vpop.f32.mrf.mxu0
    %v4339 = vadd.f32 0.0, %v4338
    %4340 = vdwg.mxu0
    %v4341 = vadd.f32 %v4084, %v4295
    %v4342 = vadd.f32 %v4085, %v4309
    %v4343 = vadd.f32 %v4086, %v4323
    %v4344 = vadd.f32 %v4087, %v4337
    %v4345 = vadd.f32 %v4088, %v4297
    %v4346 = vadd.f32 %v4089, %v4311
    %v4347 = vadd.f32 %v4090, %v4325
    %v4348 = vadd.f32 %v4091, %v4339
    %v4349 = vxor.u32 %v4341, 2147483648
    %v4350 = vxor.u32 %v4342, 2147483648
    %v4351 = vxor.u32 %v4343, 2147483648
    %v4352 = vxor.u32 %v4345, 2147483648
    %v4353 = vxor.u32 %v4346, 2147483648
    %v4354 = vxor.u32 %v4347, 2147483648
    %v4355 = vmul.f32 %v4349, 1.442695
    %v4356 = vpow.pop %v4355
    %v4357 = vmul.f32 %v4350, 1.442695
    %v4358 = vpow.pop %v4357
    %v4359 = vmul.f32 %v4351, 1.442695
    %v4360 = vpow.pop %v4359
    %v4361 = vmul.f32 %v4352, 1.442695
    %v4362 = vpow.pop %v4361
    %v4363 = vmul.f32 %v4353, 1.442695
    %v4364 = vpow.pop %v4363
    %v4365 = vmul.f32 %v4354, 1.442695
    %v4366 = vpow.pop %v4365
    %v4367 = vadd.f32 %v4356, 1.0
    %v4368 = vadd.f32 %v4358, 1.0
    %v4369 = vadd.f32 %v4360, 1.0
    %v4370 = vadd.f32 %v4362, 1.0
    %v4371 = vadd.f32 %v4364, 1.0
    %v4372 = vadd.f32 %v4366, 1.0
    %v4373 = vrcp.pop %v4367
    %v4374 = vmul.f32 %v4367, %v4373
    %v4375 = vsub.f32 1.0, %v4374
    %v4376 = vmul.f32 %v4373, %v4375
    %v4377 = vadd.f32 %v4373, %v4376
    %vm4378 = vweird.f32 %v4367
    %vm4379 = vweird.f32 %v4373
    %vm4380 = vmor %vm4378, %vm4379
    %v4381 = vsel %vm4380, %v4373, %v4377
    %v4382 = vand.u32 2147483647, %v4367
    %vm4383 = vcmp.eq.f32.partialorder %v4382, 8.507059e+37
    %v4384 = vand.u32 %v4367, 2147483648
    %v4385 = vor.u32 1.1754944e-38, %v4384
    %v4386 = vsel %vm4383, %v4385, %v4381
    %v4387 = vmul.f32 1.0, %v4386
    %v4388 = vrcp.pop %v4368
    %v4389 = vmul.f32 %v4368, %v4388
    %v4390 = vsub.f32 1.0, %v4389
    %v4391 = vmul.f32 %v4388, %v4390
    %v4392 = vadd.f32 %v4388, %v4391
    %vm4393 = vweird.f32 %v4368
    %vm4394 = vweird.f32 %v4388
    %vm4395 = vmor %vm4393, %vm4394
    %v4396 = vsel %vm4395, %v4388, %v4392
    %v4397 = vand.u32 2147483647, %v4368
    %vm4398 = vcmp.eq.f32.partialorder %v4397, 8.507059e+37
    %v4399 = vand.u32 %v4368, 2147483648
    %v4400 = vor.u32 1.1754944e-38, %v4399
    %v4401 = vsel %vm4398, %v4400, %v4396
    %v4402 = vmul.f32 1.0, %v4401
    %v4403 = vrcp.pop %v4369
    %v4404 = vmul.f32 %v4369, %v4403
    %v4405 = vsub.f32 1.0, %v4404
    %v4406 = vmul.f32 %v4403, %v4405
    %v4407 = vadd.f32 %v4403, %v4406
    %vm4408 = vweird.f32 %v4369
    %vm4409 = vweird.f32 %v4403
    %vm4410 = vmor %vm4408, %vm4409
    %v4411 = vsel %vm4410, %v4403, %v4407
    %v4412 = vand.u32 2147483647, %v4369
    %vm4413 = vcmp.eq.f32.partialorder %v4412, 8.507059e+37
    %v4414 = vand.u32 %v4369, 2147483648
    %v4415 = vor.u32 1.1754944e-38, %v4414
    %v4416 = vsel %vm4413, %v4415, %v4411
    %v4417 = vmul.f32 1.0, %v4416
    %v4418 = vrcp.pop %v4370
    %v4419 = vmul.f32 %v4370, %v4418
    %v4420 = vsub.f32 1.0, %v4419
    %v4421 = vmul.f32 %v4418, %v4420
    %v4422 = vadd.f32 %v4418, %v4421
    %vm4423 = vweird.f32 %v4370
    %vm4424 = vweird.f32 %v4418
    %vm4425 = vmor %vm4423, %vm4424
    %v4426 = vsel %vm4425, %v4418, %v4422
    %v4427 = vand.u32 2147483647, %v4370
    %vm4428 = vcmp.eq.f32.partialorder %v4427, 8.507059e+37
    %v4429 = vand.u32 %v4370, 2147483648
    %v4430 = vor.u32 1.1754944e-38, %v4429
    %v4431 = vsel %vm4428, %v4430, %v4426
    %v4432 = vmul.f32 1.0, %v4431
    %v4433 = vrcp.pop %v4371
    %v4434 = vmul.f32 %v4371, %v4433
    %v4435 = vsub.f32 1.0, %v4434
    %v4436 = vmul.f32 %v4433, %v4435
    %v4437 = vadd.f32 %v4433, %v4436
    %vm4438 = vweird.f32 %v4371
    %vm4439 = vweird.f32 %v4433
    %vm4440 = vmor %vm4438, %vm4439
    %v4441 = vsel %vm4440, %v4433, %v4437
    %v4442 = vand.u32 2147483647, %v4371
    %vm4443 = vcmp.eq.f32.partialorder %v4442, 8.507059e+37
    %v4444 = vand.u32 %v4371, 2147483648
    %v4445 = vor.u32 1.1754944e-38, %v4444
    %v4446 = vsel %vm4443, %v4445, %v4441
    %v4447 = vmul.f32 1.0, %v4446
    %v4448 = vrcp.pop %v4372
    %v4449 = vmul.f32 %v4372, %v4448
    %v4450 = vsub.f32 1.0, %v4449
    %v4451 = vmul.f32 %v4448, %v4450
    %v4452 = vadd.f32 %v4448, %v4451
    %vm4453 = vweird.f32 %v4372
    %vm4454 = vweird.f32 %v4448
    %vm4455 = vmor %vm4453, %vm4454
    %v4456 = vsel %vm4455, %v4448, %v4452
    %v4457 = vand.u32 2147483647, %v4372
    %vm4458 = vcmp.eq.f32.partialorder %v4457, 8.507059e+37
    %v4459 = vand.u32 %v4372, 2147483648
    %v4460 = vor.u32 1.1754944e-38, %v4459
    %v4461 = vsel %vm4458, %v4460, %v4456
    %v4462 = vmul.f32 1.0, %v4461
    %v4463 = vtanh.pop %v4344
    %v4464 = vtanh.pop %v4348
    %v4465 = vmul.f32 %v4402, %v4050
    %v4466 = vmul.f32 %v4447, %v4051
    %v4467 = vmul.f32 %v4387, %v4463
    %v4468 = vmul.f32 %v4432, %v4464
    %v4469 = vadd.f32 %v4465, %v4467
    %v4470 = vadd.f32 %v4466, %v4468
    %v4471 = vtanh.pop %v4469
    %v4472 = vtanh.pop %v4470
    %v4473 = vmul.f32 %v4417, %v4471
    %v4474 = vmul.f32 %v4462, %v4472
    %s4475 = sadd.s32 %s1541, %s4080
    %v4476 = vstv %s4475
    %vm4477 = vcmp.gt.s32.totalorder %v1130, %v4476
    %vm4478 = vcmp.gt.s32.totalorder %v1131, %v4476
    %v4479 = vsel %vm4477, 1, 0
    %v4480 = vsel %vm4478, 1, 0
    %v4481 = vcvt.s32.f32 %v4479
    %v4482 = vcvt.s32.f32 %v4480
    %4484 = vset.pattern.permute.xlu0 0
    %4485 = vperm.xlu0 %4484, %v4481
    %v4486 = vpop.permute.xlu0 %4485
    %4489 = vset.pattern.permute.xlu0 0
    %4490 = vperm.xlu0 %4489, %v4482
    %v4491 = vpop.permute.xlu0 %4490
    %v4493 = vmul.f32 %v4473, %v4486
    %v4494 = vmul.f32 %v4474, %v4491
    %s4495 = smul.u32 %s4080, 16
    %s4496 = scalar_lea.vmem %s5, %s4495
    %4497 = vst [vmem:[%s4496] sm:$0xff] %v4493
    %4498 = vst [vmem:[%s4496 + $0x8] sm:$0xff] %v4494
  $region30: #{batch_rnn_forward.3} parent=0 // loop_footer
    %s1141 = sadd.s32 1, %s1137
  $region31: #{batch_rnn_forward.3} parent=0 // loop_footer_branch
    %1136 = sbr.rel target = $region27
  $region32: #{batch_rnn_forward.3} parent=0 // loop_exit
    _
  %4499 = vst [vmem:[#allocation3] sm:$0xff] %v1142
  %4500 = vst [vmem:[#allocation3 + $0x8] sm:$0xff] %v1143
  %4501 = vst [vmem:[#allocation4] sm:$0xff] %v1144
  %4502 = vst [vmem:[#allocation4 + $0x8] sm:$0xff] %v1145
  // Predicated region
  $region33: #{batch_rnn_forward.3} parent=0 // pred_check
    _
  $region34: #{batch_rnn_forward.3} parent=0 // pred_check_branch
    %4504 = sbr.rel (0) target = $region36
  $region35: #{batch_rnn_forward.3} parent=0 // pred_region
    _
  $region36: #{batch_rnn_forward.3} parent=0 // pred_fallthru
    _
  // Predicated region
  $region37: #{batch_rnn_forward.3} parent=0 // pred_check
    _
  $region38: #{batch_rnn_forward.3} parent=0 // pred_check_branch
    %4506 = sbr.rel (0) target = $region40
  $region39: #{batch_rnn_forward.3} parent=0 // pred_region
    _
  $region40: #{batch_rnn_forward.3} parent=0 // pred_fallthru
    _

</llo_original>
